<compile_context>
chip_gen: v7x
topology: tpu7x:2x2x1
jax: 0.10.0
libtpu: 0.0.40
codegen_flags: <defaults>
</compile_context>

<pallas_src>
import functools

import jax
import jax.numpy as jnp
from jax.experimental import pallas as pl
from jax.experimental.pallas import tpu as pltpu

EPS = 1e-5
SQRT_HALF = 0.7071067811865476  # 1/sqrt(2)


def _gelu_exact(x):
    # PyTorch nn.GELU() default = exact erf-based GELU.
    return 0.5 * x * (1.0 + jax.lax.erf(x * SQRT_HALF))


# ----------------------------------------------------------------------------
# Fused per-example kernel:
#   conv3x3+bias -> GELU -> BN   (x2 layers, im2col + single K=9*Cin matmul)
#   1x1 conv (+bias,BN folded)   -> SE gate -> residual add -> ReLU
#   AvgPool2d(2,2)               (constant pooling matrix on the MXU)
# ----------------------------------------------------------------------------
def encoder_block_kernel(x_ref, w1_ref, w2_ref, w3_ref, wse1_ref, wse2_ref,
                         vec_ref, bse1_ref, pool_ref,
                         x4_ref, pool_out_ref,
                         pad1_ref, slab1_ref, pad2_ref, slab2_ref):
    H, W, Cin = x_ref.shape
    Cout = x4_ref.shape[-1]
    M = H * W
    COFF = 8  # column offset of valid data in the padded scratch (8-aligned)

    # Packed per-channel vectors, rows of vec_ref (9, Cout):
    #   0: conv1 bias   1: bn1 scale   2: bn1 shift
    #   3: conv2 bias   4: bn2 scale   5: bn2 shift
    #   6: bn3 scale    7: bn3 shift (conv3 bias folded)   8: SE fc2 bias
    b1, sc1, sh1 = vec_ref[0:1, :], vec_ref[1:2, :], vec_ref[2:3, :]
    b2, sc2, sh2 = vec_ref[3:4, :], vec_ref[4:5, :], vec_ref[5:6, :]
    sc3, sh3 = vec_ref[6:7, :], vec_ref[7:8, :]
    bse2 = vec_ref[8:9, :]

    def conv3x3(pad_ref, slab_ref, w_ref, cin, b, scale, shift):
        # Build the im2col slab (M, 9*cin) once, then a single MXU matmul.
        for ky in range(3):
            for kx in range(3):
                t = ky * 3 + kx
                tap = pad_ref[ky:ky + H, COFF - 1 + kx:COFF - 1 + kx + W, :]
                slab_ref[:, t * cin:(t + 1) * cin] = tap.reshape(M, cin)
        acc = jnp.dot(slab_ref[...], w_ref[...],
                      preferred_element_type=jnp.float32)
        acc = _gelu_exact(acc + b)               # conv bias -> GELU
        return acc * scale + shift               # folded BatchNorm (eval mode)

    # --- ConvbnGelu #1 -------------------------------------------------------
    pad1_ref[...] = jnp.zeros(pad1_ref.shape, pad1_ref.dtype)
    pad1_ref[1:H + 1, COFF:COFF + W, :] = x_ref[...]      # in-VMEM halo pad
    y1 = conv3x3(pad1_ref, slab1_ref, w1_ref, Cin, b1, sc1, sh1)   # (M, Cout)

    # --- ConvbnGelu #2 (input stays in VMEM, never hits HBM) -----------------
    pad2_ref[...] = jnp.zeros(pad2_ref.shape, pad2_ref.dtype)
    pad2_ref[1:H + 1, COFF:COFF + W, :] = y1.reshape(H, W, Cout)
    x2 = conv3x3(pad2_ref, slab2_ref, w2_ref, Cout, b2, sc2, sh2)  # (M, Cout)

    # --- 1x1 conv + BN (bias and BN folded into scale/shift) -----------------
    x3 = jnp.dot(x_ref[...].reshape(M, Cin), w3_ref[...],
                 preferred_element_type=jnp.float32) * sc3 + sh3

    # --- Squeeze-and-Excitation (per-example tile => pool is within-tile) ----
    pooled = jnp.mean(x3, axis=0, keepdims=True)                    # (1, Cout)
    h = jnp.dot(pooled, wse1_ref[...],
                preferred_element_type=jnp.float32) + bse1_ref[...]
    h = h * jax.nn.sigmoid(h)                                       # SiLU
    gate = jax.nn.sigmoid(jnp.dot(h, wse2_ref[...],
                                  preferred_element_type=jnp.float32) + bse2)
    x3 = x3 * gate

    # --- residual add + ReLU --------------------------------------------------
    x4 = jnp.maximum(x2 + x3, 0.0)                                  # (M, Cout)
    x4_ref[...] = x4.astype(x4_ref.dtype)

    # --- fused AvgPool2d(2,2): constant (H2*W2, H*W) matrix on the MXU --------
    pool_out_ref[...] = jnp.dot(pool_ref[...], x4,
                                preferred_element_type=jnp.float32
                                ).astype(pool_out_ref.dtype)


# ----------------------------------------------------------------------------
# Wrapper: layout conversion, BN folding, pooling matrix, one pallas_call.
# ----------------------------------------------------------------------------
def encoder_block(x_nchw, params):
    f32 = jnp.float32
    x = jnp.transpose(x_nchw, (0, 2, 3, 1)).astype(f32)       # NCHW -> NHWC
    N, H, W, Cin = x.shape
    Cout = params["w1"].shape[-1]
    R = params["wse1"].shape[-1]
    H2, W2 = H // 2, W // 2

    # Fold BatchNorm (eval mode) into per-channel scale/shift.
    sc1 = params["g1"] * jax.lax.rsqrt(params["var1"] + EPS)
    sh1 = params["beta1"] - params["mu1"] * sc1
    sc2 = params["g2"] * jax.lax.rsqrt(params["var2"] + EPS)
    sh2 = params["beta2"] - params["mu2"] * sc2
    sc3 = params["g3"] * jax.lax.rsqrt(params["var3"] + EPS)
    sh3 = (params["b3"] - params["mu3"]) * sc3 + params["beta3"]   # + conv bias

    vecs = jnp.stack([params["b1"], sc1, sh1,
                      params["b2"], sc2, sh2,
                      sc3, sh3, params["bse2"]], axis=0).astype(f32)   # (9, Cout)

    w1 = params["w1"].reshape(9 * Cin, Cout).astype(f32)   # (ky,kx,ci) -> K
    w2 = params["w2"].reshape(9 * Cout, Cout).astype(f32)
    w3 = params["w3"].astype(f32)
    wse1 = params["wse1"].astype(f32)
    wse2 = params["wse2"].astype(f32)
    bse1 = params["bse1"].reshape(1, R).astype(f32)

    # 2x2 / stride-2 average pooling as a constant matmul.
    m = jnp.arange(H * W)
    dst = (m // W // 2) * W2 + (m % W) // 2
    poolmat = 0.25 * jax.nn.one_hot(dst, H2 * W2, dtype=f32).T     # (H2*W2, H*W)

    x4_flat, pool_flat = pl.pallas_call(
        encoder_block_kernel,
        out_shape=(jax.ShapeDtypeStruct((N, H * W, Cout), f32),
                   jax.ShapeDtypeStruct((N, H2 * W2, Cout), f32)),
        grid_spec=pltpu.PrefetchScalarGridSpec(
            num_scalar_prefetch=0,
            grid=(N,),
            in_specs=[
                pl.BlockSpec((None, H, W, Cin), lambda n: (n, 0, 0, 0)),  # x
                pl.BlockSpec((9 * Cin, Cout), lambda n: (0, 0)),          # w1
                pl.BlockSpec((9 * Cout, Cout), lambda n: (0, 0)),         # w2
                pl.BlockSpec((Cin, Cout), lambda n: (0, 0)),              # w3
                pl.BlockSpec((Cout, R), lambda n: (0, 0)),                # wse1
                pl.BlockSpec((R, Cout), lambda n: (0, 0)),                # wse2
                pl.BlockSpec((9, Cout), lambda n: (0, 0)),                # vecs
                pl.BlockSpec((1, R), lambda n: (0, 0)),                   # bse1
                pl.BlockSpec((H2 * W2, H * W), lambda n: (0, 0)),         # poolmat
            ],
            out_specs=[
                pl.BlockSpec((None, H * W, Cout), lambda n: (n, 0, 0)),
                pl.BlockSpec((None, H2 * W2, Cout), lambda n: (n, 0, 0)),
            ],
            scratch_shapes=[
                pltpu.VMEM((H + 2, W + 9, Cin), f32),    # padded input #1
                pltpu.VMEM((H * W, 9 * Cin), f32),       # im2col slab #1
                pltpu.VMEM((H + 2, W + 9, Cout), f32),   # padded input #2
                pltpu.VMEM((H * W, 9 * Cout), f32),      # im2col slab #2
            ]),
        compiler_params=pltpu.CompilerParams(
            dimension_semantics=("parallel",)),
    )(x, w1, w2, w3, wse1, wse2, vecs, bse1, poolmat)

    # Back to NCHW (PyTorch convention); pure layout plumbing outside kernels.
    x4 = jnp.transpose(x4_flat.reshape(N, H, W, Cout), (0, 3, 1, 2))
    pooled = jnp.transpose(pool_flat.reshape(N, H2, W2, Cout), (0, 3, 1, 2))
    return x4, pooled


# ----------------------------------------------------------------------------
# Deterministic parameter init + demo run
# ----------------------------------------------------------------------------
def make_params(key, in_c, out_c, reduced=16):
    ks = jax.random.split(key, 22)

    def nrm(k, shape, scale=0.1):
        return scale * jax.random.normal(k, shape, dtype=jnp.float32)

    def pos(k, shape):
        return 0.5 + jax.random.uniform(k, shape, dtype=jnp.float32)

    return dict(
        # ConvbnGelu #1
        w1=nrm(ks[0], (3, 3, in_c, out_c)), b1=nrm(ks[1], (out_c,)),
        g1=1.0 + nrm(ks[2], (out_c,)), beta1=nrm(ks[3], (out_c,)),
        mu1=nrm(ks[4], (out_c,)), var1=pos(ks[5], (out_c,)),
        # ConvbnGelu #2
        w2=nrm(ks[6], (3, 3, out_c, out_c)), b2=nrm(ks[7], (out_c,)),
        g2=1.0 + nrm(ks[8], (out_c,)), beta2=nrm(ks[9], (out_c,)),
        mu2=nrm(ks[10], (out_c,)), var2=pos(ks[11], (out_c,)),
        # 1x1 conv + bn3
        w3=nrm(ks[12], (in_c, out_c)), b3=nrm(ks[13], (out_c,)),
        g3=1.0 + nrm(ks[14], (out_c,)), beta3=nrm(ks[15], (out_c,)),
        mu3=nrm(ks[16], (out_c,)), var3=pos(ks[17], (out_c,)),
        # SEAttention (reduced_dim=16 default)
        wse1=nrm(ks[18], (out_c, reduced)), bse1=nrm(ks[19], (reduced,)),
        wse2=nrm(ks[20], (reduced, out_c)), bse2=nrm(ks[21], (out_c,)),
    )


if __name__ == "__main__":
    N, in_c, out_c, H, W = 2, 4, 8, 16, 16
    key = jax.random.PRNGKey(0)
    k_params, k_x = jax.random.split(key)
    params = make_params(k_params, in_c, out_c)
    x = jax.random.normal(k_x, (N, in_c, H, W), dtype=jnp.float32)

    fn = jax.jit(functools.partial(encoder_block, params=params))
    x4, p = fn(x)
    jax.block_until_ready((x4, p))

    assert x4.shape == (N, out_c, H, W), x4.shape
    assert p.shape == (N, out_c, H // 2, W // 2), p.shape
    assert bool(jnp.all(jnp.isfinite(x4))) and bool(jnp.all(jnp.isfinite(p)))
    assert bool(jnp.all(x4 >= 0.0))  # ReLU output
    print("KERNEL_OK")
</pallas_src>

<mosaic_0001>
module attributes {stable_mosaic.version = 11 : i64} {
  func.func @encoder_block_kernel(%arg0: i32, %arg1: memref<1x16x16x4xf32, #tpu.memory_space<vmem>>, %arg2: memref<36x8xf32, #tpu.memory_space<vmem>>, %arg3: memref<72x8xf32, #tpu.memory_space<vmem>>, %arg4: memref<4x8xf32, #tpu.memory_space<vmem>>, %arg5: memref<8x16xf32, #tpu.memory_space<vmem>>, %arg6: memref<16x8xf32, #tpu.memory_space<vmem>>, %arg7: memref<9x8xf32, #tpu.memory_space<vmem>>, %arg8: memref<1x16xf32, #tpu.memory_space<vmem>>, %arg9: memref<64x256xf32, #tpu.memory_space<vmem>>, %arg10: memref<1x256x8xf32, #tpu.memory_space<vmem>>, %arg11: memref<1x64x8xf32, #tpu.memory_space<vmem>>, %arg12: memref<18x25x4xf32, #tpu.memory_space<vmem>>, %arg13: memref<256x36xf32, #tpu.memory_space<vmem>>, %arg14: memref<18x25x8xf32, #tpu.memory_space<vmem>>, %arg15: memref<256x72xf32, #tpu.memory_space<vmem>>) attributes {dimension_semantics = [#tpu.dimension_semantics<parallel>], iteration_bounds = array<i64: 2>, scalar_prefetch = 0 : i64, scratch_operands = 4 : i64, tpu.core_type = #tpu.core_type<tc>, window_params = [{transform_indices = @transform_0, window_bounds = array<i64: 1, 16, 16, 4>}, {pipeline_mode = #tpu.pipeline_mode<synchronous>, transform_indices = @transform_1, window_bounds = array<i64: 36, 8>}, {pipeline_mode = #tpu.pipeline_mode<synchronous>, transform_indices = @transform_2, window_bounds = array<i64: 72, 8>}, {pipeline_mode = #tpu.pipeline_mode<synchronous>, transform_indices = @transform_3, window_bounds = array<i64: 4, 8>}, {pipeline_mode = #tpu.pipeline_mode<synchronous>, transform_indices = @transform_4, window_bounds = array<i64: 8, 16>}, {pipeline_mode = #tpu.pipeline_mode<synchronous>, transform_indices = @transform_5, window_bounds = array<i64: 16, 8>}, {pipeline_mode = #tpu.pipeline_mode<synchronous>, transform_indices = @transform_6, window_bounds = array<i64: 9, 8>}, {pipeline_mode = #tpu.pipeline_mode<synchronous>, transform_indices = @transform_7, window_bounds = array<i64: 1, 16>}, {pipeline_mode = #tpu.pipeline_mode<synchronous>, transform_indices = @transform_8, window_bounds = array<i64: 64, 256>}, {transform_indices = @transform_9, window_bounds = array<i64: 1, 256, 8>}, {transform_indices = @transform_10, window_bounds = array<i64: 1, 64, 8>}]} {
    %c0 = arith.constant 0 : index
    %c0_0 = arith.constant 0 : index
    %0 = vector.load %arg7[%c0, %c0_0] : memref<9x8xf32, #tpu.memory_space<vmem>>, vector<1x8xf32>
    %c1 = arith.constant 1 : index
    %c0_1 = arith.constant 0 : index
    %1 = vector.load %arg7[%c1, %c0_1] : memref<9x8xf32, #tpu.memory_space<vmem>>, vector<1x8xf32>
    %c2 = arith.constant 2 : index
    %c0_2 = arith.constant 0 : index
    %2 = vector.load %arg7[%c2, %c0_2] : memref<9x8xf32, #tpu.memory_space<vmem>>, vector<1x8xf32>
    %c3 = arith.constant 3 : index
    %c0_3 = arith.constant 0 : index
    %3 = vector.load %arg7[%c3, %c0_3] : memref<9x8xf32, #tpu.memory_space<vmem>>, vector<1x8xf32>
    %c4 = arith.constant 4 : index
    %c0_4 = arith.constant 0 : index
    %4 = vector.load %arg7[%c4, %c0_4] : memref<9x8xf32, #tpu.memory_space<vmem>>, vector<1x8xf32>
    %c5 = arith.constant 5 : index
    %c0_5 = arith.constant 0 : index
    %5 = vector.load %arg7[%c5, %c0_5] : memref<9x8xf32, #tpu.memory_space<vmem>>, vector<1x8xf32>
    %c6 = arith.constant 6 : index
    %c0_6 = arith.constant 0 : index
    %6 = vector.load %arg7[%c6, %c0_6] : memref<9x8xf32, #tpu.memory_space<vmem>>, vector<1x8xf32>
    %c7 = arith.constant 7 : index
    %c0_7 = arith.constant 0 : index
    %7 = vector.load %arg7[%c7, %c0_7] : memref<9x8xf32, #tpu.memory_space<vmem>>, vector<1x8xf32>
    %c8 = arith.constant 8 : index
    %c0_8 = arith.constant 0 : index
    %8 = vector.load %arg7[%c8, %c0_8] : memref<9x8xf32, #tpu.memory_space<vmem>>, vector<1x8xf32>
    %cst = arith.constant 0.000000e+00 : f32
    %9 = vector.broadcast %cst : f32 to vector<18x25x4xf32>
    %c0_9 = arith.constant 0 : index
    %c0_10 = arith.constant 0 : index
    %c0_11 = arith.constant 0 : index
    %10 = vector.load %arg12[%c0_9, %c0_10, %c0_11] : memref<18x25x4xf32, #tpu.memory_space<vmem>>, vector<18x25x4xf32>
    tpu.vector_store %arg12[%c0_9, %c0_10, %c0_11], %9 {strides = array<i32>} : memref<18x25x4xf32, #tpu.memory_space<vmem>>, vector<18x25x4xf32>,
    %c0_12 = arith.constant 0 : index
    %c0_13 = arith.constant 0 : index
    %c0_14 = arith.constant 0 : index
    %c0_15 = arith.constant 0 : index
    %11 = vector.load %arg1[%c0_12, %c0_13, %c0_14, %c0_15] : memref<1x16x16x4xf32, #tpu.memory_space<vmem>>, vector<1x16x16x4xf32>
    %12 = vector.shape_cast %11 : vector<1x16x16x4xf32> to vector<16x16x4xf32>
    %c1_16 = arith.constant 1 : index
    %c8_17 = arith.constant 8 : index
    %c0_18 = arith.constant 0 : index
    %13 = vector.load %arg12[%c1_16, %c8_17, %c0_18] : memref<18x25x4xf32, #tpu.memory_space<vmem>>, vector<16x16x4xf32>
    tpu.vector_store %arg12[%c1_16, %c8_17, %c0_18], %12 {strides = array<i32>} : memref<18x25x4xf32, #tpu.memory_space<vmem>>, vector<16x16x4xf32>,
    %c0_19 = arith.constant 0 : index
    %c7_20 = arith.constant 7 : index
    %c0_21 = arith.constant 0 : index
    %14 = vector.load %arg12[%c0_19, %c7_20, %c0_21] : memref<18x25x4xf32, #tpu.memory_space<vmem>>, vector<16x16x4xf32>
    %15 = vector.shape_cast %14 : vector<16x16x4xf32> to vector<256x4xf32>
    %c0_22 = arith.constant 0 : index
    %c0_23 = arith.constant 0 : index
    %16 = vector.load %arg13[%c0_22, %c0_23] : memref<256x36xf32, #tpu.memory_space<vmem>>, vector<256x4xf32>
    tpu.vector_store %arg13[%c0_22, %c0_23], %15 {strides = array<i32>} : memref<256x36xf32, #tpu.memory_space<vmem>>, vector<256x4xf32>,
    %c0_24 = arith.constant 0 : index
    %c8_25 = arith.constant 8 : index
    %c0_26 = arith.constant 0 : index
    %17 = vector.load %arg12[%c0_24, %c8_25, %c0_26] : memref<18x25x4xf32, #tpu.memory_space<vmem>>, vector<16x16x4xf32>
    %18 = vector.shape_cast %17 : vector<16x16x4xf32> to vector<256x4xf32>
    %c0_27 = arith.constant 0 : index
    %c4_28 = arith.constant 4 : index
    %19 = vector.load %arg13[%c0_27, %c4_28] : memref<256x36xf32, #tpu.memory_space<vmem>>, vector<256x4xf32>
    tpu.vector_store %arg13[%c0_27, %c4_28], %18 {strides = array<i32>} : memref<256x36xf32, #tpu.memory_space<vmem>>, vector<256x4xf32>,
    %c0_29 = arith.constant 0 : index
    %c9 = arith.constant 9 : index
    %c0_30 = arith.constant 0 : index
    %20 = vector.load %arg12[%c0_29, %c9, %c0_30] : memref<18x25x4xf32, #tpu.memory_space<vmem>>, vector<16x16x4xf32>
    %21 = vector.shape_cast %20 : vector<16x16x4xf32> to vector<256x4xf32>
    %c0_31 = arith.constant 0 : index
    %c8_32 = arith.constant 8 : index
    %22 = vector.load %arg13[%c0_31, %c8_32] : memref<256x36xf32, #tpu.memory_space<vmem>>, vector<256x4xf32>
    tpu.vector_store %arg13[%c0_31, %c8_32], %21 {strides = array<i32>} : memref<256x36xf32, #tpu.memory_space<vmem>>, vector<256x4xf32>,
    %c1_33 = arith.constant 1 : index
    %c7_34 = arith.constant 7 : index
    %c0_35 = arith.constant 0 : index
    %23 = vector.load %arg12[%c1_33, %c7_34, %c0_35] : memref<18x25x4xf32, #tpu.memory_space<vmem>>, vector<16x16x4xf32>
    %24 = vector.shape_cast %23 : vector<16x16x4xf32> to vector<256x4xf32>
    %c0_36 = arith.constant 0 : index
    %c12 = arith.constant 12 : index
    %25 = vector.load %arg13[%c0_36, %c12] : memref<256x36xf32, #tpu.memory_space<vmem>>, vector<256x4xf32>
    tpu.vector_store %arg13[%c0_36, %c12], %24 {strides = array<i32>} : memref<256x36xf32, #tpu.memory_space<vmem>>, vector<256x4xf32>,
    %c1_37 = arith.constant 1 : index
    %c8_38 = arith.constant 8 : index
    %c0_39 = arith.constant 0 : index
    %26 = vector.load %arg12[%c1_37, %c8_38, %c0_39] : memref<18x25x4xf32, #tpu.memory_space<vmem>>, vector<16x16x4xf32>
    %27 = vector.shape_cast %26 : vector<16x16x4xf32> to vector<256x4xf32>
    %c0_40 = arith.constant 0 : index
    %c16 = arith.constant 16 : index
    %28 = vector.load %arg13[%c0_40, %c16] : memref<256x36xf32, #tpu.memory_space<vmem>>, vector<256x4xf32>
    tpu.vector_store %arg13[%c0_40, %c16], %27 {strides = array<i32>} : memref<256x36xf32, #tpu.memory_space<vmem>>, vector<256x4xf32>,
    %c1_41 = arith.constant 1 : index
    %c9_42 = arith.constant 9 : index
    %c0_43 = arith.constant 0 : index
    %29 = vector.load %arg12[%c1_41, %c9_42, %c0_43] : memref<18x25x4xf32, #tpu.memory_space<vmem>>, vector<16x16x4xf32>
    %30 = vector.shape_cast %29 : vector<16x16x4xf32> to vector<256x4xf32>
    %c0_44 = arith.constant 0 : index
    %c20 = arith.constant 20 : index
    %31 = vector.load %arg13[%c0_44, %c20] : memref<256x36xf32, #tpu.memory_space<vmem>>, vector<256x4xf32>
    tpu.vector_store %arg13[%c0_44, %c20], %30 {strides = array<i32>} : memref<256x36xf32, #tpu.memory_space<vmem>>, vector<256x4xf32>,
    %c2_45 = arith.constant 2 : index
    %c7_46 = arith.constant 7 : index
    %c0_47 = arith.constant 0 : index
    %32 = vector.load %arg12[%c2_45, %c7_46, %c0_47] : memref<18x25x4xf32, #tpu.memory_space<vmem>>, vector<16x16x4xf32>
    %33 = vector.shape_cast %32 : vector<16x16x4xf32> to vector<256x4xf32>
    %c0_48 = arith.constant 0 : index
    %c24 = arith.constant 24 : index
    %34 = vector.load %arg13[%c0_48, %c24] : memref<256x36xf32, #tpu.memory_space<vmem>>, vector<256x4xf32>
    tpu.vector_store %arg13[%c0_48, %c24], %33 {strides = array<i32>} : memref<256x36xf32, #tpu.memory_space<vmem>>, vector<256x4xf32>,
    %c2_49 = arith.constant 2 : index
    %c8_50 = arith.constant 8 : index
    %c0_51 = arith.constant 0 : index
    %35 = vector.load %arg12[%c2_49, %c8_50, %c0_51] : memref<18x25x4xf32, #tpu.memory_space<vmem>>, vector<16x16x4xf32>
    %36 = vector.shape_cast %35 : vector<16x16x4xf32> to vector<256x4xf32>
    %c0_52 = arith.constant 0 : index
    %c28 = arith.constant 28 : index
    %37 = vector.load %arg13[%c0_52, %c28] : memref<256x36xf32, #tpu.memory_space<vmem>>, vector<256x4xf32>
    tpu.vector_store %arg13[%c0_52, %c28], %36 {strides = array<i32>} : memref<256x36xf32, #tpu.memory_space<vmem>>, vector<256x4xf32>,
    %c2_53 = arith.constant 2 : index
    %c9_54 = arith.constant 9 : index
    %c0_55 = arith.constant 0 : index
    %38 = vector.load %arg12[%c2_53, %c9_54, %c0_55] : memref<18x25x4xf32, #tpu.memory_space<vmem>>, vector<16x16x4xf32>
    %39 = vector.shape_cast %38 : vector<16x16x4xf32> to vector<256x4xf32>
    %c0_56 = arith.constant 0 : index
    %c32 = arith.constant 32 : index
    %40 = vector.load %arg13[%c0_56, %c32] : memref<256x36xf32, #tpu.memory_space<vmem>>, vector<256x4xf32>
    tpu.vector_store %arg13[%c0_56, %c32], %39 {strides = array<i32>} : memref<256x36xf32, #tpu.memory_space<vmem>>, vector<256x4xf32>,
    %c0_57 = arith.constant 0 : index
    %c0_58 = arith.constant 0 : index
    %41 = vector.load %arg13[%c0_57, %c0_58] : memref<256x36xf32, #tpu.memory_space<vmem>>, vector<256x36xf32>
    %c0_59 = arith.constant 0 : index
    %c0_60 = arith.constant 0 : index
    %42 = vector.load %arg2[%c0_59, %c0_60] : memref<36x8xf32, #tpu.memory_space<vmem>>, vector<36x8xf32>
    %cst_61 = arith.constant dense<0.000000e+00> : vector<256x8xf32>
    %43 = tpu.matmul %41, %42, %cst_61 {dimension_numbers = #tpu.dot_dimension_numbers<[1], [0], [0], [1], [0, 0, 1, 1], [], []>} : vector<256x36xf32>, vector<36x8xf32>, vector<256x8xf32> -> vector<256x8xf32>
    %44 = vector.broadcast %0 : vector<1x8xf32> to vector<256x8xf32>
    %45 = arith.addf %43, %44 : vector<256x8xf32>
    %cst_62 = arith.constant 5.000000e-01 : f32
    %46 = vector.broadcast %cst_62 : f32 to vector<256x8xf32>
    %47 = arith.mulf %46, %45 : vector<256x8xf32>
    %cst_63 = arith.constant 0.707106769 : f32
    %48 = vector.broadcast %cst_63 : f32 to vector<256x8xf32>
    %49 = arith.mulf %45, %48 : vector<256x8xf32>
    %50 = math.erf %49 : vector<256x8xf32>
    %cst_64 = arith.constant 1.000000e+00 : f32
    %51 = vector.broadcast %cst_64 : f32 to vector<256x8xf32>
    %52 = arith.addf %51, %50 : vector<256x8xf32>
    %53 = arith.mulf %47, %52 : vector<256x8xf32>
    %54 = vector.broadcast %1 : vector<1x8xf32> to vector<256x8xf32>
    %55 = arith.mulf %53, %54 : vector<256x8xf32>
    %56 = vector.broadcast %2 : vector<1x8xf32> to vector<256x8xf32>
    %57 = arith.addf %55, %56 : vector<256x8xf32>
    %cst_65 = arith.constant 0.000000e+00 : f32
    %58 = vector.broadcast %cst_65 : f32 to vector<18x25x8xf32>
    %c0_66 = arith.constant 0 : index
    %c0_67 = arith.constant 0 : index
    %c0_68 = arith.constant 0 : index
    %59 = vector.load %arg14[%c0_66, %c0_67, %c0_68] : memref<18x25x8xf32, #tpu.memory_space<vmem>>, vector<18x25x8xf32>
    tpu.vector_store %arg14[%c0_66, %c0_67, %c0_68], %58 {strides = array<i32>} : memref<18x25x8xf32, #tpu.memory_space<vmem>>, vector<18x25x8xf32>,
    %60 = vector.shape_cast %57 : vector<256x8xf32> to vector<16x16x8xf32>
    %c1_69 = arith.constant 1 : index
    %c8_70 = arith.constant 8 : index
    %c0_71 = arith.constant 0 : index
    %61 = vector.load %arg14[%c1_69, %c8_70, %c0_71] : memref<18x25x8xf32, #tpu.memory_space<vmem>>, vector<16x16x8xf32>
    tpu.vector_store %arg14[%c1_69, %c8_70, %c0_71], %60 {strides = array<i32>} : memref<18x25x8xf32, #tpu.memory_space<vmem>>, vector<16x16x8xf32>,
    %c0_72 = arith.constant 0 : index
    %c7_73 = arith.constant 7 : index
    %c0_74 = arith.constant 0 : index
    %62 = vector.load %arg14[%c0_72, %c7_73, %c0_74] : memref<18x25x8xf32, #tpu.memory_space<vmem>>, vector<16x16x8xf32>
    %63 = vector.shape_cast %62 : vector<16x16x8xf32> to vector<256x8xf32>
    %c0_75 = arith.constant 0 : index
    %c0_76 = arith.constant 0 : index
    %64 = vector.load %arg15[%c0_75, %c0_76] : memref<256x72xf32, #tpu.memory_space<vmem>>, vector<256x8xf32>
    tpu.vector_store %arg15[%c0_75, %c0_76], %63 {strides = array<i32>} : memref<256x72xf32, #tpu.memory_space<vmem>>, vector<256x8xf32>,
    %c0_77 = arith.constant 0 : index
    %c8_78 = arith.constant 8 : index
    %c0_79 = arith.constant 0 : index
    %65 = vector.load %arg14[%c0_77, %c8_78, %c0_79] : memref<18x25x8xf32, #tpu.memory_space<vmem>>, vector<16x16x8xf32>
    %66 = vector.shape_cast %65 : vector<16x16x8xf32> to vector<256x8xf32>
    %c0_80 = arith.constant 0 : index
    %c8_81 = arith.constant 8 : index
    %67 = vector.load %arg15[%c0_80, %c8_81] : memref<256x72xf32, #tpu.memory_space<vmem>>, vector<256x8xf32>
    tpu.vector_store %arg15[%c0_80, %c8_81], %66 {strides = array<i32>} : memref<256x72xf32, #tpu.memory_space<vmem>>, vector<256x8xf32>,
    %c0_82 = arith.constant 0 : index
    %c9_83 = arith.constant 9 : index
    %c0_84 = arith.constant 0 : index
    %68 = vector.load %arg14[%c0_82, %c9_83, %c0_84] : memref<18x25x8xf32, #tpu.memory_space<vmem>>, vector<16x16x8xf32>
    %69 = vector.shape_cast %68 : vector<16x16x8xf32> to vector<256x8xf32>
    %c0_85 = arith.constant 0 : index
    %c16_86 = arith.constant 16 : index
    %70 = vector.load %arg15[%c0_85, %c16_86] : memref<256x72xf32, #tpu.memory_space<vmem>>, vector<256x8xf32>
    tpu.vector_store %arg15[%c0_85, %c16_86], %69 {strides = array<i32>} : memref<256x72xf32, #tpu.memory_space<vmem>>, vector<256x8xf32>,
    %c1_87 = arith.constant 1 : index
    %c7_88 = arith.constant 7 : index
    %c0_89 = arith.constant 0 : index
    %71 = vector.load %arg14[%c1_87, %c7_88, %c0_89] : memref<18x25x8xf32, #tpu.memory_space<vmem>>, vector<16x16x8xf32>
    %72 = vector.shape_cast %71 : vector<16x16x8xf32> to vector<256x8xf32>
    %c0_90 = arith.constant 0 : index
    %c24_91 = arith.constant 24 : index
    %73 = vector.load %arg15[%c0_90, %c24_91] : memref<256x72xf32, #tpu.memory_space<vmem>>, vector<256x8xf32>
    tpu.vector_store %arg15[%c0_90, %c24_91], %72 {strides = array<i32>} : memref<256x72xf32, #tpu.memory_space<vmem>>, vector<256x8xf32>,
    %c1_92 = arith.constant 1 : index
    %c8_93 = arith.constant 8 : index
    %c0_94 = arith.constant 0 : index
    %74 = vector.load %arg14[%c1_92, %c8_93, %c0_94] : memref<18x25x8xf32, #tpu.memory_space<vmem>>, vector<16x16x8xf32>
    %75 = vector.shape_cast %74 : vector<16x16x8xf32> to vector<256x8xf32>
    %c0_95 = arith.constant 0 : index
    %c32_96 = arith.constant 32 : index
    %76 = vector.load %arg15[%c0_95, %c32_96] : memref<256x72xf32, #tpu.memory_space<vmem>>, vector<256x8xf32>
    tpu.vector_store %arg15[%c0_95, %c32_96], %75 {strides = array<i32>} : memref<256x72xf32, #tpu.memory_space<vmem>>, vector<256x8xf32>,
    %c1_97 = arith.constant 1 : index
    %c9_98 = arith.constant 9 : index
    %c0_99 = arith.constant 0 : index
    %77 = vector.load %arg14[%c1_97, %c9_98, %c0_99] : memref<18x25x8xf32, #tpu.memory_space<vmem>>, vector<16x16x8xf32>
    %78 = vector.shape_cast %77 : vector<16x16x8xf32> to vector<256x8xf32>
    %c0_100 = arith.constant 0 : index
    %c40 = arith.constant 40 : index
    %79 = vector.load %arg15[%c0_100, %c40] : memref<256x72xf32, #tpu.memory_space<vmem>>, vector<256x8xf32>
    tpu.vector_store %arg15[%c0_100, %c40], %78 {strides = array<i32>} : memref<256x72xf32, #tpu.memory_space<vmem>>, vector<256x8xf32>,
    %c2_101 = arith.constant 2 : index
    %c7_102 = arith.constant 7 : index
    %c0_103 = arith.constant 0 : index
    %80 = vector.load %arg14[%c2_101, %c7_102, %c0_103] : memref<18x25x8xf32, #tpu.memory_space<vmem>>, vector<16x16x8xf32>
    %81 = vector.shape_cast %80 : vector<16x16x8xf32> to vector<256x8xf32>
    %c0_104 = arith.constant 0 : index
    %c48 = arith.constant 48 : index
    %82 = vector.load %arg15[%c0_104, %c48] : memref<256x72xf32, #tpu.memory_space<vmem>>, vector<256x8xf32>
    tpu.vector_store %arg15[%c0_104, %c48], %81 {strides = array<i32>} : memref<256x72xf32, #tpu.memory_space<vmem>>, vector<256x8xf32>,
    %c2_105 = arith.constant 2 : index
    %c8_106 = arith.constant 8 : index
    %c0_107 = arith.constant 0 : index
    %83 = vector.load %arg14[%c2_105, %c8_106, %c0_107] : memref<18x25x8xf32, #tpu.memory_space<vmem>>, vector<16x16x8xf32>
    %84 = vector.shape_cast %83 : vector<16x16x8xf32> to vector<256x8xf32>
    %c0_108 = arith.constant 0 : index
    %c56 = arith.constant 56 : index
    %85 = vector.load %arg15[%c0_108, %c56] : memref<256x72xf32, #tpu.memory_space<vmem>>, vector<256x8xf32>
    tpu.vector_store %arg15[%c0_108, %c56], %84 {strides = array<i32>} : memref<256x72xf32, #tpu.memory_space<vmem>>, vector<256x8xf32>,
    %c2_109 = arith.constant 2 : index
    %c9_110 = arith.constant 9 : index
    %c0_111 = arith.constant 0 : index
    %86 = vector.load %arg14[%c2_109, %c9_110, %c0_111] : memref<18x25x8xf32, #tpu.memory_space<vmem>>, vector<16x16x8xf32>
    %87 = vector.shape_cast %86 : vector<16x16x8xf32> to vector<256x8xf32>
    %c0_112 = arith.constant 0 : index
    %c64 = arith.constant 64 : index
    %88 = vector.load %arg15[%c0_112, %c64] : memref<256x72xf32, #tpu.memory_space<vmem>>, vector<256x8xf32>
    tpu.vector_store %arg15[%c0_112, %c64], %87 {strides = array<i32>} : memref<256x72xf32, #tpu.memory_space<vmem>>, vector<256x8xf32>,
    %c0_113 = arith.constant 0 : index
    %c0_114 = arith.constant 0 : index
    %89 = vector.load %arg15[%c0_113, %c0_114] : memref<256x72xf32, #tpu.memory_space<vmem>>, vector<256x72xf32>
    %c0_115 = arith.constant 0 : index
    %c0_116 = arith.constant 0 : index
    %90 = vector.load %arg3[%c0_115, %c0_116] : memref<72x8xf32, #tpu.memory_space<vmem>>, vector<72x8xf32>
    %cst_117 = arith.constant dense<0.000000e+00> : vector<256x8xf32>
    %91 = tpu.matmul %89, %90, %cst_117 {dimension_numbers = #tpu.dot_dimension_numbers<[1], [0], [0], [1], [0, 0, 1, 1], [], []>} : vector<256x72xf32>, vector<72x8xf32>, vector<256x8xf32> -> vector<256x8xf32>
    %92 = vector.broadcast %3 : vector<1x8xf32> to vector<256x8xf32>
    %93 = arith.addf %91, %92 : vector<256x8xf32>
    %cst_118 = arith.constant 5.000000e-01 : f32
    %94 = vector.broadcast %cst_118 : f32 to vector<256x8xf32>
    %95 = arith.mulf %94, %93 : vector<256x8xf32>
    %cst_119 = arith.constant 0.707106769 : f32
    %96 = vector.broadcast %cst_119 : f32 to vector<256x8xf32>
    %97 = arith.mulf %93, %96 : vector<256x8xf32>
    %98 = math.erf %97 : vector<256x8xf32>
    %cst_120 = arith.constant 1.000000e+00 : f32
    %99 = vector.broadcast %cst_120 : f32 to vector<256x8xf32>
    %100 = arith.addf %99, %98 : vector<256x8xf32>
    %101 = arith.mulf %95, %100 : vector<256x8xf32>
    %102 = vector.broadcast %4 : vector<1x8xf32> to vector<256x8xf32>
    %103 = arith.mulf %101, %102 : vector<256x8xf32>
    %104 = vector.broadcast %5 : vector<1x8xf32> to vector<256x8xf32>
    %105 = arith.addf %103, %104 : vector<256x8xf32>
    %c0_121 = arith.constant 0 : index
    %c0_122 = arith.constant 0 : index
    %c0_123 = arith.constant 0 : index
    %c0_124 = arith.constant 0 : index
    %106 = vector.load %arg1[%c0_121, %c0_122, %c0_123, %c0_124] : memref<1x16x16x4xf32, #tpu.memory_space<vmem>>, vector<1x16x16x4xf32>
    %107 = vector.shape_cast %106 : vector<1x16x16x4xf32> to vector<16x16x4xf32>
    %108 = vector.shape_cast %107 : vector<16x16x4xf32> to vector<256x4xf32>
    %c0_125 = arith.constant 0 : index
    %c0_126 = arith.constant 0 : index
    %109 = vector.load %arg4[%c0_125, %c0_126] : memref<4x8xf32, #tpu.memory_space<vmem>>, vector<4x8xf32>
    %cst_127 = arith.constant dense<0.000000e+00> : vector<256x8xf32>
    %110 = tpu.matmul %108, %109, %cst_127 {dimension_numbers = #tpu.dot_dimension_numbers<[1], [0], [0], [1], [0, 0, 1, 1], [], []>} : vector<256x4xf32>, vector<4x8xf32>, vector<256x8xf32> -> vector<256x8xf32>
    %111 = vector.broadcast %6 : vector<1x8xf32> to vector<256x8xf32>
    %112 = arith.mulf %110, %111 : vector<256x8xf32>
    %113 = vector.broadcast %7 : vector<1x8xf32> to vector<256x8xf32>
    %114 = arith.addf %112, %113 : vector<256x8xf32>
    %cst_128 = arith.constant dense<0.000000e+00> : vector<8xf32>
    %115 = vector.multi_reduction <add>, %114, %cst_128 [0] : vector<256x8xf32> to vector<8xf32>
    %116 = vector.shape_cast %115 : vector<8xf32> to vector<1x8xf32>
    %cst_129 = arith.constant 2.560000e+02 : f32
    %117 = vector.broadcast %cst_129 : f32 to vector<1x8xf32>
    %118 = arith.divf %116, %117 : vector<1x8xf32>
    %c0_130 = arith.constant 0 : index
    %c0_131 = arith.constant 0 : index
    %119 = vector.load %arg5[%c0_130, %c0_131] : memref<8x16xf32, #tpu.memory_space<vmem>>, vector<8x16xf32>
    %cst_132 = arith.constant dense<0.000000e+00> : vector<1x16xf32>
    %120 = tpu.matmul %118, %119, %cst_132 {dimension_numbers = #tpu.dot_dimension_numbers<[1], [0], [0], [1], [0, 0, 1, 1], [], []>} : vector<1x8xf32>, vector<8x16xf32>, vector<1x16xf32> -> vector<1x16xf32>
    %c0_133 = arith.constant 0 : index
    %c0_134 = arith.constant 0 : index
    %121 = vector.load %arg8[%c0_133, %c0_134] : memref<1x16xf32, #tpu.memory_space<vmem>>, vector<1x16xf32>
    %122 = arith.addf %120, %121 : vector<1x16xf32>
    %123 = arith.negf %122 : vector<1x16xf32>
    %124 = math.exp %123 : vector<1x16xf32>
    %cst_135 = arith.constant 1.000000e+00 : f32
    %125 = vector.broadcast %cst_135 : f32 to vector<1x16xf32>
    %126 = arith.addf %125, %124 : vector<1x16xf32>
    %127 = arith.divf %125, %126 : vector<1x16xf32>
    %128 = arith.mulf %122, %127 : vector<1x16xf32>
    %c0_136 = arith.constant 0 : index
    %c0_137 = arith.constant 0 : index
    %129 = vector.load %arg6[%c0_136, %c0_137] : memref<16x8xf32, #tpu.memory_space<vmem>>, vector<16x8xf32>
    %cst_138 = arith.constant dense<0.000000e+00> : vector<1x8xf32>
    %130 = tpu.matmul %128, %129, %cst_138 {dimension_numbers = #tpu.dot_dimension_numbers<[1], [0], [0], [1], [0, 0, 1, 1], [], []>} : vector<1x16xf32>, vector<16x8xf32>, vector<1x8xf32> -> vector<1x8xf32>
    %131 = arith.addf %130, %8 : vector<1x8xf32>
    %132 = arith.negf %131 : vector<1x8xf32>
    %133 = math.exp %132 : vector<1x8xf32>
    %cst_139 = arith.constant 1.000000e+00 : f32
    %134 = vector.broadcast %cst_139 : f32 to vector<1x8xf32>
    %135 = arith.addf %134, %133 : vector<1x8xf32>
    %136 = arith.divf %134, %135 : vector<1x8xf32>
    %137 = vector.broadcast %136 : vector<1x8xf32> to vector<256x8xf32>
    %138 = arith.mulf %114, %137 : vector<256x8xf32>
    %139 = arith.addf %105, %138 : vector<256x8xf32>
    %cst_140 = arith.constant 0.000000e+00 : f32
    %140 = vector.broadcast %cst_140 : f32 to vector<256x8xf32>
    %141 = arith.maximumf %139, %140 : vector<256x8xf32>
    %c0_141 = arith.constant 0 : index
    %c0_142 = arith.constant 0 : index
    %c0_143 = arith.constant 0 : index
    %142 = vector.load %arg10[%c0_141, %c0_142, %c0_143] : memref<1x256x8xf32, #tpu.memory_space<vmem>>, vector<1x256x8xf32>
    %143 = vector.shape_cast %142 : vector<1x256x8xf32> to vector<256x8xf32>
    %144 = vector.shape_cast %141 : vector<256x8xf32> to vector<1x256x8xf32>
    tpu.vector_store %arg10[%c0_141, %c0_142, %c0_143], %144 {strides = array<i32>} : memref<1x256x8xf32, #tpu.memory_space<vmem>>, vector<1x256x8xf32>,
    %c0_144 = arith.constant 0 : index
    %c0_145 = arith.constant 0 : index
    %145 = vector.load %arg9[%c0_144, %c0_145] : memref<64x256xf32, #tpu.memory_space<vmem>>, vector<64x256xf32>
    %cst_146 = arith.constant dense<0.000000e+00> : vector<64x8xf32>
    %146 = tpu.matmul %145, %141, %cst_146 {dimension_numbers = #tpu.dot_dimension_numbers<[1], [0], [0], [1], [0, 0, 1, 1], [], []>} : vector<64x256xf32>, vector<256x8xf32>, vector<64x8xf32> -> vector<64x8xf32>
    %c0_147 = arith.constant 0 : index
    %c0_148 = arith.constant 0 : index
    %c0_149 = arith.constant 0 : index
    %147 = vector.load %arg11[%c0_147, %c0_148, %c0_149] : memref<1x64x8xf32, #tpu.memory_space<vmem>>, vector<1x64x8xf32>
    %148 = vector.shape_cast %147 : vector<1x64x8xf32> to vector<64x8xf32>
    %149 = vector.shape_cast %146 : vector<64x8xf32> to vector<1x64x8xf32>
    tpu.vector_store %arg11[%c0_147, %c0_148, %c0_149], %149 {strides = array<i32>} : memref<1x64x8xf32, #tpu.memory_space<vmem>>, vector<1x64x8xf32>,
    return
  }
  func.func @transform_0(%arg0: i32) -> (i32, i32, i32, i32) {
    %c0_i32 = arith.constant 0 : i32
    %c0_i32_0 = arith.constant 0 : i32
    %c0_i32_1 = arith.constant 0 : i32
    %c0_i32_2 = arith.constant 0 : i32
    return %arg0, %c0_i32, %c0_i32_0, %c0_i32_1 : i32, i32, i32, i32
  }
  func.func @transform_1(%arg0: i32) -> (i32, i32) {
    %c0_i32 = arith.constant 0 : i32
    %c0_i32_0 = arith.constant 0 : i32
    %c0_i32_1 = arith.constant 0 : i32
    return %c0_i32, %c0_i32_0 : i32, i32
  }
  func.func @transform_2(%arg0: i32) -> (i32, i32) {
    %c0_i32 = arith.constant 0 : i32
    %c0_i32_0 = arith.constant 0 : i32
    %c0_i32_1 = arith.constant 0 : i32
    return %c0_i32, %c0_i32_0 : i32, i32
  }
  func.func @transform_3(%arg0: i32) -> (i32, i32) {
    %c0_i32 = arith.constant 0 : i32
    %c0_i32_0 = arith.constant 0 : i32
    %c0_i32_1 = arith.constant 0 : i32
    return %c0_i32, %c0_i32_0 : i32, i32
  }
  func.func @transform_4(%arg0: i32) -> (i32, i32) {
    %c0_i32 = arith.constant 0 : i32
    %c0_i32_0 = arith.constant 0 : i32
    %c0_i32_1 = arith.constant 0 : i32
    return %c0_i32, %c0_i32_0 : i32, i32
  }
  func.func @transform_5(%arg0: i32) -> (i32, i32) {
    %c0_i32 = arith.constant 0 : i32
    %c0_i32_0 = arith.constant 0 : i32
    %c0_i32_1 = arith.constant 0 : i32
    return %c0_i32, %c0_i32_0 : i32, i32
  }
  func.func @transform_6(%arg0: i32) -> (i32, i32) {
    %c0_i32 = arith.constant 0 : i32
    %c0_i32_0 = arith.constant 0 : i32
    %c0_i32_1 = arith.constant 0 : i32
    return %c0_i32, %c0_i32_0 : i32, i32
  }
  func.func @transform_7(%arg0: i32) -> (i32, i32) {
    %c0_i32 = arith.constant 0 : i32
    %c0_i32_0 = arith.constant 0 : i32
    %c0_i32_1 = arith.constant 0 : i32
    return %c0_i32, %c0_i32_0 : i32, i32
  }
  func.func @transform_8(%arg0: i32) -> (i32, i32) {
    %c0_i32 = arith.constant 0 : i32
    %c0_i32_0 = arith.constant 0 : i32
    %c0_i32_1 = arith.constant 0 : i32
    return %c0_i32, %c0_i32_0 : i32, i32
  }
  func.func @transform_9(%arg0: i32) -> (i32, i32, i32) {
    %c0_i32 = arith.constant 0 : i32
    %c0_i32_0 = arith.constant 0 : i32
    %c0_i32_1 = arith.constant 0 : i32
    return %arg0, %c0_i32, %c0_i32_0 : i32, i32, i32
  }
  func.func @transform_10(%arg0: i32) -> (i32, i32, i32) {
    %c0_i32 = arith.constant 0 : i32
    %c0_i32_0 = arith.constant 0 : i32
    %c0_i32_1 = arith.constant 0 : i32
    return %arg0, %c0_i32, %c0_i32_0 : i32, i32, i32
  }
}

</mosaic_0001>

<llo_original>
// kernel: encoder_block.1
$region0: #{encoder_block.1}
  #allocation0 [shape = 'u32[]', space=smem, size = 0x4, offset = 0x4, fixed_abs, tag = 'smem constant byte address 0x4 - core index']
  #allocation1 [shape = 'u32[144,128]{1,0:T(1,128)}', space=vmem, size = 0x12000, scoped, tag = 'internal scratch']
  #allocation2 [shape = 'f32[18,25,4]{2,1,0:T(8,128)}', space=vmem, size = 0x48000, scoped, tag = 'scratch operand']
  #allocation3 [shape = 'f32[256,36]{1,0:T(8,128)}', space=vmem, size = 0x20000, scoped, tag = 'scratch operand']
  #allocation4 [shape = 'f32[18,25,8]{2,1,0:T(8,128)}', space=vmem, size = 0x48000, scoped, tag = 'scratch operand']
  #allocation5 [shape = 'f32[256,72]{1,0:T(8,128)}', space=vmem, size = 0x20000, scoped, tag = 'scratch operand']
  %s0 = inlined_call_operand.vmem [shape: f32[2,16,16,4], index: 0, kind: input, shape index: {}]
  %s1 = inlined_call_operand.vmem [shape: f32[36,8], index: 1, kind: input, shape index: {}]
  %s2 = inlined_call_operand.vmem [shape: f32[72,8], index: 2, kind: input, shape index: {}]
  %s3 = inlined_call_operand.vmem [shape: f32[4,8], index: 3, kind: input, shape index: {}]
  %s4 = inlined_call_operand.vmem [shape: f32[8,16], index: 4, kind: input, shape index: {}]
  %s5 = inlined_call_operand.vmem [shape: f32[16,8], index: 5, kind: input, shape index: {}]
  %s6 = inlined_call_operand.vmem [shape: f32[9,8], index: 6, kind: input, shape index: {}]
  %s7 = inlined_call_operand.vmem [shape: f32[1,16], index: 7, kind: input, shape index: {}]
  %s8 = inlined_call_operand.vmem [shape: f32[64,256], index: 8, kind: input, shape index: {}]
  %s9 = inlined_call_operand.vmem [shape: f32[2,256,8], index: 9, kind: output, shape index: {0}]
  %s10 = inlined_call_operand.vmem [shape: f32[2,64,8], index: 10, kind: output, shape index: {1}]
  %11 = xla_tuple %s9, %s10
  %s12 = sld [smem:[#allocation0]]
  $region77: #{encoder_block.1} parent=0
    _
  %s14 = ssub.s32 1, %s12
  %s15 = scalar_select 0, %s14, %s12
  loop: start=0, step=1, limit=4
  $region2: #{encoder_block.1} parent=0 // loop_pre_header
    _
  $region3: #{encoder_block.1} parent=0 // loop_header
    %s17 = sphi 0, %s21
    %p18 = scmp.ge.s32.totalorder %s17, 4
    %s27 = sphi 0, %s29
    %s30 = sphi 0, %s27
    %s31 = sphi 0, %s30
    %s47 = sphi 0, %s31
    %s51 = sphi 0, %s51
    %s53 = sphi 0, %s51
    %s54 = sphi 0, %s53
    %s68 = sphi 0, %s54
    %s72 = sphi 0, %s72
    %s74 = sphi 0, %s72
    %s75 = sphi 0, %s74
    %s89 = sphi 0, %s75
    %s93 = sphi 0, %s93
    %s95 = sphi 0, %s93
    %s96 = sphi 0, %s95
    %s110 = sphi 0, %s96
    %s114 = sphi 0, %s114
    %s116 = sphi 0, %s114
    %s117 = sphi 0, %s116
    %s131 = sphi 0, %s117
    %s135 = sphi 0, %s135
    %s137 = sphi 0, %s135
    %s138 = sphi 0, %s137
    %s152 = sphi 0, %s138
    %s156 = sphi 0, %s156
    %s158 = sphi 0, %s156
    %s159 = sphi 0, %s158
    %s173 = sphi 0, %s159
    %s177 = sphi 0, %s177
    %s179 = sphi 0, %s177
    %s180 = sphi 0, %s179
    %s194 = sphi 0, %s180
    %s198 = sphi 0, %s198
    %s200 = sphi 0, %s198
    %s201 = sphi 0, %s200
    %s215 = sphi 0, %s201
    %s221 = sphi 0, %s223
    %s224 = sphi 0, %s221
    %s225 = sphi 0, %s224
    %s241 = sphi 0, %s225
    %s247 = sphi 0, %s249
    %s250 = sphi 0, %s247
    %s251 = sphi 0, %s250
    %s267 = sphi 0, %s251
  $region4: #{encoder_block.1} parent=0 // loop_header_branch
    %20 = sbr.rel (%p18) target = $region8
  $region5: #{encoder_block.1} parent=0 // loop_body
    %s22 = ssub.s32 %s17, 1
    %s23 = ssub.s32 %s17, 2
    %s24 = sadd.s32 %s17, 1
    %s25 = ssub.s32 %s17, %s24
    %p26 = scmp.eq.s32.totalorder %s25, 0
    %s28 = sadd.s32 %s27, 1
    %s29 = scalar_select %p26, %s27, %s28
    %p32 = pneg %p26
    %p33 = scmp.eq.s32.totalorder %s17, 1
    %p34 = por %p32, %p33
    %p35 = scmp.ne.s32.totalorder %s27, %s30
    %p36 = scmp.eq.s32.totalorder %s17, 0
    %p37 = por %p35, %p36
    %p38 = scmp.ne.s32.totalorder %s27, %s30
    %p39 = scmp.eq.s32.totalorder %s22, 1
    %p40 = por %p38, %p39
    %p41 = scmp.ne.s32.totalorder %s30, %s31
    %p42 = scmp.eq.s32.totalorder %s22, 0
    %p43 = por %p41, %p42
    %p44 = scmp.ne.s32.totalorder %s30, %s31
    %p45 = scmp.eq.s32.totalorder %s23, 1
    %p46 = por %p44, %p45
    %p48 = scmp.ne.s32.totalorder %s31, %s47
    %p49 = scmp.eq.s32.totalorder %s23, 0
    %p50 = por %p48, %p49
    %s52 = sadd.s32 %s51, 1
    %p55 = scmp.eq.s32.totalorder %s17, 1
    %p56 = scmp.ne.s32.totalorder %s51, %s53
    %p57 = scmp.eq.s32.totalorder %s17, 0
    %p58 = por %p56, %p57
    %p59 = scmp.ne.s32.totalorder %s51, %s53
    %p60 = scmp.eq.s32.totalorder %s22, 1
    %p61 = por %p59, %p60
    %p62 = scmp.ne.s32.totalorder %s53, %s54
    %p63 = scmp.eq.s32.totalorder %s22, 0
    %p64 = por %p62, %p63
    %p65 = scmp.ne.s32.totalorder %s53, %s54
    %p66 = scmp.eq.s32.totalorder %s23, 1
    %p67 = por %p65, %p66
    %p69 = scmp.ne.s32.totalorder %s54, %s68
    %p70 = scmp.eq.s32.totalorder %s23, 0
    %p71 = por %p69, %p70
    %s73 = sadd.s32 %s72, 1
    %p76 = scmp.eq.s32.totalorder %s17, 1
    %p77 = scmp.ne.s32.totalorder %s72, %s74
    %p78 = scmp.eq.s32.totalorder %s17, 0
    %p79 = por %p77, %p78
    %p80 = scmp.ne.s32.totalorder %s72, %s74
    %p81 = scmp.eq.s32.totalorder %s22, 1
    %p82 = por %p80, %p81
    %p83 = scmp.ne.s32.totalorder %s74, %s75
    %p84 = scmp.eq.s32.totalorder %s22, 0
    %p85 = por %p83, %p84
    %p86 = scmp.ne.s32.totalorder %s74, %s75
    %p87 = scmp.eq.s32.totalorder %s23, 1
    %p88 = por %p86, %p87
    %p90 = scmp.ne.s32.totalorder %s75, %s89
    %p91 = scmp.eq.s32.totalorder %s23, 0
    %p92 = por %p90, %p91
    %s94 = sadd.s32 %s93, 1
    %p97 = scmp.eq.s32.totalorder %s17, 1
    %p98 = scmp.ne.s32.totalorder %s93, %s95
    %p99 = scmp.eq.s32.totalorder %s17, 0
    %p100 = por %p98, %p99
    %p101 = scmp.ne.s32.totalorder %s93, %s95
    %p102 = scmp.eq.s32.totalorder %s22, 1
    %p103 = por %p101, %p102
    %p104 = scmp.ne.s32.totalorder %s95, %s96
    %p105 = scmp.eq.s32.totalorder %s22, 0
    %p106 = por %p104, %p105
    %p107 = scmp.ne.s32.totalorder %s95, %s96
    %p108 = scmp.eq.s32.totalorder %s23, 1
    %p109 = por %p107, %p108
    %p111 = scmp.ne.s32.totalorder %s96, %s110
    %p112 = scmp.eq.s32.totalorder %s23, 0
    %p113 = por %p111, %p112
    %s115 = sadd.s32 %s114, 1
    %p118 = scmp.eq.s32.totalorder %s17, 1
    %p119 = scmp.ne.s32.totalorder %s114, %s116
    %p120 = scmp.eq.s32.totalorder %s17, 0
    %p121 = por %p119, %p120
    %p122 = scmp.ne.s32.totalorder %s114, %s116
    %p123 = scmp.eq.s32.totalorder %s22, 1
    %p124 = por %p122, %p123
    %p125 = scmp.ne.s32.totalorder %s116, %s117
    %p126 = scmp.eq.s32.totalorder %s22, 0
    %p127 = por %p125, %p126
    %p128 = scmp.ne.s32.totalorder %s116, %s117
    %p129 = scmp.eq.s32.totalorder %s23, 1
    %p130 = por %p128, %p129
    %p132 = scmp.ne.s32.totalorder %s117, %s131
    %p133 = scmp.eq.s32.totalorder %s23, 0
    %p134 = por %p132, %p133
    %s136 = sadd.s32 %s135, 1
    %p139 = scmp.eq.s32.totalorder %s17, 1
    %p140 = scmp.ne.s32.totalorder %s135, %s137
    %p141 = scmp.eq.s32.totalorder %s17, 0
    %p142 = por %p140, %p141
    %p143 = scmp.ne.s32.totalorder %s135, %s137
    %p144 = scmp.eq.s32.totalorder %s22, 1
    %p145 = por %p143, %p144
    %p146 = scmp.ne.s32.totalorder %s137, %s138
    %p147 = scmp.eq.s32.totalorder %s22, 0
    %p148 = por %p146, %p147
    %p149 = scmp.ne.s32.totalorder %s137, %s138
    %p150 = scmp.eq.s32.totalorder %s23, 1
    %p151 = por %p149, %p150
    %p153 = scmp.ne.s32.totalorder %s138, %s152
    %p154 = scmp.eq.s32.totalorder %s23, 0
    %p155 = por %p153, %p154
    %s157 = sadd.s32 %s156, 1
    %p160 = scmp.eq.s32.totalorder %s17, 1
    %p161 = scmp.ne.s32.totalorder %s156, %s158
    %p162 = scmp.eq.s32.totalorder %s17, 0
    %p163 = por %p161, %p162
    %p164 = scmp.ne.s32.totalorder %s156, %s158
    %p165 = scmp.eq.s32.totalorder %s22, 1
    %p166 = por %p164, %p165
    %p167 = scmp.ne.s32.totalorder %s158, %s159
    %p168 = scmp.eq.s32.totalorder %s22, 0
    %p169 = por %p167, %p168
    %p170 = scmp.ne.s32.totalorder %s158, %s159
    %p171 = scmp.eq.s32.totalorder %s23, 1
    %p172 = por %p170, %p171
    %p174 = scmp.ne.s32.totalorder %s159, %s173
    %p175 = scmp.eq.s32.totalorder %s23, 0
    %p176 = por %p174, %p175
    %s178 = sadd.s32 %s177, 1
    %p181 = scmp.eq.s32.totalorder %s17, 1
    %p182 = scmp.ne.s32.totalorder %s177, %s179
    %p183 = scmp.eq.s32.totalorder %s17, 0
    %p184 = por %p182, %p183
    %p185 = scmp.ne.s32.totalorder %s177, %s179
    %p186 = scmp.eq.s32.totalorder %s22, 1
    %p187 = por %p185, %p186
    %p188 = scmp.ne.s32.totalorder %s179, %s180
    %p189 = scmp.eq.s32.totalorder %s22, 0
    %p190 = por %p188, %p189
    %p191 = scmp.ne.s32.totalorder %s179, %s180
    %p192 = scmp.eq.s32.totalorder %s23, 1
    %p193 = por %p191, %p192
    %p195 = scmp.ne.s32.totalorder %s180, %s194
    %p196 = scmp.eq.s32.totalorder %s23, 0
    %p197 = por %p195, %p196
    %s199 = sadd.s32 %s198, 1
    %p202 = scmp.eq.s32.totalorder %s17, 1
    %p203 = scmp.ne.s32.totalorder %s198, %s200
    %p204 = scmp.eq.s32.totalorder %s17, 0
    %p205 = por %p203, %p204
    %p206 = scmp.ne.s32.totalorder %s198, %s200
    %p207 = scmp.eq.s32.totalorder %s22, 1
    %p208 = por %p206, %p207
    %p209 = scmp.ne.s32.totalorder %s200, %s201
    %p210 = scmp.eq.s32.totalorder %s22, 0
    %p211 = por %p209, %p210
    %p212 = scmp.ne.s32.totalorder %s200, %s201
    %p213 = scmp.eq.s32.totalorder %s23, 1
    %p214 = por %p212, %p213
    %p216 = scmp.ne.s32.totalorder %s201, %s215
    %p217 = scmp.eq.s32.totalorder %s23, 0
    %p218 = por %p216, %p217
    %s219 = ssub.s32 %s17, %s24
    %p220 = scmp.eq.s32.totalorder %s219, 0
    %s222 = sadd.s32 %s221, 1
    %s223 = scalar_select %p220, %s221, %s222
    %p226 = pneg %p220
    %p227 = scmp.eq.s32.totalorder %s17, 1
    %p228 = por %p226, %p227
    %p229 = scmp.ne.s32.totalorder %s221, %s224
    %p230 = scmp.eq.s32.totalorder %s17, 0
    %p231 = por %p229, %p230
    %p232 = scmp.ne.s32.totalorder %s221, %s224
    %p233 = scmp.eq.s32.totalorder %s22, 1
    %p234 = por %p232, %p233
    %p235 = scmp.ne.s32.totalorder %s224, %s225
    %p236 = scmp.eq.s32.totalorder %s22, 0
    %p237 = por %p235, %p236
    %p238 = scmp.ne.s32.totalorder %s224, %s225
    %p239 = scmp.eq.s32.totalorder %s23, 1
    %p240 = por %p238, %p239
    %p242 = scmp.ne.s32.totalorder %s225, %s241
    %p243 = scmp.eq.s32.totalorder %s23, 0
    %p244 = por %p242, %p243
    %s245 = ssub.s32 %s17, %s24
    %p246 = scmp.eq.s32.totalorder %s245, 0
    %s248 = sadd.s32 %s247, 1
    %s249 = scalar_select %p246, %s247, %s248
    %p252 = pneg %p246
    %p253 = scmp.eq.s32.totalorder %s17, 1
    %p254 = por %p252, %p253
    %p255 = scmp.ne.s32.totalorder %s247, %s250
    %p256 = scmp.eq.s32.totalorder %s17, 0
    %p257 = por %p255, %p256
    %p258 = scmp.ne.s32.totalorder %s247, %s250
    %p259 = scmp.eq.s32.totalorder %s22, 1
    %p260 = por %p258, %p259
    %p261 = scmp.ne.s32.totalorder %s250, %s251
    %p262 = scmp.eq.s32.totalorder %s22, 0
    %p263 = por %p261, %p262
    %p264 = scmp.ne.s32.totalorder %s250, %s251
    %p265 = scmp.eq.s32.totalorder %s23, 1
    %p266 = por %p264, %p265
    %p268 = scmp.ne.s32.totalorder %s251, %s267
    %p269 = scmp.eq.s32.totalorder %s23, 0
    %p270 = por %p268, %p269
    %p271 = scmp.le.s32.totalorder 1, %s17
    %p272 = scmp.lt.s32.totalorder %s17, 3
    %p273 = pnand %p271, %p272
    %p274 = pneg %p273
    // Predicated region
    $region9: #{encoder_block.1} parent=5 // pred_check
      _
    $region10: #{encoder_block.1} parent=5 // pred_check_branch
      %276 = sbr.rel (%p273) target = $region12
    $region11: #{encoder_block.1} parent=5 // pred_region
      %s277 = ssub.s32 %s17, 1
      // Predicated region
      $region13: #{encoder_block.1} parent=11 // pred_check
        %p278 = pneg %p64
      $region14: #{encoder_block.1} parent=11 // pred_check_branch
        %280 = sbr.rel (%p278) target = $region16
      $region15: #{encoder_block.1} parent=11 // pred_region
        _
      $region16: #{encoder_block.1} parent=11 // pred_fallthru
        _
      // Predicated region
      $region17: #{encoder_block.1} parent=11 // pred_check
        %p281 = pneg %p85
      $region18: #{encoder_block.1} parent=11 // pred_check_branch
        %283 = sbr.rel (%p281) target = $region20
      $region19: #{encoder_block.1} parent=11 // pred_region
        _
      $region20: #{encoder_block.1} parent=11 // pred_fallthru
        _
      // Predicated region
      $region21: #{encoder_block.1} parent=11 // pred_check
        %p284 = pneg %p106
      $region22: #{encoder_block.1} parent=11 // pred_check_branch
        %286 = sbr.rel (%p284) target = $region24
      $region23: #{encoder_block.1} parent=11 // pred_region
        _
      $region24: #{encoder_block.1} parent=11 // pred_fallthru
        _
      // Predicated region
      $region25: #{encoder_block.1} parent=11 // pred_check
        %p287 = pneg %p127
      $region26: #{encoder_block.1} parent=11 // pred_check_branch
        %289 = sbr.rel (%p287) target = $region28
      $region27: #{encoder_block.1} parent=11 // pred_region
        _
      $region28: #{encoder_block.1} parent=11 // pred_fallthru
        _
      // Predicated region
      $region29: #{encoder_block.1} parent=11 // pred_check
        %p290 = pneg %p148
      $region30: #{encoder_block.1} parent=11 // pred_check_branch
        %292 = sbr.rel (%p290) target = $region32
      $region31: #{encoder_block.1} parent=11 // pred_region
        _
      $region32: #{encoder_block.1} parent=11 // pred_fallthru
        _
      // Predicated region
      $region33: #{encoder_block.1} parent=11 // pred_check
        %p293 = pneg %p169
      $region34: #{encoder_block.1} parent=11 // pred_check_branch
        %295 = sbr.rel (%p293) target = $region36
      $region35: #{encoder_block.1} parent=11 // pred_region
        _
      $region36: #{encoder_block.1} parent=11 // pred_fallthru
        _
      // Predicated region
      $region37: #{encoder_block.1} parent=11 // pred_check
        %p296 = pneg %p190
      $region38: #{encoder_block.1} parent=11 // pred_check_branch
        %298 = sbr.rel (%p296) target = $region40
      $region39: #{encoder_block.1} parent=11 // pred_region
        _
      $region40: #{encoder_block.1} parent=11 // pred_fallthru
        _
      // Predicated region
      $region41: #{encoder_block.1} parent=11 // pred_check
        %p299 = pneg %p211
      $region42: #{encoder_block.1} parent=11 // pred_check_branch
        %301 = sbr.rel (%p299) target = $region44
      $region43: #{encoder_block.1} parent=11 // pred_region
        _
      $region44: #{encoder_block.1} parent=11 // pred_fallthru
        _
    $region12: #{encoder_block.1} parent=5 // pred_fallthru
      _
    %p302 = scmp.lt.s32.totalorder %s17, 2
    // Predicated region
    $region45: #{encoder_block.1} parent=5 // pred_check
      %p303 = pneg %p302
    $region46: #{encoder_block.1} parent=5 // pred_check_branch
      %305 = sbr.rel (%p303) target = $region48
    $region47: #{encoder_block.1} parent=5 // pred_region
      // Predicated region
      $region49: #{encoder_block.1} parent=47 // pred_check
        %p306 = pneg %p37
      $region50: #{encoder_block.1} parent=47 // pred_check_branch
        %308 = sbr.rel (%p306) target = $region52
      $region51: #{encoder_block.1} parent=47 // pred_region
        %p309 = scmp.lt.s32.totalorder %s17, 1
        %s310 = scalar_select %p309, %s17, 1
        %s311 = smul.addr %s310, 32
        %s312 = smul.addr %s311, 8
        %s313 = scalar_lea.vmem %s0, %s312
      $region52: #{encoder_block.1} parent=47 // pred_fallthru
        _
    $region48: #{encoder_block.1} parent=5 // pred_fallthru
      _
    %p314 = scmp.le.s32.totalorder 1, %s17
    %p315 = scmp.lt.s32.totalorder %s17, 3
    %p316 = pnand %p314, %p315
    %p317 = pneg %p316
    // Predicated region
    $region53: #{encoder_block.1} parent=5 // pred_check
      _
    $region54: #{encoder_block.1} parent=5 // pred_check_branch
      %319 = sbr.rel (%p316) target = $region56
    $region55: #{encoder_block.1} parent=5 // pred_region
      %s320 = ssub.s32 %s17, 1
      %p321 = scmp.lt.s32.totalorder %s22, 1
      %s322 = scalar_select %p321, %s22, 1
      %s323 = smul.addr %s322, 32
      %s324 = smul.addr %s323, 8
      %s325 = scalar_lea.vmem %s0, %s324
      %p326 = pneg %p43
      %p327 = pneg %p40
      %p328 = pneg %p64
      %p329 = pneg %p61
      %p330 = pneg %p85
      %p331 = pneg %p82
      %p332 = pneg %p106
      %p333 = pneg %p103
      %p334 = pneg %p127
      %p335 = pneg %p124
      %p336 = pneg %p148
      %p337 = pneg %p145
      %p338 = pneg %p169
      %p339 = pneg %p166
      %p340 = pneg %p190
      %p341 = pneg %p187
      %p342 = pneg %p211
      %p343 = pneg %p208
      %p344 = pneg %p237
      %p345 = pneg %p234
      %p346 = scmp.lt.s32.totalorder %s22, 1
      %s347 = scalar_select %p346, %s22, 1
      %s348 = smul.addr %s347, 32
      %s349 = smul.addr %s348, 8
      %s350 = scalar_lea.vmem %s9, %s349
      %p351 = pneg %p263
      %p352 = pneg %p260
      %p353 = scmp.lt.s32.totalorder %s22, 1
      %s354 = scalar_select %p353, %s22, 1
      %s355 = smul.addr %s354, 8
      %s356 = smul.addr %s355, 8
      %s357 = scalar_lea.vmem %s10, %s356
      %p358 = scmp.lt.s32.totalorder %s22, 1
      %s359 = scalar_select %p358, %s22, 1
      %s360 = smul.addr %s359, 32
      %s361 = smul.addr %s360, 8
      %s362 = scalar_lea.vmem %s0, %s361
      %p363 = scmp.lt.s32.totalorder %s22, 1
      %s364 = scalar_select %p363, %s22, 1
      %s365 = smul.addr %s364, 32
      %s366 = smul.addr %s365, 8
      %s367 = scalar_lea.vmem %s9, %s366
      %p368 = scmp.lt.s32.totalorder %s22, 1
      %s369 = scalar_select %p368, %s22, 1
      %s370 = smul.addr %s369, 8
      %s371 = smul.addr %s370, 8
      %s372 = scalar_lea.vmem %s10, %s371
      %v373 = vld [vmem:[%s6] sm:$0x1]
      %v374 = vld [vmem:[%s6 + $0x1] sm:$0x1]
      %v375 = vld [vmem:[%s6 + $0x2] sm:$0x1]
      %v376 = vld [vmem:[%s6 + $0x3] sm:$0x1]
      %v377 = vld [vmem:[%s6 + $0x4] sm:$0x1]
      %v378 = vld [vmem:[%s6 + $0x5] sm:$0x1]
      %v379 = vld [vmem:[%s6 + $0x6] sm:$0x1]
      %v380 = vld [vmem:[%s6 + $0x7] sm:$0x1]
      %v381 = vld [vmem:[%s6 + $0x8] sm:$0x1]
      %vm382 = vcmask 31744
      %383 = vst.msk [vmem:[#allocation2] sm:$0xff] %vm382, 0.0
      %384 = vst.msk [vmem:[#allocation2 + $0x8] sm:$0xff] %vm382, 0.0
      %385 = vst.msk [vmem:[#allocation2 + $0x10] sm:$0xff] %vm382, 0.0
      %vm386 = vcmask 24576
      %387 = vst.msk [vmem:[#allocation2 + $0x18] sm:$0x1] %vm386, 0.0
      %388 = vst.msk [vmem:[#allocation2 + $0x20] sm:$0xff] %vm382, 0.0
      %389 = vst.msk [vmem:[#allocation2 + $0x28] sm:$0xff] %vm382, 0.0
      %390 = vst.msk [vmem:[#allocation2 + $0x30] sm:$0xff] %vm382, 0.0
      %391 = vst.msk [vmem:[#allocation2 + $0x38] sm:$0x1] %vm386, 0.0
      %392 = vst.msk [vmem:[#allocation2 + $0x40] sm:$0xff] %vm382, 0.0
      %393 = vst.msk [vmem:[#allocation2 + $0x48] sm:$0xff] %vm382, 0.0
      %394 = vst.msk [vmem:[#allocation2 + $0x50] sm:$0xff] %vm382, 0.0
      %395 = vst.msk [vmem:[#allocation2 + $0x58] sm:$0x1] %vm386, 0.0
      %396 = vst.msk [vmem:[#allocation2 + $0x60] sm:$0xff] %vm382, 0.0
      %397 = vst.msk [vmem:[#allocation2 + $0x68] sm:$0xff] %vm382, 0.0
      %398 = vst.msk [vmem:[#allocation2 + $0x70] sm:$0xff] %vm382, 0.0
      %399 = vst.msk [vmem:[#allocation2 + $0x78] sm:$0x1] %vm386, 0.0
      %400 = vst.msk [vmem:[#allocation2 + $0x80] sm:$0xff] %vm382, 0.0
      %401 = vst.msk [vmem:[#allocation2 + $0x88] sm:$0xff] %vm382, 0.0
      %402 = vst.msk [vmem:[#allocation2 + $0x90] sm:$0xff] %vm382, 0.0
      %403 = vst.msk [vmem:[#allocation2 + $0x98] sm:$0x1] %vm386, 0.0
      %404 = vst.msk [vmem:[#allocation2 + $0xa0] sm:$0xff] %vm382, 0.0
      %405 = vst.msk [vmem:[#allocation2 + $0xa8] sm:$0xff] %vm382, 0.0
      %406 = vst.msk [vmem:[#allocation2 + $0xb0] sm:$0xff] %vm382, 0.0
      %407 = vst.msk [vmem:[#allocation2 + $0xb8] sm:$0x1] %vm386, 0.0
      %408 = vst.msk [vmem:[#allocation2 + $0xc0] sm:$0xff] %vm382, 0.0
      %409 = vst.msk [vmem:[#allocation2 + $0xc8] sm:$0xff] %vm382, 0.0
      %410 = vst.msk [vmem:[#allocation2 + $0xd0] sm:$0xff] %vm382, 0.0
      %411 = vst.msk [vmem:[#allocation2 + $0xd8] sm:$0x1] %vm386, 0.0
      %412 = vst.msk [vmem:[#allocation2 + $0xe0] sm:$0xff] %vm382, 0.0
      %413 = vst.msk [vmem:[#allocation2 + $0xe8] sm:$0xff] %vm382, 0.0
      %414 = vst.msk [vmem:[#allocation2 + $0xf0] sm:$0xff] %vm382, 0.0
      %415 = vst.msk [vmem:[#allocation2 + $0xf8] sm:$0x1] %vm386, 0.0
      %416 = vst.msk [vmem:[#allocation2 + $0x100] sm:$0xff] %vm382, 0.0
      %417 = vst.msk [vmem:[#allocation2 + $0x108] sm:$0xff] %vm382, 0.0
      %418 = vst.msk [vmem:[#allocation2 + $0x110] sm:$0xff] %vm382, 0.0
      %419 = vst.msk [vmem:[#allocation2 + $0x118] sm:$0x1] %vm386, 0.0
      %420 = vst.msk [vmem:[#allocation2 + $0x120] sm:$0xff] %vm382, 0.0
      %421 = vst.msk [vmem:[#allocation2 + $0x128] sm:$0xff] %vm382, 0.0
      %422 = vst.msk [vmem:[#allocation2 + $0x130] sm:$0xff] %vm382, 0.0
      %423 = vst.msk [vmem:[#allocation2 + $0x138] sm:$0x1] %vm386, 0.0
      %424 = vst.msk [vmem:[#allocation2 + $0x140] sm:$0xff] %vm382, 0.0
      %425 = vst.msk [vmem:[#allocation2 + $0x148] sm:$0xff] %vm382, 0.0
      %426 = vst.msk [vmem:[#allocation2 + $0x150] sm:$0xff] %vm382, 0.0
      %427 = vst.msk [vmem:[#allocation2 + $0x158] sm:$0x1] %vm386, 0.0
      %428 = vst.msk [vmem:[#allocation2 + $0x160] sm:$0xff] %vm382, 0.0
      %429 = vst.msk [vmem:[#allocation2 + $0x168] sm:$0xff] %vm382, 0.0
      %430 = vst.msk [vmem:[#allocation2 + $0x170] sm:$0xff] %vm382, 0.0
      %431 = vst.msk [vmem:[#allocation2 + $0x178] sm:$0x1] %vm386, 0.0
      %432 = vst.msk [vmem:[#allocation2 + $0x180] sm:$0xff] %vm382, 0.0
      %433 = vst.msk [vmem:[#allocation2 + $0x188] sm:$0xff] %vm382, 0.0
      %434 = vst.msk [vmem:[#allocation2 + $0x190] sm:$0xff] %vm382, 0.0
      %435 = vst.msk [vmem:[#allocation2 + $0x198] sm:$0x1] %vm386, 0.0
      %436 = vst.msk [vmem:[#allocation2 + $0x1a0] sm:$0xff] %vm382, 0.0
      %437 = vst.msk [vmem:[#allocation2 + $0x1a8] sm:$0xff] %vm382, 0.0
      %438 = vst.msk [vmem:[#allocation2 + $0x1b0] sm:$0xff] %vm382, 0.0
      %439 = vst.msk [vmem:[#allocation2 + $0x1b8] sm:$0x1] %vm386, 0.0
      %440 = vst.msk [vmem:[#allocation2 + $0x1c0] sm:$0xff] %vm382, 0.0
      %441 = vst.msk [vmem:[#allocation2 + $0x1c8] sm:$0xff] %vm382, 0.0
      %442 = vst.msk [vmem:[#allocation2 + $0x1d0] sm:$0xff] %vm382, 0.0
      %443 = vst.msk [vmem:[#allocation2 + $0x1d8] sm:$0x1] %vm386, 0.0
      %444 = vst.msk [vmem:[#allocation2 + $0x1e0] sm:$0xff] %vm382, 0.0
      %445 = vst.msk [vmem:[#allocation2 + $0x1e8] sm:$0xff] %vm382, 0.0
      %446 = vst.msk [vmem:[#allocation2 + $0x1f0] sm:$0xff] %vm382, 0.0
      %447 = vst.msk [vmem:[#allocation2 + $0x1f8] sm:$0x1] %vm386, 0.0
      %448 = vst.msk [vmem:[#allocation2 + $0x200] sm:$0xff] %vm382, 0.0
      %449 = vst.msk [vmem:[#allocation2 + $0x208] sm:$0xff] %vm382, 0.0
      %450 = vst.msk [vmem:[#allocation2 + $0x210] sm:$0xff] %vm382, 0.0
      %451 = vst.msk [vmem:[#allocation2 + $0x218] sm:$0x1] %vm386, 0.0
      %452 = vst.msk [vmem:[#allocation2 + $0x220] sm:$0xff] %vm382, 0.0
      %453 = vst.msk [vmem:[#allocation2 + $0x228] sm:$0xff] %vm382, 0.0
      %454 = vst.msk [vmem:[#allocation2 + $0x230] sm:$0xff] %vm382, 0.0
      %455 = vst.msk [vmem:[#allocation2 + $0x238] sm:$0x1] %vm386, 0.0
      %v456 = vld [vmem:[%s362] sm:$0xff]
      %v457 = vld [vmem:[%s362 + $0x8] sm:$0xff]
      %v458 = vld [vmem:[%s362 + $0x10] sm:$0xff]
      %v459 = vld [vmem:[%s362 + $0x18] sm:$0xff]
      %v460 = vld [vmem:[%s362 + $0x20] sm:$0xff]
      %v461 = vld [vmem:[%s362 + $0x28] sm:$0xff]
      %v462 = vld [vmem:[%s362 + $0x30] sm:$0xff]
      %v463 = vld [vmem:[%s362 + $0x38] sm:$0xff]
      %v464 = vld [vmem:[%s362 + $0x40] sm:$0xff]
      %v465 = vld [vmem:[%s362 + $0x48] sm:$0xff]
      %v466 = vld [vmem:[%s362 + $0x50] sm:$0xff]
      %v467 = vld [vmem:[%s362 + $0x58] sm:$0xff]
      %v468 = vld [vmem:[%s362 + $0x60] sm:$0xff]
      %v469 = vld [vmem:[%s362 + $0x68] sm:$0xff]
      %v470 = vld [vmem:[%s362 + $0x70] sm:$0xff]
      %v471 = vld [vmem:[%s362 + $0x78] sm:$0xff]
      %v472 = vld [vmem:[%s362 + $0x80] sm:$0xff]
      %v473 = vld [vmem:[%s362 + $0x88] sm:$0xff]
      %v474 = vld [vmem:[%s362 + $0x90] sm:$0xff]
      %v475 = vld [vmem:[%s362 + $0x98] sm:$0xff]
      %v476 = vld [vmem:[%s362 + $0xa0] sm:$0xff]
      %v477 = vld [vmem:[%s362 + $0xa8] sm:$0xff]
      %v478 = vld [vmem:[%s362 + $0xb0] sm:$0xff]
      %v479 = vld [vmem:[%s362 + $0xb8] sm:$0xff]
      %v480 = vld [vmem:[%s362 + $0xc0] sm:$0xff]
      %v481 = vld [vmem:[%s362 + $0xc8] sm:$0xff]
      %v482 = vld [vmem:[%s362 + $0xd0] sm:$0xff]
      %v483 = vld [vmem:[%s362 + $0xd8] sm:$0xff]
      %v484 = vld [vmem:[%s362 + $0xe0] sm:$0xff]
      %v485 = vld [vmem:[%s362 + $0xe8] sm:$0xff]
      %v486 = vld [vmem:[%s362 + $0xf0] sm:$0xff]
      %v487 = vld [vmem:[%s362 + $0xf8] sm:$0xff]
      %s488 = scalar_lea.vmem [#allocation2], 32
      %489 = vst.msk [vmem:[%s488 + $0x8] sm:$0xff] %vm382, %v456
      %490 = vst.msk [vmem:[%s488 + $0x10] sm:$0xff] %vm382, %v457
      %491 = vst.msk [vmem:[%s488 + $0x28] sm:$0xff] %vm382, %v458
      %492 = vst.msk [vmem:[%s488 + $0x30] sm:$0xff] %vm382, %v459
      %493 = vst.msk [vmem:[%s488 + $0x48] sm:$0xff] %vm382, %v460
      %494 = vst.msk [vmem:[%s488 + $0x50] sm:$0xff] %vm382, %v461
      %495 = vst.msk [vmem:[%s488 + $0x68] sm:$0xff] %vm382, %v462
      %496 = vst.msk [vmem:[%s488 + $0x70] sm:$0xff] %vm382, %v463
      %497 = vst.msk [vmem:[%s488 + $0x88] sm:$0xff] %vm382, %v464
      %498 = vst.msk [vmem:[%s488 + $0x90] sm:$0xff] %vm382, %v465
      %499 = vst.msk [vmem:[%s488 + $0xa8] sm:$0xff] %vm382, %v466
      %500 = vst.msk [vmem:[%s488 + $0xb0] sm:$0xff] %vm382, %v467
      %501 = vst.msk [vmem:[%s488 + $0xc8] sm:$0xff] %vm382, %v468
      %502 = vst.msk [vmem:[%s488 + $0xd0] sm:$0xff] %vm382, %v469
      %503 = vst.msk [vmem:[%s488 + $0xe8] sm:$0xff] %vm382, %v470
      %504 = vst.msk [vmem:[%s488 + $0xf0] sm:$0xff] %vm382, %v471
      %505 = vst.msk [vmem:[%s488 + $0x108] sm:$0xff] %vm382, %v472
      %506 = vst.msk [vmem:[%s488 + $0x110] sm:$0xff] %vm382, %v473
      %507 = vst.msk [vmem:[%s488 + $0x128] sm:$0xff] %vm382, %v474
      %508 = vst.msk [vmem:[%s488 + $0x130] sm:$0xff] %vm382, %v475
      %509 = vst.msk [vmem:[%s488 + $0x148] sm:$0xff] %vm382, %v476
      %510 = vst.msk [vmem:[%s488 + $0x150] sm:$0xff] %vm382, %v477
      %511 = vst.msk [vmem:[%s488 + $0x168] sm:$0xff] %vm382, %v478
      %512 = vst.msk [vmem:[%s488 + $0x170] sm:$0xff] %vm382, %v479
      %513 = vst.msk [vmem:[%s488 + $0x188] sm:$0xff] %vm382, %v480
      %514 = vst.msk [vmem:[%s488 + $0x190] sm:$0xff] %vm382, %v481
      %515 = vst.msk [vmem:[%s488 + $0x1a8] sm:$0xff] %vm382, %v482
      %516 = vst.msk [vmem:[%s488 + $0x1b0] sm:$0xff] %vm382, %v483
      %517 = vst.msk [vmem:[%s488 + $0x1c8] sm:$0xff] %vm382, %v484
      %518 = vst.msk [vmem:[%s488 + $0x1d0] sm:$0xff] %vm382, %v485
      %519 = vst.msk [vmem:[%s488 + $0x1e8] sm:$0xff] %vm382, %v486
      %520 = vst.msk [vmem:[%s488 + $0x1f0] sm:$0xff] %vm382, %v487
      %v521 = vld [vmem:[#allocation2 + $0x7] sm:$0xff]
      %v522 = vld [vmem:[#allocation2 + $0xf] sm:$0xff]
      %v523 = vld [vmem:[#allocation2 + $0x27] sm:$0xff]
      %v524 = vld [vmem:[#allocation2 + $0x2f] sm:$0xff]
      %v525 = vld [vmem:[#allocation2 + $0x47] sm:$0xff]
      %v526 = vld [vmem:[#allocation2 + $0x4f] sm:$0xff]
      %v527 = vld [vmem:[#allocation2 + $0x67] sm:$0xff]
      %v528 = vld [vmem:[#allocation2 + $0x6f] sm:$0xff]
      %v529 = vld [vmem:[#allocation2 + $0x87] sm:$0xff]
      %v530 = vld [vmem:[#allocation2 + $0x8f] sm:$0xff]
      %v531 = vld [vmem:[#allocation2 + $0xa7] sm:$0xff]
      %v532 = vld [vmem:[#allocation2 + $0xaf] sm:$0xff]
      %v533 = vld [vmem:[#allocation2 + $0xc7] sm:$0xff]
      %v534 = vld [vmem:[#allocation2 + $0xcf] sm:$0xff]
      %v535 = vld [vmem:[#allocation2 + $0xe7] sm:$0xff]
      %v536 = vld [vmem:[#allocation2 + $0xef] sm:$0xff]
      %v537 = vld [vmem:[#allocation2 + $0x107] sm:$0xff]
      %v538 = vld [vmem:[#allocation2 + $0x10f] sm:$0xff]
      %v539 = vld [vmem:[#allocation2 + $0x127] sm:$0xff]
      %v540 = vld [vmem:[#allocation2 + $0x12f] sm:$0xff]
      %v541 = vld [vmem:[#allocation2 + $0x147] sm:$0xff]
      %v542 = vld [vmem:[#allocation2 + $0x14f] sm:$0xff]
      %v543 = vld [vmem:[#allocation2 + $0x167] sm:$0xff]
      %v544 = vld [vmem:[#allocation2 + $0x16f] sm:$0xff]
      %v545 = vld [vmem:[#allocation2 + $0x187] sm:$0xff]
      %v546 = vld [vmem:[#allocation2 + $0x18f] sm:$0xff]
      %v547 = vld [vmem:[#allocation2 + $0x1a7] sm:$0xff]
      %v548 = vld [vmem:[#allocation2 + $0x1af] sm:$0xff]
      %v549 = vld [vmem:[#allocation2 + $0x1c7] sm:$0xff]
      %v550 = vld [vmem:[#allocation2 + $0x1cf] sm:$0xff]
      %v551 = vld [vmem:[#allocation2 + $0x1e7] sm:$0xff]
      %v552 = vld [vmem:[#allocation2 + $0x1ef] sm:$0xff]
      %553 = vst.msk [vmem:[#allocation3] sm:$0xff] %vm382, %v521
      %554 = vst.msk [vmem:[#allocation3 + $0x8] sm:$0xff] %vm382, %v522
      %555 = vst.msk [vmem:[#allocation3 + $0x10] sm:$0xff] %vm382, %v523
      %556 = vst.msk [vmem:[#allocation3 + $0x18] sm:$0xff] %vm382, %v524
      %557 = vst.msk [vmem:[#allocation3 + $0x20] sm:$0xff] %vm382, %v525
      %558 = vst.msk [vmem:[#allocation3 + $0x28] sm:$0xff] %vm382, %v526
      %559 = vst.msk [vmem:[#allocation3 + $0x30] sm:$0xff] %vm382, %v527
      %560 = vst.msk [vmem:[#allocation3 + $0x38] sm:$0xff] %vm382, %v528
      %561 = vst.msk [vmem:[#allocation3 + $0x40] sm:$0xff] %vm382, %v529
      %562 = vst.msk [vmem:[#allocation3 + $0x48] sm:$0xff] %vm382, %v530
      %563 = vst.msk [vmem:[#allocation3 + $0x50] sm:$0xff] %vm382, %v531
      %564 = vst.msk [vmem:[#allocation3 + $0x58] sm:$0xff] %vm382, %v532
      %565 = vst.msk [vmem:[#allocation3 + $0x60] sm:$0xff] %vm382, %v533
      %566 = vst.msk [vmem:[#allocation3 + $0x68] sm:$0xff] %vm382, %v534
      %567 = vst.msk [vmem:[#allocation3 + $0x70] sm:$0xff] %vm382, %v535
      %568 = vst.msk [vmem:[#allocation3 + $0x78] sm:$0xff] %vm382, %v536
      %569 = vst.msk [vmem:[#allocation3 + $0x80] sm:$0xff] %vm382, %v537
      %570 = vst.msk [vmem:[#allocation3 + $0x88] sm:$0xff] %vm382, %v538
      %571 = vst.msk [vmem:[#allocation3 + $0x90] sm:$0xff] %vm382, %v539
      %572 = vst.msk [vmem:[#allocation3 + $0x98] sm:$0xff] %vm382, %v540
      %573 = vst.msk [vmem:[#allocation3 + $0xa0] sm:$0xff] %vm382, %v541
      %574 = vst.msk [vmem:[#allocation3 + $0xa8] sm:$0xff] %vm382, %v542
      %575 = vst.msk [vmem:[#allocation3 + $0xb0] sm:$0xff] %vm382, %v543
      %576 = vst.msk [vmem:[#allocation3 + $0xb8] sm:$0xff] %vm382, %v544
      %577 = vst.msk [vmem:[#allocation3 + $0xc0] sm:$0xff] %vm382, %v545
      %578 = vst.msk [vmem:[#allocation3 + $0xc8] sm:$0xff] %vm382, %v546
      %579 = vst.msk [vmem:[#allocation3 + $0xd0] sm:$0xff] %vm382, %v547
      %580 = vst.msk [vmem:[#allocation3 + $0xd8] sm:$0xff] %vm382, %v548
      %581 = vst.msk [vmem:[#allocation3 + $0xe0] sm:$0xff] %vm382, %v549
      %582 = vst.msk [vmem:[#allocation3 + $0xe8] sm:$0xff] %vm382, %v550
      %583 = vst.msk [vmem:[#allocation3 + $0xf0] sm:$0xff] %vm382, %v551
      %584 = vst.msk [vmem:[#allocation3 + $0xf8] sm:$0xff] %vm382, %v552
      %v585 = vld [vmem:[#allocation2 + $0x8] sm:$0xff]
      %v586 = vld [vmem:[#allocation2 + $0x10] sm:$0xff]
      %v587 = vld [vmem:[#allocation2 + $0x28] sm:$0xff]
      %v588 = vld [vmem:[#allocation2 + $0x30] sm:$0xff]
      %v589 = vld [vmem:[#allocation2 + $0x48] sm:$0xff]
      %v590 = vld [vmem:[#allocation2 + $0x50] sm:$0xff]
      %v591 = vld [vmem:[#allocation2 + $0x68] sm:$0xff]
      %v592 = vld [vmem:[#allocation2 + $0x70] sm:$0xff]
      %v593 = vld [vmem:[#allocation2 + $0x88] sm:$0xff]
      %v594 = vld [vmem:[#allocation2 + $0x90] sm:$0xff]
      %v595 = vld [vmem:[#allocation2 + $0xa8] sm:$0xff]
      %v596 = vld [vmem:[#allocation2 + $0xb0] sm:$0xff]
      %v597 = vld [vmem:[#allocation2 + $0xc8] sm:$0xff]
      %v598 = vld [vmem:[#allocation2 + $0xd0] sm:$0xff]
      %v599 = vld [vmem:[#allocation2 + $0xe8] sm:$0xff]
      %v600 = vld [vmem:[#allocation2 + $0xf0] sm:$0xff]
      %v601 = vld [vmem:[#allocation2 + $0x108] sm:$0xff]
      %v602 = vld [vmem:[#allocation2 + $0x110] sm:$0xff]
      %v603 = vld [vmem:[#allocation2 + $0x128] sm:$0xff]
      %v604 = vld [vmem:[#allocation2 + $0x130] sm:$0xff]
      %v605 = vld [vmem:[#allocation2 + $0x148] sm:$0xff]
      %v606 = vld [vmem:[#allocation2 + $0x150] sm:$0xff]
      %v607 = vld [vmem:[#allocation2 + $0x168] sm:$0xff]
      %v608 = vld [vmem:[#allocation2 + $0x170] sm:$0xff]
      %v609 = vld [vmem:[#allocation2 + $0x188] sm:$0xff]
      %v610 = vld [vmem:[#allocation2 + $0x190] sm:$0xff]
      %v611 = vld [vmem:[#allocation2 + $0x1a8] sm:$0xff]
      %v612 = vld [vmem:[#allocation2 + $0x1b0] sm:$0xff]
      %v613 = vld [vmem:[#allocation2 + $0x1c8] sm:$0xff]
      %v614 = vld [vmem:[#allocation2 + $0x1d0] sm:$0xff]
      %v615 = vld [vmem:[#allocation2 + $0x1e8] sm:$0xff]
      %v616 = vld [vmem:[#allocation2 + $0x1f0] sm:$0xff]
      %649 = vrot.lane.b32.xlu0 %v585, 4
      %v650 = vpop.permute.xlu0 %649
      %651 = vrot.lane.b32.xlu0 %v586, 4
      %v652 = vpop.permute.xlu0 %651
      %653 = vrot.lane.b32.xlu0 %v587, 4
      %v654 = vpop.permute.xlu0 %653
      %655 = vrot.lane.b32.xlu0 %v588, 4
      %v656 = vpop.permute.xlu0 %655
      %657 = vrot.lane.b32.xlu0 %v589, 4
      %v658 = vpop.permute.xlu0 %657
      %659 = vrot.lane.b32.xlu0 %v590, 4
      %v660 = vpop.permute.xlu0 %659
      %661 = vrot.lane.b32.xlu0 %v591, 4
      %v662 = vpop.permute.xlu0 %661
      %663 = vrot.lane.b32.xlu0 %v592, 4
      %v664 = vpop.permute.xlu0 %663
      %665 = vrot.lane.b32.xlu0 %v593, 4
      %v666 = vpop.permute.xlu0 %665
      %667 = vrot.lane.b32.xlu0 %v594, 4
      %v668 = vpop.permute.xlu0 %667
      %669 = vrot.lane.b32.xlu0 %v595, 4
      %v670 = vpop.permute.xlu0 %669
      %671 = vrot.lane.b32.xlu0 %v596, 4
      %v672 = vpop.permute.xlu0 %671
      %673 = vrot.lane.b32.xlu0 %v597, 4
      %v674 = vpop.permute.xlu0 %673
      %675 = vrot.lane.b32.xlu0 %v598, 4
      %v676 = vpop.permute.xlu0 %675
      %677 = vrot.lane.b32.xlu0 %v599, 4
      %v678 = vpop.permute.xlu0 %677
      %679 = vrot.lane.b32.xlu0 %v600, 4
      %v680 = vpop.permute.xlu0 %679
      %681 = vrot.lane.b32.xlu0 %v601, 4
      %v682 = vpop.permute.xlu0 %681
      %683 = vrot.lane.b32.xlu0 %v602, 4
      %v684 = vpop.permute.xlu0 %683
      %685 = vrot.lane.b32.xlu0 %v603, 4
      %v686 = vpop.permute.xlu0 %685
      %687 = vrot.lane.b32.xlu0 %v604, 4
      %v688 = vpop.permute.xlu0 %687
      %689 = vrot.lane.b32.xlu0 %v605, 4
      %v690 = vpop.permute.xlu0 %689
      %691 = vrot.lane.b32.xlu0 %v606, 4
      %v692 = vpop.permute.xlu0 %691
      %693 = vrot.lane.b32.xlu0 %v607, 4
      %v694 = vpop.permute.xlu0 %693
      %695 = vrot.lane.b32.xlu0 %v608, 4
      %v696 = vpop.permute.xlu0 %695
      %697 = vrot.lane.b32.xlu0 %v609, 4
      %v698 = vpop.permute.xlu0 %697
      %699 = vrot.lane.b32.xlu0 %v610, 4
      %v700 = vpop.permute.xlu0 %699
      %701 = vrot.lane.b32.xlu0 %v611, 4
      %v702 = vpop.permute.xlu0 %701
      %703 = vrot.lane.b32.xlu0 %v612, 4
      %v704 = vpop.permute.xlu0 %703
      %705 = vrot.lane.b32.xlu0 %v613, 4
      %v706 = vpop.permute.xlu0 %705
      %707 = vrot.lane.b32.xlu0 %v614, 4
      %v708 = vpop.permute.xlu0 %707
      %709 = vrot.lane.b32.xlu0 %v615, 4
      %v710 = vpop.permute.xlu0 %709
      %711 = vrot.lane.b32.xlu0 %v616, 4
      %v712 = vpop.permute.xlu0 %711
      %vm745 = vcmask 64544
      %746 = vst.msk [vmem:[#allocation3] sm:$0xff] %vm745, %v650
      %747 = vst.msk [vmem:[#allocation3 + $0x8] sm:$0xff] %vm745, %v652
      %748 = vst.msk [vmem:[#allocation3 + $0x10] sm:$0xff] %vm745, %v654
      %749 = vst.msk [vmem:[#allocation3 + $0x18] sm:$0xff] %vm745, %v656
      %750 = vst.msk [vmem:[#allocation3 + $0x20] sm:$0xff] %vm745, %v658
      %751 = vst.msk [vmem:[#allocation3 + $0x28] sm:$0xff] %vm745, %v660
      %752 = vst.msk [vmem:[#allocation3 + $0x30] sm:$0xff] %vm745, %v662
      %753 = vst.msk [vmem:[#allocation3 + $0x38] sm:$0xff] %vm745, %v664
      %754 = vst.msk [vmem:[#allocation3 + $0x40] sm:$0xff] %vm745, %v666
      %755 = vst.msk [vmem:[#allocation3 + $0x48] sm:$0xff] %vm745, %v668
      %756 = vst.msk [vmem:[#allocation3 + $0x50] sm:$0xff] %vm745, %v670
      %757 = vst.msk [vmem:[#allocation3 + $0x58] sm:$0xff] %vm745, %v672
      %758 = vst.msk [vmem:[#allocation3 + $0x60] sm:$0xff] %vm745, %v674
      %759 = vst.msk [vmem:[#allocation3 + $0x68] sm:$0xff] %vm745, %v676
      %760 = vst.msk [vmem:[#allocation3 + $0x70] sm:$0xff] %vm745, %v678
      %761 = vst.msk [vmem:[#allocation3 + $0x78] sm:$0xff] %vm745, %v680
      %762 = vst.msk [vmem:[#allocation3 + $0x80] sm:$0xff] %vm745, %v682
      %763 = vst.msk [vmem:[#allocation3 + $0x88] sm:$0xff] %vm745, %v684
      %764 = vst.msk [vmem:[#allocation3 + $0x90] sm:$0xff] %vm745, %v686
      %765 = vst.msk [vmem:[#allocation3 + $0x98] sm:$0xff] %vm745, %v688
      %766 = vst.msk [vmem:[#allocation3 + $0xa0] sm:$0xff] %vm745, %v690
      %767 = vst.msk [vmem:[#allocation3 + $0xa8] sm:$0xff] %vm745, %v692
      %768 = vst.msk [vmem:[#allocation3 + $0xb0] sm:$0xff] %vm745, %v694
      %769 = vst.msk [vmem:[#allocation3 + $0xb8] sm:$0xff] %vm745, %v696
      %770 = vst.msk [vmem:[#allocation3 + $0xc0] sm:$0xff] %vm745, %v698
      %771 = vst.msk [vmem:[#allocation3 + $0xc8] sm:$0xff] %vm745, %v700
      %772 = vst.msk [vmem:[#allocation3 + $0xd0] sm:$0xff] %vm745, %v702
      %773 = vst.msk [vmem:[#allocation3 + $0xd8] sm:$0xff] %vm745, %v704
      %774 = vst.msk [vmem:[#allocation3 + $0xe0] sm:$0xff] %vm745, %v706
      %775 = vst.msk [vmem:[#allocation3 + $0xe8] sm:$0xff] %vm745, %v708
      %776 = vst.msk [vmem:[#allocation3 + $0xf0] sm:$0xff] %vm745, %v710
      %777 = vst.msk [vmem:[#allocation3 + $0xf8] sm:$0xff] %vm745, %v712
      %v778 = vld [vmem:[#allocation2 + $0x9] sm:$0xff]
      %v779 = vld [vmem:[#allocation2 + $0x11] sm:$0xff]
      %v780 = vld [vmem:[#allocation2 + $0x29] sm:$0xff]
      %v781 = vld [vmem:[#allocation2 + $0x31] sm:$0xff]
      %v782 = vld [vmem:[#allocation2 + $0x49] sm:$0xff]
      %v783 = vld [vmem:[#allocation2 + $0x51] sm:$0xff]
      %v784 = vld [vmem:[#allocation2 + $0x69] sm:$0xff]
      %v785 = vld [vmem:[#allocation2 + $0x71] sm:$0xff]
      %v786 = vld [vmem:[#allocation2 + $0x89] sm:$0xff]
      %v787 = vld [vmem:[#allocation2 + $0x91] sm:$0xff]
      %v788 = vld [vmem:[#allocation2 + $0xa9] sm:$0xff]
      %v789 = vld [vmem:[#allocation2 + $0xb1] sm:$0xff]
      %v790 = vld [vmem:[#allocation2 + $0xc9] sm:$0xff]
      %v791 = vld [vmem:[#allocation2 + $0xd1] sm:$0xff]
      %v792 = vld [vmem:[#allocation2 + $0xe9] sm:$0xff]
      %v793 = vld [vmem:[#allocation2 + $0xf1] sm:$0xff]
      %v794 = vld [vmem:[#allocation2 + $0x109] sm:$0xff]
      %v795 = vld [vmem:[#allocation2 + $0x111] sm:$0xff]
      %v796 = vld [vmem:[#allocation2 + $0x129] sm:$0xff]
      %v797 = vld [vmem:[#allocation2 + $0x131] sm:$0xff]
      %v798 = vld [vmem:[#allocation2 + $0x149] sm:$0xff]
      %v799 = vld [vmem:[#allocation2 + $0x151] sm:$0xff]
      %v800 = vld [vmem:[#allocation2 + $0x169] sm:$0xff]
      %v801 = vld [vmem:[#allocation2 + $0x171] sm:$0xff]
      %v802 = vld [vmem:[#allocation2 + $0x189] sm:$0xff]
      %v803 = vld [vmem:[#allocation2 + $0x191] sm:$0xff]
      %v804 = vld [vmem:[#allocation2 + $0x1a9] sm:$0xff]
      %v805 = vld [vmem:[#allocation2 + $0x1b1] sm:$0xff]
      %v806 = vld [vmem:[#allocation2 + $0x1c9] sm:$0xff]
      %v807 = vld [vmem:[#allocation2 + $0x1d1] sm:$0xff]
      %v808 = vld [vmem:[#allocation2 + $0x1e9] sm:$0xff]
      %v809 = vld [vmem:[#allocation2 + $0x1f1] sm:$0xff]
      %842 = vrot.lane.b32.xlu0 %v778, 8
      %v843 = vpop.permute.xlu0 %842
      %844 = vrot.lane.b32.xlu0 %v779, 8
      %v845 = vpop.permute.xlu0 %844
      %846 = vrot.lane.b32.xlu0 %v780, 8
      %v847 = vpop.permute.xlu0 %846
      %848 = vrot.lane.b32.xlu0 %v781, 8
      %v849 = vpop.permute.xlu0 %848
      %850 = vrot.lane.b32.xlu0 %v782, 8
      %v851 = vpop.permute.xlu0 %850
      %852 = vrot.lane.b32.xlu0 %v783, 8
      %v853 = vpop.permute.xlu0 %852
      %854 = vrot.lane.b32.xlu0 %v784, 8
      %v855 = vpop.permute.xlu0 %854
      %856 = vrot.lane.b32.xlu0 %v785, 8
      %v857 = vpop.permute.xlu0 %856
      %858 = vrot.lane.b32.xlu0 %v786, 8
      %v859 = vpop.permute.xlu0 %858
      %860 = vrot.lane.b32.xlu0 %v787, 8
      %v861 = vpop.permute.xlu0 %860
      %862 = vrot.lane.b32.xlu0 %v788, 8
      %v863 = vpop.permute.xlu0 %862
      %864 = vrot.lane.b32.xlu0 %v789, 8
      %v865 = vpop.permute.xlu0 %864
      %866 = vrot.lane.b32.xlu0 %v790, 8
      %v867 = vpop.permute.xlu0 %866
      %868 = vrot.lane.b32.xlu0 %v791, 8
      %v869 = vpop.permute.xlu0 %868
      %870 = vrot.lane.b32.xlu0 %v792, 8
      %v871 = vpop.permute.xlu0 %870
      %872 = vrot.lane.b32.xlu0 %v793, 8
      %v873 = vpop.permute.xlu0 %872
      %874 = vrot.lane.b32.xlu0 %v794, 8
      %v875 = vpop.permute.xlu0 %874
      %876 = vrot.lane.b32.xlu0 %v795, 8
      %v877 = vpop.permute.xlu0 %876
      %878 = vrot.lane.b32.xlu0 %v796, 8
      %v879 = vpop.permute.xlu0 %878
      %880 = vrot.lane.b32.xlu0 %v797, 8
      %v881 = vpop.permute.xlu0 %880
      %882 = vrot.lane.b32.xlu0 %v798, 8
      %v883 = vpop.permute.xlu0 %882
      %884 = vrot.lane.b32.xlu0 %v799, 8
      %v885 = vpop.permute.xlu0 %884
      %886 = vrot.lane.b32.xlu0 %v800, 8
      %v887 = vpop.permute.xlu0 %886
      %888 = vrot.lane.b32.xlu0 %v801, 8
      %v889 = vpop.permute.xlu0 %888
      %890 = vrot.lane.b32.xlu0 %v802, 8
      %v891 = vpop.permute.xlu0 %890
      %892 = vrot.lane.b32.xlu0 %v803, 8
      %v893 = vpop.permute.xlu0 %892
      %894 = vrot.lane.b32.xlu0 %v804, 8
      %v895 = vpop.permute.xlu0 %894
      %896 = vrot.lane.b32.xlu0 %v805, 8
      %v897 = vpop.permute.xlu0 %896
      %898 = vrot.lane.b32.xlu0 %v806, 8
      %v899 = vpop.permute.xlu0 %898
      %900 = vrot.lane.b32.xlu0 %v807, 8
      %v901 = vpop.permute.xlu0 %900
      %902 = vrot.lane.b32.xlu0 %v808, 8
      %v903 = vpop.permute.xlu0 %902
      %904 = vrot.lane.b32.xlu0 %v809, 8
      %v905 = vpop.permute.xlu0 %904
      %vm938 = vcmask 97344
      %939 = vst.msk [vmem:[#allocation3] sm:$0xff] %vm938, %v843
      %940 = vst.msk [vmem:[#allocation3 + $0x8] sm:$0xff] %vm938, %v845
      %941 = vst.msk [vmem:[#allocation3 + $0x10] sm:$0xff] %vm938, %v847
      %942 = vst.msk [vmem:[#allocation3 + $0x18] sm:$0xff] %vm938, %v849
      %943 = vst.msk [vmem:[#allocation3 + $0x20] sm:$0xff] %vm938, %v851
      %944 = vst.msk [vmem:[#allocation3 + $0x28] sm:$0xff] %vm938, %v853
      %945 = vst.msk [vmem:[#allocation3 + $0x30] sm:$0xff] %vm938, %v855
      %946 = vst.msk [vmem:[#allocation3 + $0x38] sm:$0xff] %vm938, %v857
      %947 = vst.msk [vmem:[#allocation3 + $0x40] sm:$0xff] %vm938, %v859
      %948 = vst.msk [vmem:[#allocation3 + $0x48] sm:$0xff] %vm938, %v861
      %949 = vst.msk [vmem:[#allocation3 + $0x50] sm:$0xff] %vm938, %v863
      %950 = vst.msk [vmem:[#allocation3 + $0x58] sm:$0xff] %vm938, %v865
      %951 = vst.msk [vmem:[#allocation3 + $0x60] sm:$0xff] %vm938, %v867
      %952 = vst.msk [vmem:[#allocation3 + $0x68] sm:$0xff] %vm938, %v869
      %953 = vst.msk [vmem:[#allocation3 + $0x70] sm:$0xff] %vm938, %v871
      %954 = vst.msk [vmem:[#allocation3 + $0x78] sm:$0xff] %vm938, %v873
      %955 = vst.msk [vmem:[#allocation3 + $0x80] sm:$0xff] %vm938, %v875
      %956 = vst.msk [vmem:[#allocation3 + $0x88] sm:$0xff] %vm938, %v877
      %957 = vst.msk [vmem:[#allocation3 + $0x90] sm:$0xff] %vm938, %v879
      %958 = vst.msk [vmem:[#allocation3 + $0x98] sm:$0xff] %vm938, %v881
      %959 = vst.msk [vmem:[#allocation3 + $0xa0] sm:$0xff] %vm938, %v883
      %960 = vst.msk [vmem:[#allocation3 + $0xa8] sm:$0xff] %vm938, %v885
      %961 = vst.msk [vmem:[#allocation3 + $0xb0] sm:$0xff] %vm938, %v887
      %962 = vst.msk [vmem:[#allocation3 + $0xb8] sm:$0xff] %vm938, %v889
      %963 = vst.msk [vmem:[#allocation3 + $0xc0] sm:$0xff] %vm938, %v891
      %964 = vst.msk [vmem:[#allocation3 + $0xc8] sm:$0xff] %vm938, %v893
      %965 = vst.msk [vmem:[#allocation3 + $0xd0] sm:$0xff] %vm938, %v895
      %966 = vst.msk [vmem:[#allocation3 + $0xd8] sm:$0xff] %vm938, %v897
      %967 = vst.msk [vmem:[#allocation3 + $0xe0] sm:$0xff] %vm938, %v899
      %968 = vst.msk [vmem:[#allocation3 + $0xe8] sm:$0xff] %vm938, %v901
      %969 = vst.msk [vmem:[#allocation3 + $0xf0] sm:$0xff] %vm938, %v903
      %970 = vst.msk [vmem:[#allocation3 + $0xf8] sm:$0xff] %vm938, %v905
      %v971 = vld [vmem:[%s488 + $0x7] sm:$0xff]
      %v972 = vld [vmem:[%s488 + $0xf] sm:$0xff]
      %v973 = vld [vmem:[%s488 + $0x27] sm:$0xff]
      %v974 = vld [vmem:[%s488 + $0x2f] sm:$0xff]
      %v975 = vld [vmem:[%s488 + $0x47] sm:$0xff]
      %v976 = vld [vmem:[%s488 + $0x4f] sm:$0xff]
      %v977 = vld [vmem:[%s488 + $0x67] sm:$0xff]
      %v978 = vld [vmem:[%s488 + $0x6f] sm:$0xff]
      %v979 = vld [vmem:[%s488 + $0x87] sm:$0xff]
      %v980 = vld [vmem:[%s488 + $0x8f] sm:$0xff]
      %v981 = vld [vmem:[%s488 + $0xa7] sm:$0xff]
      %v982 = vld [vmem:[%s488 + $0xaf] sm:$0xff]
      %v983 = vld [vmem:[%s488 + $0xc7] sm:$0xff]
      %v984 = vld [vmem:[%s488 + $0xcf] sm:$0xff]
      %v985 = vld [vmem:[%s488 + $0xe7] sm:$0xff]
      %v986 = vld [vmem:[%s488 + $0xef] sm:$0xff]
      %v987 = vld [vmem:[%s488 + $0x107] sm:$0xff]
      %v988 = vld [vmem:[%s488 + $0x10f] sm:$0xff]
      %v989 = vld [vmem:[%s488 + $0x127] sm:$0xff]
      %v990 = vld [vmem:[%s488 + $0x12f] sm:$0xff]
      %v991 = vld [vmem:[%s488 + $0x147] sm:$0xff]
      %v992 = vld [vmem:[%s488 + $0x14f] sm:$0xff]
      %v993 = vld [vmem:[%s488 + $0x167] sm:$0xff]
      %v994 = vld [vmem:[%s488 + $0x16f] sm:$0xff]
      %v995 = vld [vmem:[%s488 + $0x187] sm:$0xff]
      %v996 = vld [vmem:[%s488 + $0x18f] sm:$0xff]
      %v997 = vld [vmem:[%s488 + $0x1a7] sm:$0xff]
      %v998 = vld [vmem:[%s488 + $0x1af] sm:$0xff]
      %v999 = vld [vmem:[%s488 + $0x1c7] sm:$0xff]
      %v1000 = vld [vmem:[%s488 + $0x1cf] sm:$0xff]
      %v1001 = vld [vmem:[%s488 + $0x1e7] sm:$0xff]
      %v1002 = vld [vmem:[%s488 + $0x1ef] sm:$0xff]
      %1035 = vrot.lane.b32.xlu0 %v971, 12
      %v1036 = vpop.permute.xlu0 %1035
      %1037 = vrot.lane.b32.xlu0 %v972, 12
      %v1038 = vpop.permute.xlu0 %1037
      %1039 = vrot.lane.b32.xlu0 %v973, 12
      %v1040 = vpop.permute.xlu0 %1039
      %1041 = vrot.lane.b32.xlu0 %v974, 12
      %v1042 = vpop.permute.xlu0 %1041
      %1043 = vrot.lane.b32.xlu0 %v975, 12
      %v1044 = vpop.permute.xlu0 %1043
      %1045 = vrot.lane.b32.xlu0 %v976, 12
      %v1046 = vpop.permute.xlu0 %1045
      %1047 = vrot.lane.b32.xlu0 %v977, 12
      %v1048 = vpop.permute.xlu0 %1047
      %1049 = vrot.lane.b32.xlu0 %v978, 12
      %v1050 = vpop.permute.xlu0 %1049
      %1051 = vrot.lane.b32.xlu0 %v979, 12
      %v1052 = vpop.permute.xlu0 %1051
      %1053 = vrot.lane.b32.xlu0 %v980, 12
      %v1054 = vpop.permute.xlu0 %1053
      %1055 = vrot.lane.b32.xlu0 %v981, 12
      %v1056 = vpop.permute.xlu0 %1055
      %1057 = vrot.lane.b32.xlu0 %v982, 12
      %v1058 = vpop.permute.xlu0 %1057
      %1059 = vrot.lane.b32.xlu0 %v983, 12
      %v1060 = vpop.permute.xlu0 %1059
      %1061 = vrot.lane.b32.xlu0 %v984, 12
      %v1062 = vpop.permute.xlu0 %1061
      %1063 = vrot.lane.b32.xlu0 %v985, 12
      %v1064 = vpop.permute.xlu0 %1063
      %1065 = vrot.lane.b32.xlu0 %v986, 12
      %v1066 = vpop.permute.xlu0 %1065
      %1067 = vrot.lane.b32.xlu0 %v987, 12
      %v1068 = vpop.permute.xlu0 %1067
      %1069 = vrot.lane.b32.xlu0 %v988, 12
      %v1070 = vpop.permute.xlu0 %1069
      %1071 = vrot.lane.b32.xlu0 %v989, 12
      %v1072 = vpop.permute.xlu0 %1071
      %1073 = vrot.lane.b32.xlu0 %v990, 12
      %v1074 = vpop.permute.xlu0 %1073
      %1075 = vrot.lane.b32.xlu0 %v991, 12
      %v1076 = vpop.permute.xlu0 %1075
      %1077 = vrot.lane.b32.xlu0 %v992, 12
      %v1078 = vpop.permute.xlu0 %1077
      %1079 = vrot.lane.b32.xlu0 %v993, 12
      %v1080 = vpop.permute.xlu0 %1079
      %1081 = vrot.lane.b32.xlu0 %v994, 12
      %v1082 = vpop.permute.xlu0 %1081
      %1083 = vrot.lane.b32.xlu0 %v995, 12
      %v1084 = vpop.permute.xlu0 %1083
      %1085 = vrot.lane.b32.xlu0 %v996, 12
      %v1086 = vpop.permute.xlu0 %1085
      %1087 = vrot.lane.b32.xlu0 %v997, 12
      %v1088 = vpop.permute.xlu0 %1087
      %1089 = vrot.lane.b32.xlu0 %v998, 12
      %v1090 = vpop.permute.xlu0 %1089
      %1091 = vrot.lane.b32.xlu0 %v999, 12
      %v1092 = vpop.permute.xlu0 %1091
      %1093 = vrot.lane.b32.xlu0 %v1000, 12
      %v1094 = vpop.permute.xlu0 %1093
      %1095 = vrot.lane.b32.xlu0 %v1001, 12
      %v1096 = vpop.permute.xlu0 %1095
      %1097 = vrot.lane.b32.xlu0 %v1002, 12
      %v1098 = vpop.permute.xlu0 %1097
      %vm1131 = vcmask 130144
      %1132 = vst.msk [vmem:[#allocation3] sm:$0xff] %vm1131, %v1036
      %1133 = vst.msk [vmem:[#allocation3 + $0x8] sm:$0xff] %vm1131, %v1038
      %1134 = vst.msk [vmem:[#allocation3 + $0x10] sm:$0xff] %vm1131, %v1040
      %1135 = vst.msk [vmem:[#allocation3 + $0x18] sm:$0xff] %vm1131, %v1042
      %1136 = vst.msk [vmem:[#allocation3 + $0x20] sm:$0xff] %vm1131, %v1044
      %1137 = vst.msk [vmem:[#allocation3 + $0x28] sm:$0xff] %vm1131, %v1046
      %1138 = vst.msk [vmem:[#allocation3 + $0x30] sm:$0xff] %vm1131, %v1048
      %1139 = vst.msk [vmem:[#allocation3 + $0x38] sm:$0xff] %vm1131, %v1050
      %1140 = vst.msk [vmem:[#allocation3 + $0x40] sm:$0xff] %vm1131, %v1052
      %1141 = vst.msk [vmem:[#allocation3 + $0x48] sm:$0xff] %vm1131, %v1054
      %1142 = vst.msk [vmem:[#allocation3 + $0x50] sm:$0xff] %vm1131, %v1056
      %1143 = vst.msk [vmem:[#allocation3 + $0x58] sm:$0xff] %vm1131, %v1058
      %1144 = vst.msk [vmem:[#allocation3 + $0x60] sm:$0xff] %vm1131, %v1060
      %1145 = vst.msk [vmem:[#allocation3 + $0x68] sm:$0xff] %vm1131, %v1062
      %1146 = vst.msk [vmem:[#allocation3 + $0x70] sm:$0xff] %vm1131, %v1064
      %1147 = vst.msk [vmem:[#allocation3 + $0x78] sm:$0xff] %vm1131, %v1066
      %1148 = vst.msk [vmem:[#allocation3 + $0x80] sm:$0xff] %vm1131, %v1068
      %1149 = vst.msk [vmem:[#allocation3 + $0x88] sm:$0xff] %vm1131, %v1070
      %1150 = vst.msk [vmem:[#allocation3 + $0x90] sm:$0xff] %vm1131, %v1072
      %1151 = vst.msk [vmem:[#allocation3 + $0x98] sm:$0xff] %vm1131, %v1074
      %1152 = vst.msk [vmem:[#allocation3 + $0xa0] sm:$0xff] %vm1131, %v1076
      %1153 = vst.msk [vmem:[#allocation3 + $0xa8] sm:$0xff] %vm1131, %v1078
      %1154 = vst.msk [vmem:[#allocation3 + $0xb0] sm:$0xff] %vm1131, %v1080
      %1155 = vst.msk [vmem:[#allocation3 + $0xb8] sm:$0xff] %vm1131, %v1082
      %1156 = vst.msk [vmem:[#allocation3 + $0xc0] sm:$0xff] %vm1131, %v1084
      %1157 = vst.msk [vmem:[#allocation3 + $0xc8] sm:$0xff] %vm1131, %v1086
      %1158 = vst.msk [vmem:[#allocation3 + $0xd0] sm:$0xff] %vm1131, %v1088
      %1159 = vst.msk [vmem:[#allocation3 + $0xd8] sm:$0xff] %vm1131, %v1090
      %1160 = vst.msk [vmem:[#allocation3 + $0xe0] sm:$0xff] %vm1131, %v1092
      %1161 = vst.msk [vmem:[#allocation3 + $0xe8] sm:$0xff] %vm1131, %v1094
      %1162 = vst.msk [vmem:[#allocation3 + $0xf0] sm:$0xff] %vm1131, %v1096
      %1163 = vst.msk [vmem:[#allocation3 + $0xf8] sm:$0xff] %vm1131, %v1098
      %v1164 = vld [vmem:[%s488 + $0x8] sm:$0xff]
      %v1165 = vld [vmem:[%s488 + $0x10] sm:$0xff]
      %v1166 = vld [vmem:[%s488 + $0x28] sm:$0xff]
      %v1167 = vld [vmem:[%s488 + $0x30] sm:$0xff]
      %v1168 = vld [vmem:[%s488 + $0x48] sm:$0xff]
      %v1169 = vld [vmem:[%s488 + $0x50] sm:$0xff]
      %v1170 = vld [vmem:[%s488 + $0x68] sm:$0xff]
      %v1171 = vld [vmem:[%s488 + $0x70] sm:$0xff]
      %v1172 = vld [vmem:[%s488 + $0x88] sm:$0xff]
      %v1173 = vld [vmem:[%s488 + $0x90] sm:$0xff]
      %v1174 = vld [vmem:[%s488 + $0xa8] sm:$0xff]
      %v1175 = vld [vmem:[%s488 + $0xb0] sm:$0xff]
      %v1176 = vld [vmem:[%s488 + $0xc8] sm:$0xff]
      %v1177 = vld [vmem:[%s488 + $0xd0] sm:$0xff]
      %v1178 = vld [vmem:[%s488 + $0xe8] sm:$0xff]
      %v1179 = vld [vmem:[%s488 + $0xf0] sm:$0xff]
      %v1180 = vld [vmem:[%s488 + $0x108] sm:$0xff]
      %v1181 = vld [vmem:[%s488 + $0x110] sm:$0xff]
      %v1182 = vld [vmem:[%s488 + $0x128] sm:$0xff]
      %v1183 = vld [vmem:[%s488 + $0x130] sm:$0xff]
      %v1184 = vld [vmem:[%s488 + $0x148] sm:$0xff]
      %v1185 = vld [vmem:[%s488 + $0x150] sm:$0xff]
      %v1186 = vld [vmem:[%s488 + $0x168] sm:$0xff]
      %v1187 = vld [vmem:[%s488 + $0x170] sm:$0xff]
      %v1188 = vld [vmem:[%s488 + $0x188] sm:$0xff]
      %v1189 = vld [vmem:[%s488 + $0x190] sm:$0xff]
      %v1190 = vld [vmem:[%s488 + $0x1a8] sm:$0xff]
      %v1191 = vld [vmem:[%s488 + $0x1b0] sm:$0xff]
      %v1192 = vld [vmem:[%s488 + $0x1c8] sm:$0xff]
      %v1193 = vld [vmem:[%s488 + $0x1d0] sm:$0xff]
      %v1194 = vld [vmem:[%s488 + $0x1e8] sm:$0xff]
      %v1195 = vld [vmem:[%s488 + $0x1f0] sm:$0xff]
      %1228 = vrot.lane.b32.xlu0 %v1164, 16
      %v1229 = vpop.permute.xlu0 %1228
      %1230 = vrot.lane.b32.xlu0 %v1165, 16
      %v1231 = vpop.permute.xlu0 %1230
      %1232 = vrot.lane.b32.xlu0 %v1166, 16
      %v1233 = vpop.permute.xlu0 %1232
      %1234 = vrot.lane.b32.xlu0 %v1167, 16
      %v1235 = vpop.permute.xlu0 %1234
      %1236 = vrot.lane.b32.xlu0 %v1168, 16
      %v1237 = vpop.permute.xlu0 %1236
      %1238 = vrot.lane.b32.xlu0 %v1169, 16
      %v1239 = vpop.permute.xlu0 %1238
      %1240 = vrot.lane.b32.xlu0 %v1170, 16
      %v1241 = vpop.permute.xlu0 %1240
      %1242 = vrot.lane.b32.xlu0 %v1171, 16
      %v1243 = vpop.permute.xlu0 %1242
      %1244 = vrot.lane.b32.xlu0 %v1172, 16
      %v1245 = vpop.permute.xlu0 %1244
      %1246 = vrot.lane.b32.xlu0 %v1173, 16
      %v1247 = vpop.permute.xlu0 %1246
      %1248 = vrot.lane.b32.xlu0 %v1174, 16
      %v1249 = vpop.permute.xlu0 %1248
      %1250 = vrot.lane.b32.xlu0 %v1175, 16
      %v1251 = vpop.permute.xlu0 %1250
      %1252 = vrot.lane.b32.xlu0 %v1176, 16
      %v1253 = vpop.permute.xlu0 %1252
      %1254 = vrot.lane.b32.xlu0 %v1177, 16
      %v1255 = vpop.permute.xlu0 %1254
      %1256 = vrot.lane.b32.xlu0 %v1178, 16
      %v1257 = vpop.permute.xlu0 %1256
      %1258 = vrot.lane.b32.xlu0 %v1179, 16
      %v1259 = vpop.permute.xlu0 %1258
      %1260 = vrot.lane.b32.xlu0 %v1180, 16
      %v1261 = vpop.permute.xlu0 %1260
      %1262 = vrot.lane.b32.xlu0 %v1181, 16
      %v1263 = vpop.permute.xlu0 %1262
      %1264 = vrot.lane.b32.xlu0 %v1182, 16
      %v1265 = vpop.permute.xlu0 %1264
      %1266 = vrot.lane.b32.xlu0 %v1183, 16
      %v1267 = vpop.permute.xlu0 %1266
      %1268 = vrot.lane.b32.xlu0 %v1184, 16
      %v1269 = vpop.permute.xlu0 %1268
      %1270 = vrot.lane.b32.xlu0 %v1185, 16
      %v1271 = vpop.permute.xlu0 %1270
      %1272 = vrot.lane.b32.xlu0 %v1186, 16
      %v1273 = vpop.permute.xlu0 %1272
      %1274 = vrot.lane.b32.xlu0 %v1187, 16
      %v1275 = vpop.permute.xlu0 %1274
      %1276 = vrot.lane.b32.xlu0 %v1188, 16
      %v1277 = vpop.permute.xlu0 %1276
      %1278 = vrot.lane.b32.xlu0 %v1189, 16
      %v1279 = vpop.permute.xlu0 %1278
      %1280 = vrot.lane.b32.xlu0 %v1190, 16
      %v1281 = vpop.permute.xlu0 %1280
      %1282 = vrot.lane.b32.xlu0 %v1191, 16
      %v1283 = vpop.permute.xlu0 %1282
      %1284 = vrot.lane.b32.xlu0 %v1192, 16
      %v1285 = vpop.permute.xlu0 %1284
      %1286 = vrot.lane.b32.xlu0 %v1193, 16
      %v1287 = vpop.permute.xlu0 %1286
      %1288 = vrot.lane.b32.xlu0 %v1194, 16
      %v1289 = vpop.permute.xlu0 %1288
      %1290 = vrot.lane.b32.xlu0 %v1195, 16
      %v1291 = vpop.permute.xlu0 %1290
      %vm1324 = vcmask 162944
      %1325 = vst.msk [vmem:[#allocation3] sm:$0xff] %vm1324, %v1229
      %1326 = vst.msk [vmem:[#allocation3 + $0x8] sm:$0xff] %vm1324, %v1231
      %1327 = vst.msk [vmem:[#allocation3 + $0x10] sm:$0xff] %vm1324, %v1233
      %1328 = vst.msk [vmem:[#allocation3 + $0x18] sm:$0xff] %vm1324, %v1235
      %1329 = vst.msk [vmem:[#allocation3 + $0x20] sm:$0xff] %vm1324, %v1237
      %1330 = vst.msk [vmem:[#allocation3 + $0x28] sm:$0xff] %vm1324, %v1239
      %1331 = vst.msk [vmem:[#allocation3 + $0x30] sm:$0xff] %vm1324, %v1241
      %1332 = vst.msk [vmem:[#allocation3 + $0x38] sm:$0xff] %vm1324, %v1243
      %1333 = vst.msk [vmem:[#allocation3 + $0x40] sm:$0xff] %vm1324, %v1245
      %1334 = vst.msk [vmem:[#allocation3 + $0x48] sm:$0xff] %vm1324, %v1247
      %1335 = vst.msk [vmem:[#allocation3 + $0x50] sm:$0xff] %vm1324, %v1249
      %1336 = vst.msk [vmem:[#allocation3 + $0x58] sm:$0xff] %vm1324, %v1251
      %1337 = vst.msk [vmem:[#allocation3 + $0x60] sm:$0xff] %vm1324, %v1253
      %1338 = vst.msk [vmem:[#allocation3 + $0x68] sm:$0xff] %vm1324, %v1255
      %1339 = vst.msk [vmem:[#allocation3 + $0x70] sm:$0xff] %vm1324, %v1257
      %1340 = vst.msk [vmem:[#allocation3 + $0x78] sm:$0xff] %vm1324, %v1259
      %1341 = vst.msk [vmem:[#allocation3 + $0x80] sm:$0xff] %vm1324, %v1261
      %1342 = vst.msk [vmem:[#allocation3 + $0x88] sm:$0xff] %vm1324, %v1263
      %1343 = vst.msk [vmem:[#allocation3 + $0x90] sm:$0xff] %vm1324, %v1265
      %1344 = vst.msk [vmem:[#allocation3 + $0x98] sm:$0xff] %vm1324, %v1267
      %1345 = vst.msk [vmem:[#allocation3 + $0xa0] sm:$0xff] %vm1324, %v1269
      %1346 = vst.msk [vmem:[#allocation3 + $0xa8] sm:$0xff] %vm1324, %v1271
      %1347 = vst.msk [vmem:[#allocation3 + $0xb0] sm:$0xff] %vm1324, %v1273
      %1348 = vst.msk [vmem:[#allocation3 + $0xb8] sm:$0xff] %vm1324, %v1275
      %1349 = vst.msk [vmem:[#allocation3 + $0xc0] sm:$0xff] %vm1324, %v1277
      %1350 = vst.msk [vmem:[#allocation3 + $0xc8] sm:$0xff] %vm1324, %v1279
      %1351 = vst.msk [vmem:[#allocation3 + $0xd0] sm:$0xff] %vm1324, %v1281
      %1352 = vst.msk [vmem:[#allocation3 + $0xd8] sm:$0xff] %vm1324, %v1283
      %1353 = vst.msk [vmem:[#allocation3 + $0xe0] sm:$0xff] %vm1324, %v1285
      %1354 = vst.msk [vmem:[#allocation3 + $0xe8] sm:$0xff] %vm1324, %v1287
      %1355 = vst.msk [vmem:[#allocation3 + $0xf0] sm:$0xff] %vm1324, %v1289
      %1356 = vst.msk [vmem:[#allocation3 + $0xf8] sm:$0xff] %vm1324, %v1291
      %v1357 = vld [vmem:[%s488 + $0x9] sm:$0xff]
      %v1358 = vld [vmem:[%s488 + $0x11] sm:$0xff]
      %v1359 = vld [vmem:[%s488 + $0x29] sm:$0xff]
      %v1360 = vld [vmem:[%s488 + $0x31] sm:$0xff]
      %v1361 = vld [vmem:[%s488 + $0x49] sm:$0xff]
      %v1362 = vld [vmem:[%s488 + $0x51] sm:$0xff]
      %v1363 = vld [vmem:[%s488 + $0x69] sm:$0xff]
      %v1364 = vld [vmem:[%s488 + $0x71] sm:$0xff]
      %v1365 = vld [vmem:[%s488 + $0x89] sm:$0xff]
      %v1366 = vld [vmem:[%s488 + $0x91] sm:$0xff]
      %v1367 = vld [vmem:[%s488 + $0xa9] sm:$0xff]
      %v1368 = vld [vmem:[%s488 + $0xb1] sm:$0xff]
      %v1369 = vld [vmem:[%s488 + $0xc9] sm:$0xff]
      %v1370 = vld [vmem:[%s488 + $0xd1] sm:$0xff]
      %v1371 = vld [vmem:[%s488 + $0xe9] sm:$0xff]
      %v1372 = vld [vmem:[%s488 + $0xf1] sm:$0xff]
      %v1373 = vld [vmem:[%s488 + $0x109] sm:$0xff]
      %v1374 = vld [vmem:[%s488 + $0x111] sm:$0xff]
      %v1375 = vld [vmem:[%s488 + $0x129] sm:$0xff]
      %v1376 = vld [vmem:[%s488 + $0x131] sm:$0xff]
      %v1377 = vld [vmem:[%s488 + $0x149] sm:$0xff]
      %v1378 = vld [vmem:[%s488 + $0x151] sm:$0xff]
      %v1379 = vld [vmem:[%s488 + $0x169] sm:$0xff]
      %v1380 = vld [vmem:[%s488 + $0x171] sm:$0xff]
      %v1381 = vld [vmem:[%s488 + $0x189] sm:$0xff]
      %v1382 = vld [vmem:[%s488 + $0x191] sm:$0xff]
      %v1383 = vld [vmem:[%s488 + $0x1a9] sm:$0xff]
      %v1384 = vld [vmem:[%s488 + $0x1b1] sm:$0xff]
      %v1385 = vld [vmem:[%s488 + $0x1c9] sm:$0xff]
      %v1386 = vld [vmem:[%s488 + $0x1d1] sm:$0xff]
      %v1387 = vld [vmem:[%s488 + $0x1e9] sm:$0xff]
      %v1388 = vld [vmem:[%s488 + $0x1f1] sm:$0xff]
      %1421 = vrot.lane.b32.xlu0 %v1357, 20
      %v1422 = vpop.permute.xlu0 %1421
      %1423 = vrot.lane.b32.xlu0 %v1358, 20
      %v1424 = vpop.permute.xlu0 %1423
      %1425 = vrot.lane.b32.xlu0 %v1359, 20
      %v1426 = vpop.permute.xlu0 %1425
      %1427 = vrot.lane.b32.xlu0 %v1360, 20
      %v1428 = vpop.permute.xlu0 %1427
      %1429 = vrot.lane.b32.xlu0 %v1361, 20
      %v1430 = vpop.permute.xlu0 %1429
      %1431 = vrot.lane.b32.xlu0 %v1362, 20
      %v1432 = vpop.permute.xlu0 %1431
      %1433 = vrot.lane.b32.xlu0 %v1363, 20
      %v1434 = vpop.permute.xlu0 %1433
      %1435 = vrot.lane.b32.xlu0 %v1364, 20
      %v1436 = vpop.permute.xlu0 %1435
      %1437 = vrot.lane.b32.xlu0 %v1365, 20
      %v1438 = vpop.permute.xlu0 %1437
      %1439 = vrot.lane.b32.xlu0 %v1366, 20
      %v1440 = vpop.permute.xlu0 %1439
      %1441 = vrot.lane.b32.xlu0 %v1367, 20
      %v1442 = vpop.permute.xlu0 %1441
      %1443 = vrot.lane.b32.xlu0 %v1368, 20
      %v1444 = vpop.permute.xlu0 %1443
      %1445 = vrot.lane.b32.xlu0 %v1369, 20
      %v1446 = vpop.permute.xlu0 %1445
      %1447 = vrot.lane.b32.xlu0 %v1370, 20
      %v1448 = vpop.permute.xlu0 %1447
      %1449 = vrot.lane.b32.xlu0 %v1371, 20
      %v1450 = vpop.permute.xlu0 %1449
      %1451 = vrot.lane.b32.xlu0 %v1372, 20
      %v1452 = vpop.permute.xlu0 %1451
      %1453 = vrot.lane.b32.xlu0 %v1373, 20
      %v1454 = vpop.permute.xlu0 %1453
      %1455 = vrot.lane.b32.xlu0 %v1374, 20
      %v1456 = vpop.permute.xlu0 %1455
      %1457 = vrot.lane.b32.xlu0 %v1375, 20
      %v1458 = vpop.permute.xlu0 %1457
      %1459 = vrot.lane.b32.xlu0 %v1376, 20
      %v1460 = vpop.permute.xlu0 %1459
      %1461 = vrot.lane.b32.xlu0 %v1377, 20
      %v1462 = vpop.permute.xlu0 %1461
      %1463 = vrot.lane.b32.xlu0 %v1378, 20
      %v1464 = vpop.permute.xlu0 %1463
      %1465 = vrot.lane.b32.xlu0 %v1379, 20
      %v1466 = vpop.permute.xlu0 %1465
      %1467 = vrot.lane.b32.xlu0 %v1380, 20
      %v1468 = vpop.permute.xlu0 %1467
      %1469 = vrot.lane.b32.xlu0 %v1381, 20
      %v1470 = vpop.permute.xlu0 %1469
      %1471 = vrot.lane.b32.xlu0 %v1382, 20
      %v1472 = vpop.permute.xlu0 %1471
      %1473 = vrot.lane.b32.xlu0 %v1383, 20
      %v1474 = vpop.permute.xlu0 %1473
      %1475 = vrot.lane.b32.xlu0 %v1384, 20
      %v1476 = vpop.permute.xlu0 %1475
      %1477 = vrot.lane.b32.xlu0 %v1385, 20
      %v1478 = vpop.permute.xlu0 %1477
      %1479 = vrot.lane.b32.xlu0 %v1386, 20
      %v1480 = vpop.permute.xlu0 %1479
      %1481 = vrot.lane.b32.xlu0 %v1387, 20
      %v1482 = vpop.permute.xlu0 %1481
      %1483 = vrot.lane.b32.xlu0 %v1388, 20
      %v1484 = vpop.permute.xlu0 %1483
      %vm1517 = vcmask 195744
      %1518 = vst.msk [vmem:[#allocation3] sm:$0xff] %vm1517, %v1422
      %1519 = vst.msk [vmem:[#allocation3 + $0x8] sm:$0xff] %vm1517, %v1424
      %1520 = vst.msk [vmem:[#allocation3 + $0x10] sm:$0xff] %vm1517, %v1426
      %1521 = vst.msk [vmem:[#allocation3 + $0x18] sm:$0xff] %vm1517, %v1428
      %1522 = vst.msk [vmem:[#allocation3 + $0x20] sm:$0xff] %vm1517, %v1430
      %1523 = vst.msk [vmem:[#allocation3 + $0x28] sm:$0xff] %vm1517, %v1432
      %1524 = vst.msk [vmem:[#allocation3 + $0x30] sm:$0xff] %vm1517, %v1434
      %1525 = vst.msk [vmem:[#allocation3 + $0x38] sm:$0xff] %vm1517, %v1436
      %1526 = vst.msk [vmem:[#allocation3 + $0x40] sm:$0xff] %vm1517, %v1438
      %1527 = vst.msk [vmem:[#allocation3 + $0x48] sm:$0xff] %vm1517, %v1440
      %1528 = vst.msk [vmem:[#allocation3 + $0x50] sm:$0xff] %vm1517, %v1442
      %1529 = vst.msk [vmem:[#allocation3 + $0x58] sm:$0xff] %vm1517, %v1444
      %1530 = vst.msk [vmem:[#allocation3 + $0x60] sm:$0xff] %vm1517, %v1446
      %1531 = vst.msk [vmem:[#allocation3 + $0x68] sm:$0xff] %vm1517, %v1448
      %1532 = vst.msk [vmem:[#allocation3 + $0x70] sm:$0xff] %vm1517, %v1450
      %1533 = vst.msk [vmem:[#allocation3 + $0x78] sm:$0xff] %vm1517, %v1452
      %1534 = vst.msk [vmem:[#allocation3 + $0x80] sm:$0xff] %vm1517, %v1454
      %1535 = vst.msk [vmem:[#allocation3 + $0x88] sm:$0xff] %vm1517, %v1456
      %1536 = vst.msk [vmem:[#allocation3 + $0x90] sm:$0xff] %vm1517, %v1458
      %1537 = vst.msk [vmem:[#allocation3 + $0x98] sm:$0xff] %vm1517, %v1460
      %1538 = vst.msk [vmem:[#allocation3 + $0xa0] sm:$0xff] %vm1517, %v1462
      %1539 = vst.msk [vmem:[#allocation3 + $0xa8] sm:$0xff] %vm1517, %v1464
      %1540 = vst.msk [vmem:[#allocation3 + $0xb0] sm:$0xff] %vm1517, %v1466
      %1541 = vst.msk [vmem:[#allocation3 + $0xb8] sm:$0xff] %vm1517, %v1468
      %1542 = vst.msk [vmem:[#allocation3 + $0xc0] sm:$0xff] %vm1517, %v1470
      %1543 = vst.msk [vmem:[#allocation3 + $0xc8] sm:$0xff] %vm1517, %v1472
      %1544 = vst.msk [vmem:[#allocation3 + $0xd0] sm:$0xff] %vm1517, %v1474
      %1545 = vst.msk [vmem:[#allocation3 + $0xd8] sm:$0xff] %vm1517, %v1476
      %1546 = vst.msk [vmem:[#allocation3 + $0xe0] sm:$0xff] %vm1517, %v1478
      %1547 = vst.msk [vmem:[#allocation3 + $0xe8] sm:$0xff] %vm1517, %v1480
      %1548 = vst.msk [vmem:[#allocation3 + $0xf0] sm:$0xff] %vm1517, %v1482
      %1549 = vst.msk [vmem:[#allocation3 + $0xf8] sm:$0xff] %vm1517, %v1484
      %s1550 = scalar_lea.vmem [#allocation2], 64
      %v1551 = vld [vmem:[%s1550 + $0x7] sm:$0xff]
      %v1552 = vld [vmem:[%s1550 + $0xf] sm:$0xff]
      %v1553 = vld [vmem:[%s1550 + $0x27] sm:$0xff]
      %v1554 = vld [vmem:[%s1550 + $0x2f] sm:$0xff]
      %v1555 = vld [vmem:[%s1550 + $0x47] sm:$0xff]
      %v1556 = vld [vmem:[%s1550 + $0x4f] sm:$0xff]
      %v1557 = vld [vmem:[%s1550 + $0x67] sm:$0xff]
      %v1558 = vld [vmem:[%s1550 + $0x6f] sm:$0xff]
      %v1559 = vld [vmem:[%s1550 + $0x87] sm:$0xff]
      %v1560 = vld [vmem:[%s1550 + $0x8f] sm:$0xff]
      %v1561 = vld [vmem:[%s1550 + $0xa7] sm:$0xff]
      %v1562 = vld [vmem:[%s1550 + $0xaf] sm:$0xff]
      %v1563 = vld [vmem:[%s1550 + $0xc7] sm:$0xff]
      %v1564 = vld [vmem:[%s1550 + $0xcf] sm:$0xff]
      %v1565 = vld [vmem:[%s1550 + $0xe7] sm:$0xff]
      %v1566 = vld [vmem:[%s1550 + $0xef] sm:$0xff]
      %v1567 = vld [vmem:[%s1550 + $0x107] sm:$0xff]
      %v1568 = vld [vmem:[%s1550 + $0x10f] sm:$0xff]
      %v1569 = vld [vmem:[%s1550 + $0x127] sm:$0xff]
      %v1570 = vld [vmem:[%s1550 + $0x12f] sm:$0xff]
      %v1571 = vld [vmem:[%s1550 + $0x147] sm:$0xff]
      %v1572 = vld [vmem:[%s1550 + $0x14f] sm:$0xff]
      %v1573 = vld [vmem:[%s1550 + $0x167] sm:$0xff]
      %v1574 = vld [vmem:[%s1550 + $0x16f] sm:$0xff]
      %v1575 = vld [vmem:[%s1550 + $0x187] sm:$0xff]
      %v1576 = vld [vmem:[%s1550 + $0x18f] sm:$0xff]
      %v1577 = vld [vmem:[%s1550 + $0x1a7] sm:$0xff]
      %v1578 = vld [vmem:[%s1550 + $0x1af] sm:$0xff]
      %v1579 = vld [vmem:[%s1550 + $0x1c7] sm:$0xff]
      %v1580 = vld [vmem:[%s1550 + $0x1cf] sm:$0xff]
      %v1581 = vld [vmem:[%s1550 + $0x1e7] sm:$0xff]
      %v1582 = vld [vmem:[%s1550 + $0x1ef] sm:$0xff]
      %1615 = vrot.lane.b32.xlu0 %v1551, 24
      %v1616 = vpop.permute.xlu0 %1615
      %1617 = vrot.lane.b32.xlu0 %v1552, 24
      %v1618 = vpop.permute.xlu0 %1617
      %1619 = vrot.lane.b32.xlu0 %v1553, 24
      %v1620 = vpop.permute.xlu0 %1619
      %1621 = vrot.lane.b32.xlu0 %v1554, 24
      %v1622 = vpop.permute.xlu0 %1621
      %1623 = vrot.lane.b32.xlu0 %v1555, 24
      %v1624 = vpop.permute.xlu0 %1623
      %1625 = vrot.lane.b32.xlu0 %v1556, 24
      %v1626 = vpop.permute.xlu0 %1625
      %1627 = vrot.lane.b32.xlu0 %v1557, 24
      %v1628 = vpop.permute.xlu0 %1627
      %1629 = vrot.lane.b32.xlu0 %v1558, 24
      %v1630 = vpop.permute.xlu0 %1629
      %1631 = vrot.lane.b32.xlu0 %v1559, 24
      %v1632 = vpop.permute.xlu0 %1631
      %1633 = vrot.lane.b32.xlu0 %v1560, 24
      %v1634 = vpop.permute.xlu0 %1633
      %1635 = vrot.lane.b32.xlu0 %v1561, 24
      %v1636 = vpop.permute.xlu0 %1635
      %1637 = vrot.lane.b32.xlu0 %v1562, 24
      %v1638 = vpop.permute.xlu0 %1637
      %1639 = vrot.lane.b32.xlu0 %v1563, 24
      %v1640 = vpop.permute.xlu0 %1639
      %1641 = vrot.lane.b32.xlu0 %v1564, 24
      %v1642 = vpop.permute.xlu0 %1641
      %1643 = vrot.lane.b32.xlu0 %v1565, 24
      %v1644 = vpop.permute.xlu0 %1643
      %1645 = vrot.lane.b32.xlu0 %v1566, 24
      %v1646 = vpop.permute.xlu0 %1645
      %1647 = vrot.lane.b32.xlu0 %v1567, 24
      %v1648 = vpop.permute.xlu0 %1647
      %1649 = vrot.lane.b32.xlu0 %v1568, 24
      %v1650 = vpop.permute.xlu0 %1649
      %1651 = vrot.lane.b32.xlu0 %v1569, 24
      %v1652 = vpop.permute.xlu0 %1651
      %1653 = vrot.lane.b32.xlu0 %v1570, 24
      %v1654 = vpop.permute.xlu0 %1653
      %1655 = vrot.lane.b32.xlu0 %v1571, 24
      %v1656 = vpop.permute.xlu0 %1655
      %1657 = vrot.lane.b32.xlu0 %v1572, 24
      %v1658 = vpop.permute.xlu0 %1657
      %1659 = vrot.lane.b32.xlu0 %v1573, 24
      %v1660 = vpop.permute.xlu0 %1659
      %1661 = vrot.lane.b32.xlu0 %v1574, 24
      %v1662 = vpop.permute.xlu0 %1661
      %1663 = vrot.lane.b32.xlu0 %v1575, 24
      %v1664 = vpop.permute.xlu0 %1663
      %1665 = vrot.lane.b32.xlu0 %v1576, 24
      %v1666 = vpop.permute.xlu0 %1665
      %1667 = vrot.lane.b32.xlu0 %v1577, 24
      %v1668 = vpop.permute.xlu0 %1667
      %1669 = vrot.lane.b32.xlu0 %v1578, 24
      %v1670 = vpop.permute.xlu0 %1669
      %1671 = vrot.lane.b32.xlu0 %v1579, 24
      %v1672 = vpop.permute.xlu0 %1671
      %1673 = vrot.lane.b32.xlu0 %v1580, 24
      %v1674 = vpop.permute.xlu0 %1673
      %1675 = vrot.lane.b32.xlu0 %v1581, 24
      %v1676 = vpop.permute.xlu0 %1675
      %1677 = vrot.lane.b32.xlu0 %v1582, 24
      %v1678 = vpop.permute.xlu0 %1677
      %vm1711 = vcmask 228544
      %1712 = vst.msk [vmem:[#allocation3] sm:$0xff] %vm1711, %v1616
      %1713 = vst.msk [vmem:[#allocation3 + $0x8] sm:$0xff] %vm1711, %v1618
      %1714 = vst.msk [vmem:[#allocation3 + $0x10] sm:$0xff] %vm1711, %v1620
      %1715 = vst.msk [vmem:[#allocation3 + $0x18] sm:$0xff] %vm1711, %v1622
      %1716 = vst.msk [vmem:[#allocation3 + $0x20] sm:$0xff] %vm1711, %v1624
      %1717 = vst.msk [vmem:[#allocation3 + $0x28] sm:$0xff] %vm1711, %v1626
      %1718 = vst.msk [vmem:[#allocation3 + $0x30] sm:$0xff] %vm1711, %v1628
      %1719 = vst.msk [vmem:[#allocation3 + $0x38] sm:$0xff] %vm1711, %v1630
      %1720 = vst.msk [vmem:[#allocation3 + $0x40] sm:$0xff] %vm1711, %v1632
      %1721 = vst.msk [vmem:[#allocation3 + $0x48] sm:$0xff] %vm1711, %v1634
      %1722 = vst.msk [vmem:[#allocation3 + $0x50] sm:$0xff] %vm1711, %v1636
      %1723 = vst.msk [vmem:[#allocation3 + $0x58] sm:$0xff] %vm1711, %v1638
      %1724 = vst.msk [vmem:[#allocation3 + $0x60] sm:$0xff] %vm1711, %v1640
      %1725 = vst.msk [vmem:[#allocation3 + $0x68] sm:$0xff] %vm1711, %v1642
      %1726 = vst.msk [vmem:[#allocation3 + $0x70] sm:$0xff] %vm1711, %v1644
      %1727 = vst.msk [vmem:[#allocation3 + $0x78] sm:$0xff] %vm1711, %v1646
      %1728 = vst.msk [vmem:[#allocation3 + $0x80] sm:$0xff] %vm1711, %v1648
      %1729 = vst.msk [vmem:[#allocation3 + $0x88] sm:$0xff] %vm1711, %v1650
      %1730 = vst.msk [vmem:[#allocation3 + $0x90] sm:$0xff] %vm1711, %v1652
      %1731 = vst.msk [vmem:[#allocation3 + $0x98] sm:$0xff] %vm1711, %v1654
      %1732 = vst.msk [vmem:[#allocation3 + $0xa0] sm:$0xff] %vm1711, %v1656
      %1733 = vst.msk [vmem:[#allocation3 + $0xa8] sm:$0xff] %vm1711, %v1658
      %1734 = vst.msk [vmem:[#allocation3 + $0xb0] sm:$0xff] %vm1711, %v1660
      %1735 = vst.msk [vmem:[#allocation3 + $0xb8] sm:$0xff] %vm1711, %v1662
      %1736 = vst.msk [vmem:[#allocation3 + $0xc0] sm:$0xff] %vm1711, %v1664
      %1737 = vst.msk [vmem:[#allocation3 + $0xc8] sm:$0xff] %vm1711, %v1666
      %1738 = vst.msk [vmem:[#allocation3 + $0xd0] sm:$0xff] %vm1711, %v1668
      %1739 = vst.msk [vmem:[#allocation3 + $0xd8] sm:$0xff] %vm1711, %v1670
      %1740 = vst.msk [vmem:[#allocation3 + $0xe0] sm:$0xff] %vm1711, %v1672
      %1741 = vst.msk [vmem:[#allocation3 + $0xe8] sm:$0xff] %vm1711, %v1674
      %1742 = vst.msk [vmem:[#allocation3 + $0xf0] sm:$0xff] %vm1711, %v1676
      %1743 = vst.msk [vmem:[#allocation3 + $0xf8] sm:$0xff] %vm1711, %v1678
      %v1744 = vld [vmem:[%s1550 + $0x8] sm:$0xff]
      %v1745 = vld [vmem:[%s1550 + $0x10] sm:$0xff]
      %v1746 = vld [vmem:[%s1550 + $0x28] sm:$0xff]
      %v1747 = vld [vmem:[%s1550 + $0x30] sm:$0xff]
      %v1748 = vld [vmem:[%s1550 + $0x48] sm:$0xff]
      %v1749 = vld [vmem:[%s1550 + $0x50] sm:$0xff]
      %v1750 = vld [vmem:[%s1550 + $0x68] sm:$0xff]
      %v1751 = vld [vmem:[%s1550 + $0x70] sm:$0xff]
      %v1752 = vld [vmem:[%s1550 + $0x88] sm:$0xff]
      %v1753 = vld [vmem:[%s1550 + $0x90] sm:$0xff]
      %v1754 = vld [vmem:[%s1550 + $0xa8] sm:$0xff]
      %v1755 = vld [vmem:[%s1550 + $0xb0] sm:$0xff]
      %v1756 = vld [vmem:[%s1550 + $0xc8] sm:$0xff]
      %v1757 = vld [vmem:[%s1550 + $0xd0] sm:$0xff]
      %v1758 = vld [vmem:[%s1550 + $0xe8] sm:$0xff]
      %v1759 = vld [vmem:[%s1550 + $0xf0] sm:$0xff]
      %v1760 = vld [vmem:[%s1550 + $0x108] sm:$0xff]
      %v1761 = vld [vmem:[%s1550 + $0x110] sm:$0xff]
      %v1762 = vld [vmem:[%s1550 + $0x128] sm:$0xff]
      %v1763 = vld [vmem:[%s1550 + $0x130] sm:$0xff]
      %v1764 = vld [vmem:[%s1550 + $0x148] sm:$0xff]
      %v1765 = vld [vmem:[%s1550 + $0x150] sm:$0xff]
      %v1766 = vld [vmem:[%s1550 + $0x168] sm:$0xff]
      %v1767 = vld [vmem:[%s1550 + $0x170] sm:$0xff]
      %v1768 = vld [vmem:[%s1550 + $0x188] sm:$0xff]
      %v1769 = vld [vmem:[%s1550 + $0x190] sm:$0xff]
      %v1770 = vld [vmem:[%s1550 + $0x1a8] sm:$0xff]
      %v1771 = vld [vmem:[%s1550 + $0x1b0] sm:$0xff]
      %v1772 = vld [vmem:[%s1550 + $0x1c8] sm:$0xff]
      %v1773 = vld [vmem:[%s1550 + $0x1d0] sm:$0xff]
      %v1774 = vld [vmem:[%s1550 + $0x1e8] sm:$0xff]
      %v1775 = vld [vmem:[%s1550 + $0x1f0] sm:$0xff]
      %1808 = vrot.lane.b32.xlu0 %v1744, 28
      %v1809 = vpop.permute.xlu0 %1808
      %1810 = vrot.lane.b32.xlu0 %v1745, 28
      %v1811 = vpop.permute.xlu0 %1810
      %1812 = vrot.lane.b32.xlu0 %v1746, 28
      %v1813 = vpop.permute.xlu0 %1812
      %1814 = vrot.lane.b32.xlu0 %v1747, 28
      %v1815 = vpop.permute.xlu0 %1814
      %1816 = vrot.lane.b32.xlu0 %v1748, 28
      %v1817 = vpop.permute.xlu0 %1816
      %1818 = vrot.lane.b32.xlu0 %v1749, 28
      %v1819 = vpop.permute.xlu0 %1818
      %1820 = vrot.lane.b32.xlu0 %v1750, 28
      %v1821 = vpop.permute.xlu0 %1820
      %1822 = vrot.lane.b32.xlu0 %v1751, 28
      %v1823 = vpop.permute.xlu0 %1822
      %1824 = vrot.lane.b32.xlu0 %v1752, 28
      %v1825 = vpop.permute.xlu0 %1824
      %1826 = vrot.lane.b32.xlu0 %v1753, 28
      %v1827 = vpop.permute.xlu0 %1826
      %1828 = vrot.lane.b32.xlu0 %v1754, 28
      %v1829 = vpop.permute.xlu0 %1828
      %1830 = vrot.lane.b32.xlu0 %v1755, 28
      %v1831 = vpop.permute.xlu0 %1830
      %1832 = vrot.lane.b32.xlu0 %v1756, 28
      %v1833 = vpop.permute.xlu0 %1832
      %1834 = vrot.lane.b32.xlu0 %v1757, 28
      %v1835 = vpop.permute.xlu0 %1834
      %1836 = vrot.lane.b32.xlu0 %v1758, 28
      %v1837 = vpop.permute.xlu0 %1836
      %1838 = vrot.lane.b32.xlu0 %v1759, 28
      %v1839 = vpop.permute.xlu0 %1838
      %1840 = vrot.lane.b32.xlu0 %v1760, 28
      %v1841 = vpop.permute.xlu0 %1840
      %1842 = vrot.lane.b32.xlu0 %v1761, 28
      %v1843 = vpop.permute.xlu0 %1842
      %1844 = vrot.lane.b32.xlu0 %v1762, 28
      %v1845 = vpop.permute.xlu0 %1844
      %1846 = vrot.lane.b32.xlu0 %v1763, 28
      %v1847 = vpop.permute.xlu0 %1846
      %1848 = vrot.lane.b32.xlu0 %v1764, 28
      %v1849 = vpop.permute.xlu0 %1848
      %1850 = vrot.lane.b32.xlu0 %v1765, 28
      %v1851 = vpop.permute.xlu0 %1850
      %1852 = vrot.lane.b32.xlu0 %v1766, 28
      %v1853 = vpop.permute.xlu0 %1852
      %1854 = vrot.lane.b32.xlu0 %v1767, 28
      %v1855 = vpop.permute.xlu0 %1854
      %1856 = vrot.lane.b32.xlu0 %v1768, 28
      %v1857 = vpop.permute.xlu0 %1856
      %1858 = vrot.lane.b32.xlu0 %v1769, 28
      %v1859 = vpop.permute.xlu0 %1858
      %1860 = vrot.lane.b32.xlu0 %v1770, 28
      %v1861 = vpop.permute.xlu0 %1860
      %1862 = vrot.lane.b32.xlu0 %v1771, 28
      %v1863 = vpop.permute.xlu0 %1862
      %1864 = vrot.lane.b32.xlu0 %v1772, 28
      %v1865 = vpop.permute.xlu0 %1864
      %1866 = vrot.lane.b32.xlu0 %v1773, 28
      %v1867 = vpop.permute.xlu0 %1866
      %1868 = vrot.lane.b32.xlu0 %v1774, 28
      %v1869 = vpop.permute.xlu0 %1868
      %1870 = vrot.lane.b32.xlu0 %v1775, 28
      %v1871 = vpop.permute.xlu0 %1870
      %vm1904 = vcmask 261344
      %1905 = vst.msk [vmem:[#allocation3] sm:$0xff] %vm1904, %v1809
      %1906 = vst.msk [vmem:[#allocation3 + $0x8] sm:$0xff] %vm1904, %v1811
      %1907 = vst.msk [vmem:[#allocation3 + $0x10] sm:$0xff] %vm1904, %v1813
      %1908 = vst.msk [vmem:[#allocation3 + $0x18] sm:$0xff] %vm1904, %v1815
      %1909 = vst.msk [vmem:[#allocation3 + $0x20] sm:$0xff] %vm1904, %v1817
      %1910 = vst.msk [vmem:[#allocation3 + $0x28] sm:$0xff] %vm1904, %v1819
      %1911 = vst.msk [vmem:[#allocation3 + $0x30] sm:$0xff] %vm1904, %v1821
      %1912 = vst.msk [vmem:[#allocation3 + $0x38] sm:$0xff] %vm1904, %v1823
      %1913 = vst.msk [vmem:[#allocation3 + $0x40] sm:$0xff] %vm1904, %v1825
      %1914 = vst.msk [vmem:[#allocation3 + $0x48] sm:$0xff] %vm1904, %v1827
      %1915 = vst.msk [vmem:[#allocation3 + $0x50] sm:$0xff] %vm1904, %v1829
      %1916 = vst.msk [vmem:[#allocation3 + $0x58] sm:$0xff] %vm1904, %v1831
      %1917 = vst.msk [vmem:[#allocation3 + $0x60] sm:$0xff] %vm1904, %v1833
      %1918 = vst.msk [vmem:[#allocation3 + $0x68] sm:$0xff] %vm1904, %v1835
      %1919 = vst.msk [vmem:[#allocation3 + $0x70] sm:$0xff] %vm1904, %v1837
      %1920 = vst.msk [vmem:[#allocation3 + $0x78] sm:$0xff] %vm1904, %v1839
      %1921 = vst.msk [vmem:[#allocation3 + $0x80] sm:$0xff] %vm1904, %v1841
      %1922 = vst.msk [vmem:[#allocation3 + $0x88] sm:$0xff] %vm1904, %v1843
      %1923 = vst.msk [vmem:[#allocation3 + $0x90] sm:$0xff] %vm1904, %v1845
      %1924 = vst.msk [vmem:[#allocation3 + $0x98] sm:$0xff] %vm1904, %v1847
      %1925 = vst.msk [vmem:[#allocation3 + $0xa0] sm:$0xff] %vm1904, %v1849
      %1926 = vst.msk [vmem:[#allocation3 + $0xa8] sm:$0xff] %vm1904, %v1851
      %1927 = vst.msk [vmem:[#allocation3 + $0xb0] sm:$0xff] %vm1904, %v1853
      %1928 = vst.msk [vmem:[#allocation3 + $0xb8] sm:$0xff] %vm1904, %v1855
      %1929 = vst.msk [vmem:[#allocation3 + $0xc0] sm:$0xff] %vm1904, %v1857
      %1930 = vst.msk [vmem:[#allocation3 + $0xc8] sm:$0xff] %vm1904, %v1859
      %1931 = vst.msk [vmem:[#allocation3 + $0xd0] sm:$0xff] %vm1904, %v1861
      %1932 = vst.msk [vmem:[#allocation3 + $0xd8] sm:$0xff] %vm1904, %v1863
      %1933 = vst.msk [vmem:[#allocation3 + $0xe0] sm:$0xff] %vm1904, %v1865
      %1934 = vst.msk [vmem:[#allocation3 + $0xe8] sm:$0xff] %vm1904, %v1867
      %1935 = vst.msk [vmem:[#allocation3 + $0xf0] sm:$0xff] %vm1904, %v1869
      %1936 = vst.msk [vmem:[#allocation3 + $0xf8] sm:$0xff] %vm1904, %v1871
      %v1937 = vld [vmem:[%s1550 + $0x9] sm:$0xff]
      %v1938 = vld [vmem:[%s1550 + $0x11] sm:$0xff]
      %v1939 = vld [vmem:[%s1550 + $0x29] sm:$0xff]
      %v1940 = vld [vmem:[%s1550 + $0x31] sm:$0xff]
      %v1941 = vld [vmem:[%s1550 + $0x49] sm:$0xff]
      %v1942 = vld [vmem:[%s1550 + $0x51] sm:$0xff]
      %v1943 = vld [vmem:[%s1550 + $0x69] sm:$0xff]
      %v1944 = vld [vmem:[%s1550 + $0x71] sm:$0xff]
      %v1945 = vld [vmem:[%s1550 + $0x89] sm:$0xff]
      %v1946 = vld [vmem:[%s1550 + $0x91] sm:$0xff]
      %v1947 = vld [vmem:[%s1550 + $0xa9] sm:$0xff]
      %v1948 = vld [vmem:[%s1550 + $0xb1] sm:$0xff]
      %v1949 = vld [vmem:[%s1550 + $0xc9] sm:$0xff]
      %v1950 = vld [vmem:[%s1550 + $0xd1] sm:$0xff]
      %v1951 = vld [vmem:[%s1550 + $0xe9] sm:$0xff]
      %v1952 = vld [vmem:[%s1550 + $0xf1] sm:$0xff]
      %v1953 = vld [vmem:[%s1550 + $0x109] sm:$0xff]
      %v1954 = vld [vmem:[%s1550 + $0x111] sm:$0xff]
      %v1955 = vld [vmem:[%s1550 + $0x129] sm:$0xff]
      %v1956 = vld [vmem:[%s1550 + $0x131] sm:$0xff]
      %v1957 = vld [vmem:[%s1550 + $0x149] sm:$0xff]
      %v1958 = vld [vmem:[%s1550 + $0x151] sm:$0xff]
      %v1959 = vld [vmem:[%s1550 + $0x169] sm:$0xff]
      %v1960 = vld [vmem:[%s1550 + $0x171] sm:$0xff]
      %v1961 = vld [vmem:[%s1550 + $0x189] sm:$0xff]
      %v1962 = vld [vmem:[%s1550 + $0x191] sm:$0xff]
      %v1963 = vld [vmem:[%s1550 + $0x1a9] sm:$0xff]
      %v1964 = vld [vmem:[%s1550 + $0x1b1] sm:$0xff]
      %v1965 = vld [vmem:[%s1550 + $0x1c9] sm:$0xff]
      %v1966 = vld [vmem:[%s1550 + $0x1d1] sm:$0xff]
      %v1967 = vld [vmem:[%s1550 + $0x1e9] sm:$0xff]
      %v1968 = vld [vmem:[%s1550 + $0x1f1] sm:$0xff]
      %2001 = vrot.lane.b32.xlu0 %v1937, 32
      %v2002 = vpop.permute.xlu0 %2001
      %2003 = vrot.lane.b32.xlu0 %v1938, 32
      %v2004 = vpop.permute.xlu0 %2003
      %2005 = vrot.lane.b32.xlu0 %v1939, 32
      %v2006 = vpop.permute.xlu0 %2005
      %2007 = vrot.lane.b32.xlu0 %v1940, 32
      %v2008 = vpop.permute.xlu0 %2007
      %2009 = vrot.lane.b32.xlu0 %v1941, 32
      %v2010 = vpop.permute.xlu0 %2009
      %2011 = vrot.lane.b32.xlu0 %v1942, 32
      %v2012 = vpop.permute.xlu0 %2011
      %2013 = vrot.lane.b32.xlu0 %v1943, 32
      %v2014 = vpop.permute.xlu0 %2013
      %2015 = vrot.lane.b32.xlu0 %v1944, 32
      %v2016 = vpop.permute.xlu0 %2015
      %2017 = vrot.lane.b32.xlu0 %v1945, 32
      %v2018 = vpop.permute.xlu0 %2017
      %2019 = vrot.lane.b32.xlu0 %v1946, 32
      %v2020 = vpop.permute.xlu0 %2019
      %2021 = vrot.lane.b32.xlu0 %v1947, 32
      %v2022 = vpop.permute.xlu0 %2021
      %2023 = vrot.lane.b32.xlu0 %v1948, 32
      %v2024 = vpop.permute.xlu0 %2023
      %2025 = vrot.lane.b32.xlu0 %v1949, 32
      %v2026 = vpop.permute.xlu0 %2025
      %2027 = vrot.lane.b32.xlu0 %v1950, 32
      %v2028 = vpop.permute.xlu0 %2027
      %2029 = vrot.lane.b32.xlu0 %v1951, 32
      %v2030 = vpop.permute.xlu0 %2029
      %2031 = vrot.lane.b32.xlu0 %v1952, 32
      %v2032 = vpop.permute.xlu0 %2031
      %2033 = vrot.lane.b32.xlu0 %v1953, 32
      %v2034 = vpop.permute.xlu0 %2033
      %2035 = vrot.lane.b32.xlu0 %v1954, 32
      %v2036 = vpop.permute.xlu0 %2035
      %2037 = vrot.lane.b32.xlu0 %v1955, 32
      %v2038 = vpop.permute.xlu0 %2037
      %2039 = vrot.lane.b32.xlu0 %v1956, 32
      %v2040 = vpop.permute.xlu0 %2039
      %2041 = vrot.lane.b32.xlu0 %v1957, 32
      %v2042 = vpop.permute.xlu0 %2041
      %2043 = vrot.lane.b32.xlu0 %v1958, 32
      %v2044 = vpop.permute.xlu0 %2043
      %2045 = vrot.lane.b32.xlu0 %v1959, 32
      %v2046 = vpop.permute.xlu0 %2045
      %2047 = vrot.lane.b32.xlu0 %v1960, 32
      %v2048 = vpop.permute.xlu0 %2047
      %2049 = vrot.lane.b32.xlu0 %v1961, 32
      %v2050 = vpop.permute.xlu0 %2049
      %2051 = vrot.lane.b32.xlu0 %v1962, 32
      %v2052 = vpop.permute.xlu0 %2051
      %2053 = vrot.lane.b32.xlu0 %v1963, 32
      %v2054 = vpop.permute.xlu0 %2053
      %2055 = vrot.lane.b32.xlu0 %v1964, 32
      %v2056 = vpop.permute.xlu0 %2055
      %2057 = vrot.lane.b32.xlu0 %v1965, 32
      %v2058 = vpop.permute.xlu0 %2057
      %2059 = vrot.lane.b32.xlu0 %v1966, 32
      %v2060 = vpop.permute.xlu0 %2059
      %2061 = vrot.lane.b32.xlu0 %v1967, 32
      %v2062 = vpop.permute.xlu0 %2061
      %2063 = vrot.lane.b32.xlu0 %v1968, 32
      %v2064 = vpop.permute.xlu0 %2063
      %vm2097 = vcmask 294144
      %2098 = vst.msk [vmem:[#allocation3] sm:$0xff] %vm2097, %v2002
      %2099 = vst.msk [vmem:[#allocation3 + $0x8] sm:$0xff] %vm2097, %v2004
      %2100 = vst.msk [vmem:[#allocation3 + $0x10] sm:$0xff] %vm2097, %v2006
      %2101 = vst.msk [vmem:[#allocation3 + $0x18] sm:$0xff] %vm2097, %v2008
      %2102 = vst.msk [vmem:[#allocation3 + $0x20] sm:$0xff] %vm2097, %v2010
      %2103 = vst.msk [vmem:[#allocation3 + $0x28] sm:$0xff] %vm2097, %v2012
      %2104 = vst.msk [vmem:[#allocation3 + $0x30] sm:$0xff] %vm2097, %v2014
      %2105 = vst.msk [vmem:[#allocation3 + $0x38] sm:$0xff] %vm2097, %v2016
      %2106 = vst.msk [vmem:[#allocation3 + $0x40] sm:$0xff] %vm2097, %v2018
      %2107 = vst.msk [vmem:[#allocation3 + $0x48] sm:$0xff] %vm2097, %v2020
      %2108 = vst.msk [vmem:[#allocation3 + $0x50] sm:$0xff] %vm2097, %v2022
      %2109 = vst.msk [vmem:[#allocation3 + $0x58] sm:$0xff] %vm2097, %v2024
      %2110 = vst.msk [vmem:[#allocation3 + $0x60] sm:$0xff] %vm2097, %v2026
      %2111 = vst.msk [vmem:[#allocation3 + $0x68] sm:$0xff] %vm2097, %v2028
      %2112 = vst.msk [vmem:[#allocation3 + $0x70] sm:$0xff] %vm2097, %v2030
      %2113 = vst.msk [vmem:[#allocation3 + $0x78] sm:$0xff] %vm2097, %v2032
      %2114 = vst.msk [vmem:[#allocation3 + $0x80] sm:$0xff] %vm2097, %v2034
      %2115 = vst.msk [vmem:[#allocation3 + $0x88] sm:$0xff] %vm2097, %v2036
      %2116 = vst.msk [vmem:[#allocation3 + $0x90] sm:$0xff] %vm2097, %v2038
      %2117 = vst.msk [vmem:[#allocation3 + $0x98] sm:$0xff] %vm2097, %v2040
      %2118 = vst.msk [vmem:[#allocation3 + $0xa0] sm:$0xff] %vm2097, %v2042
      %2119 = vst.msk [vmem:[#allocation3 + $0xa8] sm:$0xff] %vm2097, %v2044
      %2120 = vst.msk [vmem:[#allocation3 + $0xb0] sm:$0xff] %vm2097, %v2046
      %2121 = vst.msk [vmem:[#allocation3 + $0xb8] sm:$0xff] %vm2097, %v2048
      %2122 = vst.msk [vmem:[#allocation3 + $0xc0] sm:$0xff] %vm2097, %v2050
      %2123 = vst.msk [vmem:[#allocation3 + $0xc8] sm:$0xff] %vm2097, %v2052
      %2124 = vst.msk [vmem:[#allocation3 + $0xd0] sm:$0xff] %vm2097, %v2054
      %2125 = vst.msk [vmem:[#allocation3 + $0xd8] sm:$0xff] %vm2097, %v2056
      %2126 = vst.msk [vmem:[#allocation3 + $0xe0] sm:$0xff] %vm2097, %v2058
      %2127 = vst.msk [vmem:[#allocation3 + $0xe8] sm:$0xff] %vm2097, %v2060
      %2128 = vst.msk [vmem:[#allocation3 + $0xf0] sm:$0xff] %vm2097, %v2062
      %2129 = vst.msk [vmem:[#allocation3 + $0xf8] sm:$0xff] %vm2097, %v2064
      %v2130 = vld [vmem:[#allocation3] sm:$0xff]
      %v2131 = vld [vmem:[#allocation3 + $0x8] sm:$0xff]
      %v2132 = vld [vmem:[#allocation3 + $0x10] sm:$0xff]
      %v2133 = vld [vmem:[#allocation3 + $0x18] sm:$0xff]
      %v2134 = vld [vmem:[#allocation3 + $0x20] sm:$0xff]
      %v2135 = vld [vmem:[#allocation3 + $0x28] sm:$0xff]
      %v2136 = vld [vmem:[#allocation3 + $0x30] sm:$0xff]
      %v2137 = vld [vmem:[#allocation3 + $0x38] sm:$0xff]
      %v2138 = vld [vmem:[#allocation3 + $0x40] sm:$0xff]
      %v2139 = vld [vmem:[#allocation3 + $0x48] sm:$0xff]
      %v2140 = vld [vmem:[#allocation3 + $0x50] sm:$0xff]
      %v2141 = vld [vmem:[#allocation3 + $0x58] sm:$0xff]
      %v2142 = vld [vmem:[#allocation3 + $0x60] sm:$0xff]
      %v2143 = vld [vmem:[#allocation3 + $0x68] sm:$0xff]
      %v2144 = vld [vmem:[#allocation3 + $0x70] sm:$0xff]
      %v2145 = vld [vmem:[#allocation3 + $0x78] sm:$0xff]
      %v2146 = vld [vmem:[#allocation3 + $0x80] sm:$0xff]
      %v2147 = vld [vmem:[#allocation3 + $0x88] sm:$0xff]
      %v2148 = vld [vmem:[#allocation3 + $0x90] sm:$0xff]
      %v2149 = vld [vmem:[#allocation3 + $0x98] sm:$0xff]
      %v2150 = vld [vmem:[#allocation3 + $0xa0] sm:$0xff]
      %v2151 = vld [vmem:[#allocation3 + $0xa8] sm:$0xff]
      %v2152 = vld [vmem:[#allocation3 + $0xb0] sm:$0xff]
      %v2153 = vld [vmem:[#allocation3 + $0xb8] sm:$0xff]
      %v2154 = vld [vmem:[#allocation3 + $0xc0] sm:$0xff]
      %v2155 = vld [vmem:[#allocation3 + $0xc8] sm:$0xff]
      %v2156 = vld [vmem:[#allocation3 + $0xd0] sm:$0xff]
      %v2157 = vld [vmem:[#allocation3 + $0xd8] sm:$0xff]
      %v2158 = vld [vmem:[#allocation3 + $0xe0] sm:$0xff]
      %v2159 = vld [vmem:[#allocation3 + $0xe8] sm:$0xff]
      %v2160 = vld [vmem:[#allocation3 + $0xf0] sm:$0xff]
      %v2161 = vld [vmem:[#allocation3 + $0xf8] sm:$0xff]
      %v2162 = vld [vmem:[%s1] sm:$0xff]
      %v2163 = vld [vmem:[%s1 + $0x8] sm:$0xff]
      %v2164 = vld [vmem:[%s1 + $0x10] sm:$0xff]
      %v2165 = vld [vmem:[%s1 + $0x18] sm:$0xff]
      %v2166 = vld [vmem:[%s1 + $0x20] sm:$0xf]
      %v2167 = vlaneseq
      %v2168 = vshrl.u32 %v2167, 7
      %v2169 = vsub.s32 0, %v2168
      %v2170 = vrot.slane %v373, %v2169
      %vm2171 = vcmask 293888
      %v2173 = vsel %vm2171, %v2130, 0
      %v2176 = vsel %vm2171, %v2131, 0
      %v2179 = vsel %vm2171, %v2132, 0
      %v2182 = vsel %vm2171, %v2133, 0
      %v2185 = vsel %vm2171, %v2134, 0
      %v2188 = vsel %vm2171, %v2135, 0
      %v2191 = vsel %vm2171, %v2136, 0
      %v2194 = vsel %vm2171, %v2137, 0
      %v2197 = vsel %vm2171, %v2138, 0
      %v2200 = vsel %vm2171, %v2139, 0
      %v2203 = vsel %vm2171, %v2140, 0
      %v2206 = vsel %vm2171, %v2141, 0
      %v2209 = vsel %vm2171, %v2142, 0
      %v2212 = vsel %vm2171, %v2143, 0
      %v2215 = vsel %vm2171, %v2144, 0
      %v2218 = vsel %vm2171, %v2145, 0
      %v2221 = vsel %vm2171, %v2146, 0
      %v2224 = vsel %vm2171, %v2147, 0
      %v2227 = vsel %vm2171, %v2148, 0
      %v2230 = vsel %vm2171, %v2149, 0
      %v2233 = vsel %vm2171, %v2150, 0
      %v2236 = vsel %vm2171, %v2151, 0
      %v2239 = vsel %vm2171, %v2152, 0
      %v2242 = vsel %vm2171, %v2153, 0
      %v2245 = vsel %vm2171, %v2154, 0
      %v2248 = vsel %vm2171, %v2155, 0
      %v2251 = vsel %vm2171, %v2156, 0
      %v2254 = vsel %vm2171, %v2157, 0
      %v2257 = vsel %vm2171, %v2158, 0
      %v2260 = vsel %vm2171, %v2159, 0
      %v2263 = vsel %vm2171, %v2160, 0
      %v2266 = vsel %vm2171, %v2161, 0
      %vm2268 = vcmask 1043456
      %v2270 = vsel %vm2268, %v2166, 0
      %2272 = vmatprep.subr.mxu0 0.0
      %2273 = vmatpush1.msra.mxu0 %v2162
      %2274 = vmatprep.subr.mxu0 0.0
      %2275 = vmatpush1.msra.mxu0 %v2163
      %2276 = vmatprep.subr.mxu0 0.0
      %2277 = vmatpush1.msra.mxu0 %v2164
      %2278 = vmatprep.subr.mxu0 0.0
      %2279 = vmatpush1.msra.mxu0 %v2165
      %2280 = vmatprep.subr.mxu0 0.0
      %2281 = vmatpush1.msra.mxu0 %v2270
      %2282 = vmatprep.subr.mxu0 0.0
      %2283 = vmatpush1.msra.mxu0 0.0
      %2284 = vmatprep.subr.mxu0 0.0
      %2285 = vmatpush1.msra.mxu0 0.0
      %2286 = vmatprep.subr.mxu0 0.0
      %2287 = vmatpush1.msra.mxu0 0.0
      %2288 = vmatprep.subr.mxu0 0.0
      %2289 = vmatpush1.msra.mxu0 0.0
      %2290 = vmatprep.subr.mxu0 0.0
      %2291 = vmatpush1.msra.mxu0 0.0
      %2292 = vmatprep.subr.mxu0 0.0
      %2293 = vmatpush1.msra.mxu0 0.0
      %2294 = vmatprep.subr.mxu0 0.0
      %2295 = vmatpush1.msra.mxu0 0.0
      %2296 = vmatprep.subr.mxu0 0.0
      %2297 = vmatpush1.msra.mxu0 0.0
      %2298 = vmatprep.subr.mxu0 0.0
      %2299 = vmatpush1.msra.mxu0 0.0
      %2300 = vmatprep.subr.mxu0 0.0
      %2301 = vmatpush1.msra.mxu0 0.0
      %2302 = vmatprep.subr.mxu0 0.0
      %2303 = vmatpush1.msra.mxu0 0.0
      %2304 = vmatprep.subr.mxu0 0.0
      %2305 = vmatpush1.msra.mxu0 0.0
      %2306 = vmatprep.subr.mxu0 0.0
      %2307 = vmatpush1.msra.mxu0 0.0
      %2308 = vmatprep.subr.mxu0 0.0
      %2309 = vmatpush1.msra.mxu0 0.0
      %2310 = vmatprep.subr.mxu0 0.0
      %2311 = vmatpush1.msra.mxu0 0.0
      %2312 = vmatprep.subr.mxu0 0.0
      %2313 = vmatpush1.msra.mxu0 0.0
      %2314 = vmatprep.subr.mxu0 0.0
      %2315 = vmatpush1.msra.mxu0 0.0
      %2316 = vmatprep.subr.mxu0 0.0
      %2317 = vmatpush1.msra.mxu0 0.0
      %2318 = vmatprep.subr.mxu0 0.0
      %2319 = vmatpush1.msra.mxu0 0.0
      %2320 = vmatprep.subr.mxu0 0.0
      %2321 = vmatpush1.msra.mxu0 0.0
      %2322 = vmatprep.subr.mxu0 0.0
      %2323 = vmatpush1.msra.mxu0 0.0
      %2324 = vmatprep.subr.mxu0 0.0
      %2325 = vmatpush1.msra.mxu0 0.0
      %2326 = vmatprep.subr.mxu0 0.0
      %2327 = vmatpush1.msra.mxu0 0.0
      %2328 = vmatprep.subr.mxu0 0.0
      %2329 = vmatpush1.msra.mxu0 0.0
      %2330 = vmatprep.subr.mxu0 0.0
      %2331 = vmatpush1.msra.mxu0 0.0
      %2332 = vmatprep.subr.mxu0 0.0
      %2333 = vmatpush1.msra.mxu0 0.0
      %2334 = vmatprep.subr.mxu0 0.0
      %2335 = vmatpush1.msra.mxu0 0.0
      %2336 = vmatprep.mubr.f32.mxu0 0.0
      %2337 = vmatmul.mubr.f32.gmra.mrb[0].mxu0 %v2173
      %v2338 = vpop.f32.mrb[0].mxu0
      %v2339 = vadd.f32 %v2170, %v2338
      %v2340 = vpop.f32.mrb[0].mxu0
      %2341 = vmatprep.mubr.f32.mxu0 0.0
      %2342 = vmatmul.mubr.f32.gmra.mrb[0].mxu0 %v2176
      %v2343 = vpop.f32.mrb[0].mxu0
      %v2344 = vadd.f32 %v2170, %v2343
      %v2345 = vpop.f32.mrb[0].mxu0
      %2346 = vmatprep.mubr.f32.mxu0 0.0
      %2347 = vmatmul.mubr.f32.gmra.mrb[0].mxu0 %v2179
      %v2348 = vpop.f32.mrb[0].mxu0
      %v2349 = vadd.f32 %v2170, %v2348
      %v2350 = vpop.f32.mrb[0].mxu0
      %2351 = vmatprep.mubr.f32.mxu0 0.0
      %2352 = vmatmul.mubr.f32.gmra.mrb[0].mxu0 %v2182
      %v2353 = vpop.f32.mrb[0].mxu0
      %v2354 = vadd.f32 %v2170, %v2353
      %v2355 = vpop.f32.mrb[0].mxu0
      %2356 = vmatprep.mubr.f32.mxu0 0.0
      %2357 = vmatmul.mubr.f32.gmra.mrb[0].mxu0 %v2185
      %v2358 = vpop.f32.mrb[0].mxu0
      %v2359 = vadd.f32 %v2170, %v2358
      %v2360 = vpop.f32.mrb[0].mxu0
      %2361 = vmatprep.mubr.f32.mxu0 0.0
      %2362 = vmatmul.mubr.f32.gmra.mrb[0].mxu0 %v2188
      %v2363 = vpop.f32.mrb[0].mxu0
      %v2364 = vadd.f32 %v2170, %v2363
      %v2365 = vpop.f32.mrb[0].mxu0
      %2366 = vmatprep.mubr.f32.mxu0 0.0
      %2367 = vmatmul.mubr.f32.gmra.mrb[0].mxu0 %v2191
      %v2368 = vpop.f32.mrb[0].mxu0
      %v2369 = vadd.f32 %v2170, %v2368
      %v2370 = vpop.f32.mrb[0].mxu0
      %2371 = vmatprep.mubr.f32.mxu0 0.0
      %2372 = vmatmul.mubr.f32.gmra.mrb[0].mxu0 %v2194
      %v2373 = vpop.f32.mrb[0].mxu0
      %v2374 = vadd.f32 %v2170, %v2373
      %v2375 = vpop.f32.mrb[0].mxu0
      %2376 = vmatprep.mubr.f32.mxu0 0.0
      %2377 = vmatmul.mubr.f32.gmra.mrb[0].mxu0 %v2197
      %v2378 = vpop.f32.mrb[0].mxu0
      %v2379 = vadd.f32 %v2170, %v2378
      %v2380 = vpop.f32.mrb[0].mxu0
      %2381 = vmatprep.mubr.f32.mxu0 0.0
      %2382 = vmatmul.mubr.f32.gmra.mrb[0].mxu0 %v2200
      %v2383 = vpop.f32.mrb[0].mxu0
      %v2384 = vadd.f32 %v2170, %v2383
      %v2385 = vpop.f32.mrb[0].mxu0
      %2386 = vmatprep.mubr.f32.mxu0 0.0
      %2387 = vmatmul.mubr.f32.gmra.mrb[0].mxu0 %v2203
      %v2388 = vpop.f32.mrb[0].mxu0
      %v2389 = vadd.f32 %v2170, %v2388
      %v2390 = vpop.f32.mrb[0].mxu0
      %2391 = vmatprep.mubr.f32.mxu0 0.0
      %2392 = vmatmul.mubr.f32.gmra.mrb[0].mxu0 %v2206
      %v2393 = vpop.f32.mrb[0].mxu0
      %v2394 = vadd.f32 %v2170, %v2393
      %v2395 = vpop.f32.mrb[0].mxu0
      %2396 = vmatprep.mubr.f32.mxu0 0.0
      %2397 = vmatmul.mubr.f32.gmra.mrb[0].mxu0 %v2209
      %v2398 = vpop.f32.mrb[0].mxu0
      %v2399 = vadd.f32 %v2170, %v2398
      %v2400 = vpop.f32.mrb[0].mxu0
      %2401 = vmatprep.mubr.f32.mxu0 0.0
      %2402 = vmatmul.mubr.f32.gmra.mrb[0].mxu0 %v2212
      %v2403 = vpop.f32.mrb[0].mxu0
      %v2404 = vadd.f32 %v2170, %v2403
      %v2405 = vpop.f32.mrb[0].mxu0
      %2406 = vmatprep.mubr.f32.mxu0 0.0
      %2407 = vmatmul.mubr.f32.gmra.mrb[0].mxu0 %v2215
      %v2408 = vpop.f32.mrb[0].mxu0
      %v2409 = vadd.f32 %v2170, %v2408
      %v2410 = vpop.f32.mrb[0].mxu0
      %2411 = vmatprep.mubr.f32.mxu0 0.0
      %2412 = vmatmul.mubr.f32.gmra.mrb[0].mxu0 %v2218
      %v2413 = vpop.f32.mrb[0].mxu0
      %v2414 = vadd.f32 %v2170, %v2413
      %v2415 = vpop.f32.mrb[0].mxu0
      %2416 = vmatprep.mubr.f32.mxu0 0.0
      %2417 = vmatmul.mubr.f32.gmra.mrb[0].mxu0 %v2221
      %v2418 = vpop.f32.mrb[0].mxu0
      %v2419 = vadd.f32 %v2170, %v2418
      %v2420 = vpop.f32.mrb[0].mxu0
      %2421 = vmatprep.mubr.f32.mxu0 0.0
      %2422 = vmatmul.mubr.f32.gmra.mrb[0].mxu0 %v2224
      %v2423 = vpop.f32.mrb[0].mxu0
      %v2424 = vadd.f32 %v2170, %v2423
      %v2425 = vpop.f32.mrb[0].mxu0
      %2426 = vmatprep.mubr.f32.mxu0 0.0
      %2427 = vmatmul.mubr.f32.gmra.mrb[0].mxu0 %v2227
      %v2428 = vpop.f32.mrb[0].mxu0
      %v2429 = vadd.f32 %v2170, %v2428
      %v2430 = vpop.f32.mrb[0].mxu0
      %2431 = vmatprep.mubr.f32.mxu0 0.0
      %2432 = vmatmul.mubr.f32.gmra.mrb[0].mxu0 %v2230
      %v2433 = vpop.f32.mrb[0].mxu0
      %v2434 = vadd.f32 %v2170, %v2433
      %v2435 = vpop.f32.mrb[0].mxu0
      %2436 = vmatprep.mubr.f32.mxu0 0.0
      %2437 = vmatmul.mubr.f32.gmra.mrb[0].mxu0 %v2233
      %v2438 = vpop.f32.mrb[0].mxu0
      %v2439 = vadd.f32 %v2170, %v2438
      %v2440 = vpop.f32.mrb[0].mxu0
      %2441 = vmatprep.mubr.f32.mxu0 0.0
      %2442 = vmatmul.mubr.f32.gmra.mrb[0].mxu0 %v2236
      %v2443 = vpop.f32.mrb[0].mxu0
      %v2444 = vadd.f32 %v2170, %v2443
      %v2445 = vpop.f32.mrb[0].mxu0
      %2446 = vmatprep.mubr.f32.mxu0 0.0
      %2447 = vmatmul.mubr.f32.gmra.mrb[0].mxu0 %v2239
      %v2448 = vpop.f32.mrb[0].mxu0
      %v2449 = vadd.f32 %v2170, %v2448
      %v2450 = vpop.f32.mrb[0].mxu0
      %2451 = vmatprep.mubr.f32.mxu0 0.0
      %2452 = vmatmul.mubr.f32.gmra.mrb[0].mxu0 %v2242
      %v2453 = vpop.f32.mrb[0].mxu0
      %v2454 = vadd.f32 %v2170, %v2453
      %v2455 = vpop.f32.mrb[0].mxu0
      %2456 = vmatprep.mubr.f32.mxu0 0.0
      %2457 = vmatmul.mubr.f32.gmra.mrb[0].mxu0 %v2245
      %v2458 = vpop.f32.mrb[0].mxu0
      %v2459 = vadd.f32 %v2170, %v2458
      %v2460 = vpop.f32.mrb[0].mxu0
      %2461 = vmatprep.mubr.f32.mxu0 0.0
      %2462 = vmatmul.mubr.f32.gmra.mrb[0].mxu0 %v2248
      %v2463 = vpop.f32.mrb[0].mxu0
      %v2464 = vadd.f32 %v2170, %v2463
      %v2465 = vpop.f32.mrb[0].mxu0
      %2466 = vmatprep.mubr.f32.mxu0 0.0
      %2467 = vmatmul.mubr.f32.gmra.mrb[0].mxu0 %v2251
      %v2468 = vpop.f32.mrb[0].mxu0
      %v2469 = vadd.f32 %v2170, %v2468
      %v2470 = vpop.f32.mrb[0].mxu0
      %2471 = vmatprep.mubr.f32.mxu0 0.0
      %2472 = vmatmul.mubr.f32.gmra.mrb[0].mxu0 %v2254
      %v2473 = vpop.f32.mrb[0].mxu0
      %v2474 = vadd.f32 %v2170, %v2473
      %v2475 = vpop.f32.mrb[0].mxu0
      %2476 = vmatprep.mubr.f32.mxu0 0.0
      %2477 = vmatmul.mubr.f32.gmra.mrb[0].mxu0 %v2257
      %v2478 = vpop.f32.mrb[0].mxu0
      %v2479 = vadd.f32 %v2170, %v2478
      %v2480 = vpop.f32.mrb[0].mxu0
      %2481 = vmatprep.mubr.f32.mxu0 0.0
      %2482 = vmatmul.mubr.f32.gmra.mrb[0].mxu0 %v2260
      %v2483 = vpop.f32.mrb[0].mxu0
      %v2484 = vadd.f32 %v2170, %v2483
      %v2485 = vpop.f32.mrb[0].mxu0
      %2486 = vmatprep.mubr.f32.mxu0 0.0
      %2487 = vmatmul.mubr.f32.gmra.mrb[0].mxu0 %v2263
      %v2488 = vpop.f32.mrb[0].mxu0
      %v2489 = vadd.f32 %v2170, %v2488
      %v2490 = vpop.f32.mrb[0].mxu0
      %2491 = vmatprep.mubr.f32.mxu0 0.0
      %2492 = vmatmul.mubr.f32.gmra.mrb[0].mxu0 %v2266
      %v2493 = vpop.f32.mrb[0].mxu0
      %v2494 = vadd.f32 %v2170, %v2493
      %v2495 = vpop.f32.mrb[0].mxu0
      %2496 = vdwg.mxu0
      %v2497 = vmul.f32 %v2339, 0.5
      %v2498 = vmul.f32 %v2344, 0.5
      %v2499 = vmul.f32 %v2349, 0.5
      %v2500 = vmul.f32 %v2354, 0.5
      %v2501 = vmul.f32 %v2359, 0.5
      %v2502 = vmul.f32 %v2364, 0.5
      %v2503 = vmul.f32 %v2369, 0.5
      %v2504 = vmul.f32 %v2374, 0.5
      %v2505 = vmul.f32 %v2379, 0.5
      %v2506 = vmul.f32 %v2384, 0.5
      %v2507 = vmul.f32 %v2389, 0.5
      %v2508 = vmul.f32 %v2394, 0.5
      %v2509 = vmul.f32 %v2399, 0.5
      %v2510 = vmul.f32 %v2404, 0.5
      %v2511 = vmul.f32 %v2409, 0.5
      %v2512 = vmul.f32 %v2414, 0.5
      %v2513 = vmul.f32 %v2419, 0.5
      %v2514 = vmul.f32 %v2424, 0.5
      %v2515 = vmul.f32 %v2429, 0.5
      %v2516 = vmul.f32 %v2434, 0.5
      %v2517 = vmul.f32 %v2439, 0.5
      %v2518 = vmul.f32 %v2444, 0.5
      %v2519 = vmul.f32 %v2449, 0.5
      %v2520 = vmul.f32 %v2454, 0.5
      %v2521 = vmul.f32 %v2459, 0.5
      %v2522 = vmul.f32 %v2464, 0.5
      %v2523 = vmul.f32 %v2469, 0.5
      %v2524 = vmul.f32 %v2474, 0.5
      %v2525 = vmul.f32 %v2479, 0.5
      %v2526 = vmul.f32 %v2484, 0.5
      %v2527 = vmul.f32 %v2489, 0.5
      %v2528 = vmul.f32 %v2494, 0.5
      %v2529 = vmul.f32 %v2339, 0.70710677
      %v2530 = vmul.f32 %v2344, 0.70710677
      %v2531 = vmul.f32 %v2349, 0.70710677
      %v2532 = vmul.f32 %v2354, 0.70710677
      %v2533 = vmul.f32 %v2359, 0.70710677
      %v2534 = vmul.f32 %v2364, 0.70710677
      %v2535 = vmul.f32 %v2369, 0.70710677
      %v2536 = vmul.f32 %v2374, 0.70710677
      %v2537 = vmul.f32 %v2379, 0.70710677
      %v2538 = vmul.f32 %v2384, 0.70710677
      %v2539 = vmul.f32 %v2389, 0.70710677
      %v2540 = vmul.f32 %v2394, 0.70710677
      %v2541 = vmul.f32 %v2399, 0.70710677
      %v2542 = vmul.f32 %v2404, 0.70710677
      %v2543 = vmul.f32 %v2409, 0.70710677
      %v2544 = vmul.f32 %v2414, 0.70710677
      %v2545 = vmul.f32 %v2419, 0.70710677
      %v2546 = vmul.f32 %v2424, 0.70710677
      %v2547 = vmul.f32 %v2429, 0.70710677
      %v2548 = vmul.f32 %v2434, 0.70710677
      %v2549 = vmul.f32 %v2439, 0.70710677
      %v2550 = vmul.f32 %v2444, 0.70710677
      %v2551 = vmul.f32 %v2449, 0.70710677
      %v2552 = vmul.f32 %v2454, 0.70710677
      %v2553 = vmul.f32 %v2459, 0.70710677
      %v2554 = vmul.f32 %v2464, 0.70710677
      %v2555 = vmul.f32 %v2469, 0.70710677
      %v2556 = vmul.f32 %v2474, 0.70710677
      %v2557 = vmul.f32 %v2479, 0.70710677
      %v2558 = vmul.f32 %v2484, 0.70710677
      %v2559 = vmul.f32 %v2489, 0.70710677
      %v2560 = vmul.f32 %v2494, 0.70710677
      %v2561 = verf.f32.pop %v2529
      %v2562 = verf.f32.pop %v2530
      %v2563 = verf.f32.pop %v2531
      %v2564 = verf.f32.pop %v2532
      %v2565 = verf.f32.pop %v2533
      %v2566 = verf.f32.pop %v2534
      %v2567 = verf.f32.pop %v2535
      %v2568 = verf.f32.pop %v2536
      %v2569 = verf.f32.pop %v2537
      %v2570 = verf.f32.pop %v2538
      %v2571 = verf.f32.pop %v2539
      %v2572 = verf.f32.pop %v2540
      %v2573 = verf.f32.pop %v2541
      %v2574 = verf.f32.pop %v2542
      %v2575 = verf.f32.pop %v2543
      %v2576 = verf.f32.pop %v2544
      %v2577 = verf.f32.pop %v2545
      %v2578 = verf.f32.pop %v2546
      %v2579 = verf.f32.pop %v2547
      %v2580 = verf.f32.pop %v2548
      %v2581 = verf.f32.pop %v2549
      %v2582 = verf.f32.pop %v2550
      %v2583 = verf.f32.pop %v2551
      %v2584 = verf.f32.pop %v2552
      %v2585 = verf.f32.pop %v2553
      %v2586 = verf.f32.pop %v2554
      %v2587 = verf.f32.pop %v2555
      %v2588 = verf.f32.pop %v2556
      %v2589 = verf.f32.pop %v2557
      %v2590 = verf.f32.pop %v2558
      %v2591 = verf.f32.pop %v2559
      %v2592 = verf.f32.pop %v2560
      %v2593 = vadd.f32 %v2561, 1.0
      %v2594 = vadd.f32 %v2562, 1.0
      %v2595 = vadd.f32 %v2563, 1.0
      %v2596 = vadd.f32 %v2564, 1.0
      %v2597 = vadd.f32 %v2565, 1.0
      %v2598 = vadd.f32 %v2566, 1.0
      %v2599 = vadd.f32 %v2567, 1.0
      %v2600 = vadd.f32 %v2568, 1.0
      %v2601 = vadd.f32 %v2569, 1.0
      %v2602 = vadd.f32 %v2570, 1.0
      %v2603 = vadd.f32 %v2571, 1.0
      %v2604 = vadd.f32 %v2572, 1.0
      %v2605 = vadd.f32 %v2573, 1.0
      %v2606 = vadd.f32 %v2574, 1.0
      %v2607 = vadd.f32 %v2575, 1.0
      %v2608 = vadd.f32 %v2576, 1.0
      %v2609 = vadd.f32 %v2577, 1.0
      %v2610 = vadd.f32 %v2578, 1.0
      %v2611 = vadd.f32 %v2579, 1.0
      %v2612 = vadd.f32 %v2580, 1.0
      %v2613 = vadd.f32 %v2581, 1.0
      %v2614 = vadd.f32 %v2582, 1.0
      %v2615 = vadd.f32 %v2583, 1.0
      %v2616 = vadd.f32 %v2584, 1.0
      %v2617 = vadd.f32 %v2585, 1.0
      %v2618 = vadd.f32 %v2586, 1.0
      %v2619 = vadd.f32 %v2587, 1.0
      %v2620 = vadd.f32 %v2588, 1.0
      %v2621 = vadd.f32 %v2589, 1.0
      %v2622 = vadd.f32 %v2590, 1.0
      %v2623 = vadd.f32 %v2591, 1.0
      %v2624 = vadd.f32 %v2592, 1.0
      %v2625 = vmul.f32 %v2497, %v2593
      %v2626 = vmul.f32 %v2498, %v2594
      %v2627 = vmul.f32 %v2499, %v2595
      %v2628 = vmul.f32 %v2500, %v2596
      %v2629 = vmul.f32 %v2501, %v2597
      %v2630 = vmul.f32 %v2502, %v2598
      %v2631 = vmul.f32 %v2503, %v2599
      %v2632 = vmul.f32 %v2504, %v2600
      %v2633 = vmul.f32 %v2505, %v2601
      %v2634 = vmul.f32 %v2506, %v2602
      %v2635 = vmul.f32 %v2507, %v2603
      %v2636 = vmul.f32 %v2508, %v2604
      %v2637 = vmul.f32 %v2509, %v2605
      %v2638 = vmul.f32 %v2510, %v2606
      %v2639 = vmul.f32 %v2511, %v2607
      %v2640 = vmul.f32 %v2512, %v2608
      %v2641 = vmul.f32 %v2513, %v2609
      %v2642 = vmul.f32 %v2514, %v2610
      %v2643 = vmul.f32 %v2515, %v2611
      %v2644 = vmul.f32 %v2516, %v2612
      %v2645 = vmul.f32 %v2517, %v2613
      %v2646 = vmul.f32 %v2518, %v2614
      %v2647 = vmul.f32 %v2519, %v2615
      %v2648 = vmul.f32 %v2520, %v2616
      %v2649 = vmul.f32 %v2521, %v2617
      %v2650 = vmul.f32 %v2522, %v2618
      %v2651 = vmul.f32 %v2523, %v2619
      %v2652 = vmul.f32 %v2524, %v2620
      %v2653 = vmul.f32 %v2525, %v2621
      %v2654 = vmul.f32 %v2526, %v2622
      %v2655 = vmul.f32 %v2527, %v2623
      %v2656 = vmul.f32 %v2528, %v2624
      %v2657 = vlaneseq
      %v2658 = vshrl.u32 %v2657, 7
      %v2659 = vsub.s32 0, %v2658
      %v2660 = vrot.slane %v374, %v2659
      %v2661 = vmul.f32 %v2625, %v2660
      %v2662 = vmul.f32 %v2626, %v2660
      %v2663 = vmul.f32 %v2627, %v2660
      %v2664 = vmul.f32 %v2628, %v2660
      %v2665 = vmul.f32 %v2629, %v2660
      %v2666 = vmul.f32 %v2630, %v2660
      %v2667 = vmul.f32 %v2631, %v2660
      %v2668 = vmul.f32 %v2632, %v2660
      %v2669 = vmul.f32 %v2633, %v2660
      %v2670 = vmul.f32 %v2634, %v2660
      %v2671 = vmul.f32 %v2635, %v2660
      %v2672 = vmul.f32 %v2636, %v2660
      %v2673 = vmul.f32 %v2637, %v2660
      %v2674 = vmul.f32 %v2638, %v2660
      %v2675 = vmul.f32 %v2639, %v2660
      %v2676 = vmul.f32 %v2640, %v2660
      %v2677 = vmul.f32 %v2641, %v2660
      %v2678 = vmul.f32 %v2642, %v2660
      %v2679 = vmul.f32 %v2643, %v2660
      %v2680 = vmul.f32 %v2644, %v2660
      %v2681 = vmul.f32 %v2645, %v2660
      %v2682 = vmul.f32 %v2646, %v2660
      %v2683 = vmul.f32 %v2647, %v2660
      %v2684 = vmul.f32 %v2648, %v2660
      %v2685 = vmul.f32 %v2649, %v2660
      %v2686 = vmul.f32 %v2650, %v2660
      %v2687 = vmul.f32 %v2651, %v2660
      %v2688 = vmul.f32 %v2652, %v2660
      %v2689 = vmul.f32 %v2653, %v2660
      %v2690 = vmul.f32 %v2654, %v2660
      %v2691 = vmul.f32 %v2655, %v2660
      %v2692 = vmul.f32 %v2656, %v2660
      %v2693 = vlaneseq
      %v2694 = vshrl.u32 %v2693, 7
      %v2695 = vsub.s32 0, %v2694
      %v2696 = vrot.slane %v375, %v2695
      %v2697 = vadd.f32 %v2661, %v2696
      %v2698 = vadd.f32 %v2662, %v2696
      %v2699 = vadd.f32 %v2663, %v2696
      %v2700 = vadd.f32 %v2664, %v2696
      %v2701 = vadd.f32 %v2665, %v2696
      %v2702 = vadd.f32 %v2666, %v2696
      %v2703 = vadd.f32 %v2667, %v2696
      %v2704 = vadd.f32 %v2668, %v2696
      %v2705 = vadd.f32 %v2669, %v2696
      %v2706 = vadd.f32 %v2670, %v2696
      %v2707 = vadd.f32 %v2671, %v2696
      %v2708 = vadd.f32 %v2672, %v2696
      %v2709 = vadd.f32 %v2673, %v2696
      %v2710 = vadd.f32 %v2674, %v2696
      %v2711 = vadd.f32 %v2675, %v2696
      %v2712 = vadd.f32 %v2676, %v2696
      %v2713 = vadd.f32 %v2677, %v2696
      %v2714 = vadd.f32 %v2678, %v2696
      %v2715 = vadd.f32 %v2679, %v2696
      %v2716 = vadd.f32 %v2680, %v2696
      %v2717 = vadd.f32 %v2681, %v2696
      %v2718 = vadd.f32 %v2682, %v2696
      %v2719 = vadd.f32 %v2683, %v2696
      %v2720 = vadd.f32 %v2684, %v2696
      %v2721 = vadd.f32 %v2685, %v2696
      %v2722 = vadd.f32 %v2686, %v2696
      %v2723 = vadd.f32 %v2687, %v2696
      %v2724 = vadd.f32 %v2688, %v2696
      %v2725 = vadd.f32 %v2689, %v2696
      %v2726 = vadd.f32 %v2690, %v2696
      %v2727 = vadd.f32 %v2691, %v2696
      %v2728 = vadd.f32 %v2692, %v2696
      %vm2729 = vcmask 64512
      %2730 = vst.msk [vmem:[#allocation4] sm:$0xff] %vm2729, 0.0
      %2731 = vst.msk [vmem:[#allocation4 + $0x8] sm:$0xff] %vm2729, 0.0
      %2732 = vst.msk [vmem:[#allocation4 + $0x10] sm:$0xff] %vm2729, 0.0
      %vm2733 = vcmask 57344
      %2734 = vst.msk [vmem:[#allocation4 + $0x18] sm:$0x1] %vm2733, 0.0
      %2735 = vst.msk [vmem:[#allocation4 + $0x20] sm:$0xff] %vm2729, 0.0
      %2736 = vst.msk [vmem:[#allocation4 + $0x28] sm:$0xff] %vm2729, 0.0
      %2737 = vst.msk [vmem:[#allocation4 + $0x30] sm:$0xff] %vm2729, 0.0
      %2738 = vst.msk [vmem:[#allocation4 + $0x38] sm:$0x1] %vm2733, 0.0
      %2739 = vst.msk [vmem:[#allocation4 + $0x40] sm:$0xff] %vm2729, 0.0
      %2740 = vst.msk [vmem:[#allocation4 + $0x48] sm:$0xff] %vm2729, 0.0
      %2741 = vst.msk [vmem:[#allocation4 + $0x50] sm:$0xff] %vm2729, 0.0
      %2742 = vst.msk [vmem:[#allocation4 + $0x58] sm:$0x1] %vm2733, 0.0
      %2743 = vst.msk [vmem:[#allocation4 + $0x60] sm:$0xff] %vm2729, 0.0
      %2744 = vst.msk [vmem:[#allocation4 + $0x68] sm:$0xff] %vm2729, 0.0
      %2745 = vst.msk [vmem:[#allocation4 + $0x70] sm:$0xff] %vm2729, 0.0
      %2746 = vst.msk [vmem:[#allocation4 + $0x78] sm:$0x1] %vm2733, 0.0
      %2747 = vst.msk [vmem:[#allocation4 + $0x80] sm:$0xff] %vm2729, 0.0
      %2748 = vst.msk [vmem:[#allocation4 + $0x88] sm:$0xff] %vm2729, 0.0
      %2749 = vst.msk [vmem:[#allocation4 + $0x90] sm:$0xff] %vm2729, 0.0
      %2750 = vst.msk [vmem:[#allocation4 + $0x98] sm:$0x1] %vm2733, 0.0
      %2751 = vst.msk [vmem:[#allocation4 + $0xa0] sm:$0xff] %vm2729, 0.0
      %2752 = vst.msk [vmem:[#allocation4 + $0xa8] sm:$0xff] %vm2729, 0.0
      %2753 = vst.msk [vmem:[#allocation4 + $0xb0] sm:$0xff] %vm2729, 0.0
      %2754 = vst.msk [vmem:[#allocation4 + $0xb8] sm:$0x1] %vm2733, 0.0
      %2755 = vst.msk [vmem:[#allocation4 + $0xc0] sm:$0xff] %vm2729, 0.0
      %2756 = vst.msk [vmem:[#allocation4 + $0xc8] sm:$0xff] %vm2729, 0.0
      %2757 = vst.msk [vmem:[#allocation4 + $0xd0] sm:$0xff] %vm2729, 0.0
      %2758 = vst.msk [vmem:[#allocation4 + $0xd8] sm:$0x1] %vm2733, 0.0
      %2759 = vst.msk [vmem:[#allocation4 + $0xe0] sm:$0xff] %vm2729, 0.0
      %2760 = vst.msk [vmem:[#allocation4 + $0xe8] sm:$0xff] %vm2729, 0.0
      %2761 = vst.msk [vmem:[#allocation4 + $0xf0] sm:$0xff] %vm2729, 0.0
      %2762 = vst.msk [vmem:[#allocation4 + $0xf8] sm:$0x1] %vm2733, 0.0
      %2763 = vst.msk [vmem:[#allocation4 + $0x100] sm:$0xff] %vm2729, 0.0
      %2764 = vst.msk [vmem:[#allocation4 + $0x108] sm:$0xff] %vm2729, 0.0
      %2765 = vst.msk [vmem:[#allocation4 + $0x110] sm:$0xff] %vm2729, 0.0
      %2766 = vst.msk [vmem:[#allocation4 + $0x118] sm:$0x1] %vm2733, 0.0
      %2767 = vst.msk [vmem:[#allocation4 + $0x120] sm:$0xff] %vm2729, 0.0
      %2768 = vst.msk [vmem:[#allocation4 + $0x128] sm:$0xff] %vm2729, 0.0
      %2769 = vst.msk [vmem:[#allocation4 + $0x130] sm:$0xff] %vm2729, 0.0
      %2770 = vst.msk [vmem:[#allocation4 + $0x138] sm:$0x1] %vm2733, 0.0
      %2771 = vst.msk [vmem:[#allocation4 + $0x140] sm:$0xff] %vm2729, 0.0
      %2772 = vst.msk [vmem:[#allocation4 + $0x148] sm:$0xff] %vm2729, 0.0
      %2773 = vst.msk [vmem:[#allocation4 + $0x150] sm:$0xff] %vm2729, 0.0
      %2774 = vst.msk [vmem:[#allocation4 + $0x158] sm:$0x1] %vm2733, 0.0
      %2775 = vst.msk [vmem:[#allocation4 + $0x160] sm:$0xff] %vm2729, 0.0
      %2776 = vst.msk [vmem:[#allocation4 + $0x168] sm:$0xff] %vm2729, 0.0
      %2777 = vst.msk [vmem:[#allocation4 + $0x170] sm:$0xff] %vm2729, 0.0
      %2778 = vst.msk [vmem:[#allocation4 + $0x178] sm:$0x1] %vm2733, 0.0
      %2779 = vst.msk [vmem:[#allocation4 + $0x180] sm:$0xff] %vm2729, 0.0
      %2780 = vst.msk [vmem:[#allocation4 + $0x188] sm:$0xff] %vm2729, 0.0
      %2781 = vst.msk [vmem:[#allocation4 + $0x190] sm:$0xff] %vm2729, 0.0
      %2782 = vst.msk [vmem:[#allocation4 + $0x198] sm:$0x1] %vm2733, 0.0
      %2783 = vst.msk [vmem:[#allocation4 + $0x1a0] sm:$0xff] %vm2729, 0.0
      %2784 = vst.msk [vmem:[#allocation4 + $0x1a8] sm:$0xff] %vm2729, 0.0
      %2785 = vst.msk [vmem:[#allocation4 + $0x1b0] sm:$0xff] %vm2729, 0.0
      %2786 = vst.msk [vmem:[#allocation4 + $0x1b8] sm:$0x1] %vm2733, 0.0
      %2787 = vst.msk [vmem:[#allocation4 + $0x1c0] sm:$0xff] %vm2729, 0.0
      %2788 = vst.msk [vmem:[#allocation4 + $0x1c8] sm:$0xff] %vm2729, 0.0
      %2789 = vst.msk [vmem:[#allocation4 + $0x1d0] sm:$0xff] %vm2729, 0.0
      %2790 = vst.msk [vmem:[#allocation4 + $0x1d8] sm:$0x1] %vm2733, 0.0
      %2791 = vst.msk [vmem:[#allocation4 + $0x1e0] sm:$0xff] %vm2729, 0.0
      %2792 = vst.msk [vmem:[#allocation4 + $0x1e8] sm:$0xff] %vm2729, 0.0
      %2793 = vst.msk [vmem:[#allocation4 + $0x1f0] sm:$0xff] %vm2729, 0.0
      %2794 = vst.msk [vmem:[#allocation4 + $0x1f8] sm:$0x1] %vm2733, 0.0
      %2795 = vst.msk [vmem:[#allocation4 + $0x200] sm:$0xff] %vm2729, 0.0
      %2796 = vst.msk [vmem:[#allocation4 + $0x208] sm:$0xff] %vm2729, 0.0
      %2797 = vst.msk [vmem:[#allocation4 + $0x210] sm:$0xff] %vm2729, 0.0
      %2798 = vst.msk [vmem:[#allocation4 + $0x218] sm:$0x1] %vm2733, 0.0
      %2799 = vst.msk [vmem:[#allocation4 + $0x220] sm:$0xff] %vm2729, 0.0
      %2800 = vst.msk [vmem:[#allocation4 + $0x228] sm:$0xff] %vm2729, 0.0
      %2801 = vst.msk [vmem:[#allocation4 + $0x230] sm:$0xff] %vm2729, 0.0
      %2802 = vst.msk [vmem:[#allocation4 + $0x238] sm:$0x1] %vm2733, 0.0
      %s2803 = scalar_lea.vmem [#allocation4], 32
      %2804 = vst.msk [vmem:[%s2803 + $0x8] sm:$0xff] %vm2729, %v2697
      %2805 = vst.msk [vmem:[%s2803 + $0x10] sm:$0xff] %vm2729, %v2698
      %2806 = vst.msk [vmem:[%s2803 + $0x28] sm:$0xff] %vm2729, %v2699
      %2807 = vst.msk [vmem:[%s2803 + $0x30] sm:$0xff] %vm2729, %v2700
      %2808 = vst.msk [vmem:[%s2803 + $0x48] sm:$0xff] %vm2729, %v2701
      %2809 = vst.msk [vmem:[%s2803 + $0x50] sm:$0xff] %vm2729, %v2702
      %2810 = vst.msk [vmem:[%s2803 + $0x68] sm:$0xff] %vm2729, %v2703
      %2811 = vst.msk [vmem:[%s2803 + $0x70] sm:$0xff] %vm2729, %v2704
      %2812 = vst.msk [vmem:[%s2803 + $0x88] sm:$0xff] %vm2729, %v2705
      %2813 = vst.msk [vmem:[%s2803 + $0x90] sm:$0xff] %vm2729, %v2706
      %2814 = vst.msk [vmem:[%s2803 + $0xa8] sm:$0xff] %vm2729, %v2707
      %2815 = vst.msk [vmem:[%s2803 + $0xb0] sm:$0xff] %vm2729, %v2708
      %2816 = vst.msk [vmem:[%s2803 + $0xc8] sm:$0xff] %vm2729, %v2709
      %2817 = vst.msk [vmem:[%s2803 + $0xd0] sm:$0xff] %vm2729, %v2710
      %2818 = vst.msk [vmem:[%s2803 + $0xe8] sm:$0xff] %vm2729, %v2711
      %2819 = vst.msk [vmem:[%s2803 + $0xf0] sm:$0xff] %vm2729, %v2712
      %2820 = vst.msk [vmem:[%s2803 + $0x108] sm:$0xff] %vm2729, %v2713
      %2821 = vst.msk [vmem:[%s2803 + $0x110] sm:$0xff] %vm2729, %v2714
      %2822 = vst.msk [vmem:[%s2803 + $0x128] sm:$0xff] %vm2729, %v2715
      %2823 = vst.msk [vmem:[%s2803 + $0x130] sm:$0xff] %vm2729, %v2716
      %2824 = vst.msk [vmem:[%s2803 + $0x148] sm:$0xff] %vm2729, %v2717
      %2825 = vst.msk [vmem:[%s2803 + $0x150] sm:$0xff] %vm2729, %v2718
      %2826 = vst.msk [vmem:[%s2803 + $0x168] sm:$0xff] %vm2729, %v2719
      %2827 = vst.msk [vmem:[%s2803 + $0x170] sm:$0xff] %vm2729, %v2720
      %2828 = vst.msk [vmem:[%s2803 + $0x188] sm:$0xff] %vm2729, %v2721
      %2829 = vst.msk [vmem:[%s2803 + $0x190] sm:$0xff] %vm2729, %v2722
      %2830 = vst.msk [vmem:[%s2803 + $0x1a8] sm:$0xff] %vm2729, %v2723
      %2831 = vst.msk [vmem:[%s2803 + $0x1b0] sm:$0xff] %vm2729, %v2724
      %2832 = vst.msk [vmem:[%s2803 + $0x1c8] sm:$0xff] %vm2729, %v2725
      %2833 = vst.msk [vmem:[%s2803 + $0x1d0] sm:$0xff] %vm2729, %v2726
      %2834 = vst.msk [vmem:[%s2803 + $0x1e8] sm:$0xff] %vm2729, %v2727
      %2835 = vst.msk [vmem:[%s2803 + $0x1f0] sm:$0xff] %vm2729, %v2728
      %v2836 = vld [vmem:[#allocation4 + $0x7] sm:$0xff]
      %v2837 = vld [vmem:[#allocation4 + $0xf] sm:$0xff]
      %v2838 = vld [vmem:[#allocation4 + $0x27] sm:$0xff]
      %v2839 = vld [vmem:[#allocation4 + $0x2f] sm:$0xff]
      %v2840 = vld [vmem:[#allocation4 + $0x47] sm:$0xff]
      %v2841 = vld [vmem:[#allocation4 + $0x4f] sm:$0xff]
      %v2842 = vld [vmem:[#allocation4 + $0x67] sm:$0xff]
      %v2843 = vld [vmem:[#allocation4 + $0x6f] sm:$0xff]
      %v2844 = vld [vmem:[#allocation4 + $0x87] sm:$0xff]
      %v2845 = vld [vmem:[#allocation4 + $0x8f] sm:$0xff]
      %v2846 = vld [vmem:[#allocation4 + $0xa7] sm:$0xff]
      %v2847 = vld [vmem:[#allocation4 + $0xaf] sm:$0xff]
      %v2848 = vld [vmem:[#allocation4 + $0xc7] sm:$0xff]
      %v2849 = vld [vmem:[#allocation4 + $0xcf] sm:$0xff]
      %v2850 = vld [vmem:[#allocation4 + $0xe7] sm:$0xff]
      %v2851 = vld [vmem:[#allocation4 + $0xef] sm:$0xff]
      %v2852 = vld [vmem:[#allocation4 + $0x107] sm:$0xff]
      %v2853 = vld [vmem:[#allocation4 + $0x10f] sm:$0xff]
      %v2854 = vld [vmem:[#allocation4 + $0x127] sm:$0xff]
      %v2855 = vld [vmem:[#allocation4 + $0x12f] sm:$0xff]
      %v2856 = vld [vmem:[#allocation4 + $0x147] sm:$0xff]
      %v2857 = vld [vmem:[#allocation4 + $0x14f] sm:$0xff]
      %v2858 = vld [vmem:[#allocation4 + $0x167] sm:$0xff]
      %v2859 = vld [vmem:[#allocation4 + $0x16f] sm:$0xff]
      %v2860 = vld [vmem:[#allocation4 + $0x187] sm:$0xff]
      %v2861 = vld [vmem:[#allocation4 + $0x18f] sm:$0xff]
      %v2862 = vld [vmem:[#allocation4 + $0x1a7] sm:$0xff]
      %v2863 = vld [vmem:[#allocation4 + $0x1af] sm:$0xff]
      %v2864 = vld [vmem:[#allocation4 + $0x1c7] sm:$0xff]
      %v2865 = vld [vmem:[#allocation4 + $0x1cf] sm:$0xff]
      %v2866 = vld [vmem:[#allocation4 + $0x1e7] sm:$0xff]
      %v2867 = vld [vmem:[#allocation4 + $0x1ef] sm:$0xff]
      %2868 = vst.msk [vmem:[#allocation5] sm:$0xff] %vm2729, %v2836
      %2869 = vst.msk [vmem:[#allocation5 + $0x8] sm:$0xff] %vm2729, %v2837
      %2870 = vst.msk [vmem:[#allocation5 + $0x10] sm:$0xff] %vm2729, %v2838
      %2871 = vst.msk [vmem:[#allocation5 + $0x18] sm:$0xff] %vm2729, %v2839
      %2872 = vst.msk [vmem:[#allocation5 + $0x20] sm:$0xff] %vm2729, %v2840
      %2873 = vst.msk [vmem:[#allocation5 + $0x28] sm:$0xff] %vm2729, %v2841
      %2874 = vst.msk [vmem:[#allocation5 + $0x30] sm:$0xff] %vm2729, %v2842
      %2875 = vst.msk [vmem:[#allocation5 + $0x38] sm:$0xff] %vm2729, %v2843
      %2876 = vst.msk [vmem:[#allocation5 + $0x40] sm:$0xff] %vm2729, %v2844
      %2877 = vst.msk [vmem:[#allocation5 + $0x48] sm:$0xff] %vm2729, %v2845
      %2878 = vst.msk [vmem:[#allocation5 + $0x50] sm:$0xff] %vm2729, %v2846
      %2879 = vst.msk [vmem:[#allocation5 + $0x58] sm:$0xff] %vm2729, %v2847
      %2880 = vst.msk [vmem:[#allocation5 + $0x60] sm:$0xff] %vm2729, %v2848
      %2881 = vst.msk [vmem:[#allocation5 + $0x68] sm:$0xff] %vm2729, %v2849
      %2882 = vst.msk [vmem:[#allocation5 + $0x70] sm:$0xff] %vm2729, %v2850
      %2883 = vst.msk [vmem:[#allocation5 + $0x78] sm:$0xff] %vm2729, %v2851
      %2884 = vst.msk [vmem:[#allocation5 + $0x80] sm:$0xff] %vm2729, %v2852
      %2885 = vst.msk [vmem:[#allocation5 + $0x88] sm:$0xff] %vm2729, %v2853
      %2886 = vst.msk [vmem:[#allocation5 + $0x90] sm:$0xff] %vm2729, %v2854
      %2887 = vst.msk [vmem:[#allocation5 + $0x98] sm:$0xff] %vm2729, %v2855
      %2888 = vst.msk [vmem:[#allocation5 + $0xa0] sm:$0xff] %vm2729, %v2856
      %2889 = vst.msk [vmem:[#allocation5 + $0xa8] sm:$0xff] %vm2729, %v2857
      %2890 = vst.msk [vmem:[#allocation5 + $0xb0] sm:$0xff] %vm2729, %v2858
      %2891 = vst.msk [vmem:[#allocation5 + $0xb8] sm:$0xff] %vm2729, %v2859
      %2892 = vst.msk [vmem:[#allocation5 + $0xc0] sm:$0xff] %vm2729, %v2860
      %2893 = vst.msk [vmem:[#allocation5 + $0xc8] sm:$0xff] %vm2729, %v2861
      %2894 = vst.msk [vmem:[#allocation5 + $0xd0] sm:$0xff] %vm2729, %v2862
      %2895 = vst.msk [vmem:[#allocation5 + $0xd8] sm:$0xff] %vm2729, %v2863
      %2896 = vst.msk [vmem:[#allocation5 + $0xe0] sm:$0xff] %vm2729, %v2864
      %2897 = vst.msk [vmem:[#allocation5 + $0xe8] sm:$0xff] %vm2729, %v2865
      %2898 = vst.msk [vmem:[#allocation5 + $0xf0] sm:$0xff] %vm2729, %v2866
      %2899 = vst.msk [vmem:[#allocation5 + $0xf8] sm:$0xff] %vm2729, %v2867
      %v2900 = vld [vmem:[#allocation4 + $0x8] sm:$0xff]
      %v2901 = vld [vmem:[#allocation4 + $0x10] sm:$0xff]
      %v2902 = vld [vmem:[#allocation4 + $0x28] sm:$0xff]
      %v2903 = vld [vmem:[#allocation4 + $0x30] sm:$0xff]
      %v2904 = vld [vmem:[#allocation4 + $0x48] sm:$0xff]
      %v2905 = vld [vmem:[#allocation4 + $0x50] sm:$0xff]
      %v2906 = vld [vmem:[#allocation4 + $0x68] sm:$0xff]
      %v2907 = vld [vmem:[#allocation4 + $0x70] sm:$0xff]
      %v2908 = vld [vmem:[#allocation4 + $0x88] sm:$0xff]
      %v2909 = vld [vmem:[#allocation4 + $0x90] sm:$0xff]
      %v2910 = vld [vmem:[#allocation4 + $0xa8] sm:$0xff]
      %v2911 = vld [vmem:[#allocation4 + $0xb0] sm:$0xff]
      %v2912 = vld [vmem:[#allocation4 + $0xc8] sm:$0xff]
      %v2913 = vld [vmem:[#allocation4 + $0xd0] sm:$0xff]
      %v2914 = vld [vmem:[#allocation4 + $0xe8] sm:$0xff]
      %v2915 = vld [vmem:[#allocation4 + $0xf0] sm:$0xff]
      %v2916 = vld [vmem:[#allocation4 + $0x108] sm:$0xff]
      %v2917 = vld [vmem:[#allocation4 + $0x110] sm:$0xff]
      %v2918 = vld [vmem:[#allocation4 + $0x128] sm:$0xff]
      %v2919 = vld [vmem:[#allocation4 + $0x130] sm:$0xff]
      %v2920 = vld [vmem:[#allocation4 + $0x148] sm:$0xff]
      %v2921 = vld [vmem:[#allocation4 + $0x150] sm:$0xff]
      %v2922 = vld [vmem:[#allocation4 + $0x168] sm:$0xff]
      %v2923 = vld [vmem:[#allocation4 + $0x170] sm:$0xff]
      %v2924 = vld [vmem:[#allocation4 + $0x188] sm:$0xff]
      %v2925 = vld [vmem:[#allocation4 + $0x190] sm:$0xff]
      %v2926 = vld [vmem:[#allocation4 + $0x1a8] sm:$0xff]
      %v2927 = vld [vmem:[#allocation4 + $0x1b0] sm:$0xff]
      %v2928 = vld [vmem:[#allocation4 + $0x1c8] sm:$0xff]
      %v2929 = vld [vmem:[#allocation4 + $0x1d0] sm:$0xff]
      %v2930 = vld [vmem:[#allocation4 + $0x1e8] sm:$0xff]
      %v2931 = vld [vmem:[#allocation4 + $0x1f0] sm:$0xff]
      %2964 = vrot.lane.b32.xlu0 %v2900, 8
      %v2965 = vpop.permute.xlu0 %2964
      %2966 = vrot.lane.b32.xlu0 %v2901, 8
      %v2967 = vpop.permute.xlu0 %2966
      %2968 = vrot.lane.b32.xlu0 %v2902, 8
      %v2969 = vpop.permute.xlu0 %2968
      %2970 = vrot.lane.b32.xlu0 %v2903, 8
      %v2971 = vpop.permute.xlu0 %2970
      %2972 = vrot.lane.b32.xlu0 %v2904, 8
      %v2973 = vpop.permute.xlu0 %2972
      %2974 = vrot.lane.b32.xlu0 %v2905, 8
      %v2975 = vpop.permute.xlu0 %2974
      %2976 = vrot.lane.b32.xlu0 %v2906, 8
      %v2977 = vpop.permute.xlu0 %2976
      %2978 = vrot.lane.b32.xlu0 %v2907, 8
      %v2979 = vpop.permute.xlu0 %2978
      %2980 = vrot.lane.b32.xlu0 %v2908, 8
      %v2981 = vpop.permute.xlu0 %2980
      %2982 = vrot.lane.b32.xlu0 %v2909, 8
      %v2983 = vpop.permute.xlu0 %2982
      %2984 = vrot.lane.b32.xlu0 %v2910, 8
      %v2985 = vpop.permute.xlu0 %2984
      %2986 = vrot.lane.b32.xlu0 %v2911, 8
      %v2987 = vpop.permute.xlu0 %2986
      %2988 = vrot.lane.b32.xlu0 %v2912, 8
      %v2989 = vpop.permute.xlu0 %2988
      %2990 = vrot.lane.b32.xlu0 %v2913, 8
      %v2991 = vpop.permute.xlu0 %2990
      %2992 = vrot.lane.b32.xlu0 %v2914, 8
      %v2993 = vpop.permute.xlu0 %2992
      %2994 = vrot.lane.b32.xlu0 %v2915, 8
      %v2995 = vpop.permute.xlu0 %2994
      %2996 = vrot.lane.b32.xlu0 %v2916, 8
      %v2997 = vpop.permute.xlu0 %2996
      %2998 = vrot.lane.b32.xlu0 %v2917, 8
      %v2999 = vpop.permute.xlu0 %2998
      %3000 = vrot.lane.b32.xlu0 %v2918, 8
      %v3001 = vpop.permute.xlu0 %3000
      %3002 = vrot.lane.b32.xlu0 %v2919, 8
      %v3003 = vpop.permute.xlu0 %3002
      %3004 = vrot.lane.b32.xlu0 %v2920, 8
      %v3005 = vpop.permute.xlu0 %3004
      %3006 = vrot.lane.b32.xlu0 %v2921, 8
      %v3007 = vpop.permute.xlu0 %3006
      %3008 = vrot.lane.b32.xlu0 %v2922, 8
      %v3009 = vpop.permute.xlu0 %3008
      %3010 = vrot.lane.b32.xlu0 %v2923, 8
      %v3011 = vpop.permute.xlu0 %3010
      %3012 = vrot.lane.b32.xlu0 %v2924, 8
      %v3013 = vpop.permute.xlu0 %3012
      %3014 = vrot.lane.b32.xlu0 %v2925, 8
      %v3015 = vpop.permute.xlu0 %3014
      %3016 = vrot.lane.b32.xlu0 %v2926, 8
      %v3017 = vpop.permute.xlu0 %3016
      %3018 = vrot.lane.b32.xlu0 %v2927, 8
      %v3019 = vpop.permute.xlu0 %3018
      %3020 = vrot.lane.b32.xlu0 %v2928, 8
      %v3021 = vpop.permute.xlu0 %3020
      %3022 = vrot.lane.b32.xlu0 %v2929, 8
      %v3023 = vpop.permute.xlu0 %3022
      %3024 = vrot.lane.b32.xlu0 %v2930, 8
      %v3025 = vpop.permute.xlu0 %3024
      %3026 = vrot.lane.b32.xlu0 %v2931, 8
      %v3027 = vpop.permute.xlu0 %3026
      %vm3060 = vcmask 130112
      %3061 = vst.msk [vmem:[#allocation5] sm:$0xff] %vm3060, %v2965
      %3062 = vst.msk [vmem:[#allocation5 + $0x8] sm:$0xff] %vm3060, %v2967
      %3063 = vst.msk [vmem:[#allocation5 + $0x10] sm:$0xff] %vm3060, %v2969
      %3064 = vst.msk [vmem:[#allocation5 + $0x18] sm:$0xff] %vm3060, %v2971
      %3065 = vst.msk [vmem:[#allocation5 + $0x20] sm:$0xff] %vm3060, %v2973
      %3066 = vst.msk [vmem:[#allocation5 + $0x28] sm:$0xff] %vm3060, %v2975
      %3067 = vst.msk [vmem:[#allocation5 + $0x30] sm:$0xff] %vm3060, %v2977
      %3068 = vst.msk [vmem:[#allocation5 + $0x38] sm:$0xff] %vm3060, %v2979
      %3069 = vst.msk [vmem:[#allocation5 + $0x40] sm:$0xff] %vm3060, %v2981
      %3070 = vst.msk [vmem:[#allocation5 + $0x48] sm:$0xff] %vm3060, %v2983
      %3071 = vst.msk [vmem:[#allocation5 + $0x50] sm:$0xff] %vm3060, %v2985
      %3072 = vst.msk [vmem:[#allocation5 + $0x58] sm:$0xff] %vm3060, %v2987
      %3073 = vst.msk [vmem:[#allocation5 + $0x60] sm:$0xff] %vm3060, %v2989
      %3074 = vst.msk [vmem:[#allocation5 + $0x68] sm:$0xff] %vm3060, %v2991
      %3075 = vst.msk [vmem:[#allocation5 + $0x70] sm:$0xff] %vm3060, %v2993
      %3076 = vst.msk [vmem:[#allocation5 + $0x78] sm:$0xff] %vm3060, %v2995
      %3077 = vst.msk [vmem:[#allocation5 + $0x80] sm:$0xff] %vm3060, %v2997
      %3078 = vst.msk [vmem:[#allocation5 + $0x88] sm:$0xff] %vm3060, %v2999
      %3079 = vst.msk [vmem:[#allocation5 + $0x90] sm:$0xff] %vm3060, %v3001
      %3080 = vst.msk [vmem:[#allocation5 + $0x98] sm:$0xff] %vm3060, %v3003
      %3081 = vst.msk [vmem:[#allocation5 + $0xa0] sm:$0xff] %vm3060, %v3005
      %3082 = vst.msk [vmem:[#allocation5 + $0xa8] sm:$0xff] %vm3060, %v3007
      %3083 = vst.msk [vmem:[#allocation5 + $0xb0] sm:$0xff] %vm3060, %v3009
      %3084 = vst.msk [vmem:[#allocation5 + $0xb8] sm:$0xff] %vm3060, %v3011
      %3085 = vst.msk [vmem:[#allocation5 + $0xc0] sm:$0xff] %vm3060, %v3013
      %3086 = vst.msk [vmem:[#allocation5 + $0xc8] sm:$0xff] %vm3060, %v3015
      %3087 = vst.msk [vmem:[#allocation5 + $0xd0] sm:$0xff] %vm3060, %v3017
      %3088 = vst.msk [vmem:[#allocation5 + $0xd8] sm:$0xff] %vm3060, %v3019
      %3089 = vst.msk [vmem:[#allocation5 + $0xe0] sm:$0xff] %vm3060, %v3021
      %3090 = vst.msk [vmem:[#allocation5 + $0xe8] sm:$0xff] %vm3060, %v3023
      %3091 = vst.msk [vmem:[#allocation5 + $0xf0] sm:$0xff] %vm3060, %v3025
      %3092 = vst.msk [vmem:[#allocation5 + $0xf8] sm:$0xff] %vm3060, %v3027
      %v3093 = vld [vmem:[#allocation4 + $0x9] sm:$0xff]
      %v3094 = vld [vmem:[#allocation4 + $0x11] sm:$0xff]
      %v3095 = vld [vmem:[#allocation4 + $0x29] sm:$0xff]
      %v3096 = vld [vmem:[#allocation4 + $0x31] sm:$0xff]
      %v3097 = vld [vmem:[#allocation4 + $0x49] sm:$0xff]
      %v3098 = vld [vmem:[#allocation4 + $0x51] sm:$0xff]
      %v3099 = vld [vmem:[#allocation4 + $0x69] sm:$0xff]
      %v3100 = vld [vmem:[#allocation4 + $0x71] sm:$0xff]
      %v3101 = vld [vmem:[#allocation4 + $0x89] sm:$0xff]
      %v3102 = vld [vmem:[#allocation4 + $0x91] sm:$0xff]
      %v3103 = vld [vmem:[#allocation4 + $0xa9] sm:$0xff]
      %v3104 = vld [vmem:[#allocation4 + $0xb1] sm:$0xff]
      %v3105 = vld [vmem:[#allocation4 + $0xc9] sm:$0xff]
      %v3106 = vld [vmem:[#allocation4 + $0xd1] sm:$0xff]
      %v3107 = vld [vmem:[#allocation4 + $0xe9] sm:$0xff]
      %v3108 = vld [vmem:[#allocation4 + $0xf1] sm:$0xff]
      %v3109 = vld [vmem:[#allocation4 + $0x109] sm:$0xff]
      %v3110 = vld [vmem:[#allocation4 + $0x111] sm:$0xff]
      %v3111 = vld [vmem:[#allocation4 + $0x129] sm:$0xff]
      %v3112 = vld [vmem:[#allocation4 + $0x131] sm:$0xff]
      %v3113 = vld [vmem:[#allocation4 + $0x149] sm:$0xff]
      %v3114 = vld [vmem:[#allocation4 + $0x151] sm:$0xff]
      %v3115 = vld [vmem:[#allocation4 + $0x169] sm:$0xff]
      %v3116 = vld [vmem:[#allocation4 + $0x171] sm:$0xff]
      %v3117 = vld [vmem:[#allocation4 + $0x189] sm:$0xff]
      %v3118 = vld [vmem:[#allocation4 + $0x191] sm:$0xff]
      %v3119 = vld [vmem:[#allocation4 + $0x1a9] sm:$0xff]
      %v3120 = vld [vmem:[#allocation4 + $0x1b1] sm:$0xff]
      %v3121 = vld [vmem:[#allocation4 + $0x1c9] sm:$0xff]
      %v3122 = vld [vmem:[#allocation4 + $0x1d1] sm:$0xff]
      %v3123 = vld [vmem:[#allocation4 + $0x1e9] sm:$0xff]
      %v3124 = vld [vmem:[#allocation4 + $0x1f1] sm:$0xff]
      %3157 = vrot.lane.b32.xlu0 %v3093, 16
      %v3158 = vpop.permute.xlu0 %3157
      %3159 = vrot.lane.b32.xlu0 %v3094, 16
      %v3160 = vpop.permute.xlu0 %3159
      %3161 = vrot.lane.b32.xlu0 %v3095, 16
      %v3162 = vpop.permute.xlu0 %3161
      %3163 = vrot.lane.b32.xlu0 %v3096, 16
      %v3164 = vpop.permute.xlu0 %3163
      %3165 = vrot.lane.b32.xlu0 %v3097, 16
      %v3166 = vpop.permute.xlu0 %3165
      %3167 = vrot.lane.b32.xlu0 %v3098, 16
      %v3168 = vpop.permute.xlu0 %3167
      %3169 = vrot.lane.b32.xlu0 %v3099, 16
      %v3170 = vpop.permute.xlu0 %3169
      %3171 = vrot.lane.b32.xlu0 %v3100, 16
      %v3172 = vpop.permute.xlu0 %3171
      %3173 = vrot.lane.b32.xlu0 %v3101, 16
      %v3174 = vpop.permute.xlu0 %3173
      %3175 = vrot.lane.b32.xlu0 %v3102, 16
      %v3176 = vpop.permute.xlu0 %3175
      %3177 = vrot.lane.b32.xlu0 %v3103, 16
      %v3178 = vpop.permute.xlu0 %3177
      %3179 = vrot.lane.b32.xlu0 %v3104, 16
      %v3180 = vpop.permute.xlu0 %3179
      %3181 = vrot.lane.b32.xlu0 %v3105, 16
      %v3182 = vpop.permute.xlu0 %3181
      %3183 = vrot.lane.b32.xlu0 %v3106, 16
      %v3184 = vpop.permute.xlu0 %3183
      %3185 = vrot.lane.b32.xlu0 %v3107, 16
      %v3186 = vpop.permute.xlu0 %3185
      %3187 = vrot.lane.b32.xlu0 %v3108, 16
      %v3188 = vpop.permute.xlu0 %3187
      %3189 = vrot.lane.b32.xlu0 %v3109, 16
      %v3190 = vpop.permute.xlu0 %3189
      %3191 = vrot.lane.b32.xlu0 %v3110, 16
      %v3192 = vpop.permute.xlu0 %3191
      %3193 = vrot.lane.b32.xlu0 %v3111, 16
      %v3194 = vpop.permute.xlu0 %3193
      %3195 = vrot.lane.b32.xlu0 %v3112, 16
      %v3196 = vpop.permute.xlu0 %3195
      %3197 = vrot.lane.b32.xlu0 %v3113, 16
      %v3198 = vpop.permute.xlu0 %3197
      %3199 = vrot.lane.b32.xlu0 %v3114, 16
      %v3200 = vpop.permute.xlu0 %3199
      %3201 = vrot.lane.b32.xlu0 %v3115, 16
      %v3202 = vpop.permute.xlu0 %3201
      %3203 = vrot.lane.b32.xlu0 %v3116, 16
      %v3204 = vpop.permute.xlu0 %3203
      %3205 = vrot.lane.b32.xlu0 %v3117, 16
      %v3206 = vpop.permute.xlu0 %3205
      %3207 = vrot.lane.b32.xlu0 %v3118, 16
      %v3208 = vpop.permute.xlu0 %3207
      %3209 = vrot.lane.b32.xlu0 %v3119, 16
      %v3210 = vpop.permute.xlu0 %3209
      %3211 = vrot.lane.b32.xlu0 %v3120, 16
      %v3212 = vpop.permute.xlu0 %3211
      %3213 = vrot.lane.b32.xlu0 %v3121, 16
      %v3214 = vpop.permute.xlu0 %3213
      %3215 = vrot.lane.b32.xlu0 %v3122, 16
      %v3216 = vpop.permute.xlu0 %3215
      %3217 = vrot.lane.b32.xlu0 %v3123, 16
      %v3218 = vpop.permute.xlu0 %3217
      %3219 = vrot.lane.b32.xlu0 %v3124, 16
      %v3220 = vpop.permute.xlu0 %3219
      %vm3253 = vcmask 195712
      %3254 = vst.msk [vmem:[#allocation5] sm:$0xff] %vm3253, %v3158
      %3255 = vst.msk [vmem:[#allocation5 + $0x8] sm:$0xff] %vm3253, %v3160
      %3256 = vst.msk [vmem:[#allocation5 + $0x10] sm:$0xff] %vm3253, %v3162
      %3257 = vst.msk [vmem:[#allocation5 + $0x18] sm:$0xff] %vm3253, %v3164
      %3258 = vst.msk [vmem:[#allocation5 + $0x20] sm:$0xff] %vm3253, %v3166
      %3259 = vst.msk [vmem:[#allocation5 + $0x28] sm:$0xff] %vm3253, %v3168
      %3260 = vst.msk [vmem:[#allocation5 + $0x30] sm:$0xff] %vm3253, %v3170
      %3261 = vst.msk [vmem:[#allocation5 + $0x38] sm:$0xff] %vm3253, %v3172
      %3262 = vst.msk [vmem:[#allocation5 + $0x40] sm:$0xff] %vm3253, %v3174
      %3263 = vst.msk [vmem:[#allocation5 + $0x48] sm:$0xff] %vm3253, %v3176
      %3264 = vst.msk [vmem:[#allocation5 + $0x50] sm:$0xff] %vm3253, %v3178
      %3265 = vst.msk [vmem:[#allocation5 + $0x58] sm:$0xff] %vm3253, %v3180
      %3266 = vst.msk [vmem:[#allocation5 + $0x60] sm:$0xff] %vm3253, %v3182
      %3267 = vst.msk [vmem:[#allocation5 + $0x68] sm:$0xff] %vm3253, %v3184
      %3268 = vst.msk [vmem:[#allocation5 + $0x70] sm:$0xff] %vm3253, %v3186
      %3269 = vst.msk [vmem:[#allocation5 + $0x78] sm:$0xff] %vm3253, %v3188
      %3270 = vst.msk [vmem:[#allocation5 + $0x80] sm:$0xff] %vm3253, %v3190
      %3271 = vst.msk [vmem:[#allocation5 + $0x88] sm:$0xff] %vm3253, %v3192
      %3272 = vst.msk [vmem:[#allocation5 + $0x90] sm:$0xff] %vm3253, %v3194
      %3273 = vst.msk [vmem:[#allocation5 + $0x98] sm:$0xff] %vm3253, %v3196
      %3274 = vst.msk [vmem:[#allocation5 + $0xa0] sm:$0xff] %vm3253, %v3198
      %3275 = vst.msk [vmem:[#allocation5 + $0xa8] sm:$0xff] %vm3253, %v3200
      %3276 = vst.msk [vmem:[#allocation5 + $0xb0] sm:$0xff] %vm3253, %v3202
      %3277 = vst.msk [vmem:[#allocation5 + $0xb8] sm:$0xff] %vm3253, %v3204
      %3278 = vst.msk [vmem:[#allocation5 + $0xc0] sm:$0xff] %vm3253, %v3206
      %3279 = vst.msk [vmem:[#allocation5 + $0xc8] sm:$0xff] %vm3253, %v3208
      %3280 = vst.msk [vmem:[#allocation5 + $0xd0] sm:$0xff] %vm3253, %v3210
      %3281 = vst.msk [vmem:[#allocation5 + $0xd8] sm:$0xff] %vm3253, %v3212
      %3282 = vst.msk [vmem:[#allocation5 + $0xe0] sm:$0xff] %vm3253, %v3214
      %3283 = vst.msk [vmem:[#allocation5 + $0xe8] sm:$0xff] %vm3253, %v3216
      %3284 = vst.msk [vmem:[#allocation5 + $0xf0] sm:$0xff] %vm3253, %v3218
      %3285 = vst.msk [vmem:[#allocation5 + $0xf8] sm:$0xff] %vm3253, %v3220
      %v3286 = vld [vmem:[%s2803 + $0x7] sm:$0xff]
      %v3287 = vld [vmem:[%s2803 + $0xf] sm:$0xff]
      %v3288 = vld [vmem:[%s2803 + $0x27] sm:$0xff]
      %v3289 = vld [vmem:[%s2803 + $0x2f] sm:$0xff]
      %v3290 = vld [vmem:[%s2803 + $0x47] sm:$0xff]
      %v3291 = vld [vmem:[%s2803 + $0x4f] sm:$0xff]
      %v3292 = vld [vmem:[%s2803 + $0x67] sm:$0xff]
      %v3293 = vld [vmem:[%s2803 + $0x6f] sm:$0xff]
      %v3294 = vld [vmem:[%s2803 + $0x87] sm:$0xff]
      %v3295 = vld [vmem:[%s2803 + $0x8f] sm:$0xff]
      %v3296 = vld [vmem:[%s2803 + $0xa7] sm:$0xff]
      %v3297 = vld [vmem:[%s2803 + $0xaf] sm:$0xff]
      %v3298 = vld [vmem:[%s2803 + $0xc7] sm:$0xff]
      %v3299 = vld [vmem:[%s2803 + $0xcf] sm:$0xff]
      %v3300 = vld [vmem:[%s2803 + $0xe7] sm:$0xff]
      %v3301 = vld [vmem:[%s2803 + $0xef] sm:$0xff]
      %v3302 = vld [vmem:[%s2803 + $0x107] sm:$0xff]
      %v3303 = vld [vmem:[%s2803 + $0x10f] sm:$0xff]
      %v3304 = vld [vmem:[%s2803 + $0x127] sm:$0xff]
      %v3305 = vld [vmem:[%s2803 + $0x12f] sm:$0xff]
      %v3306 = vld [vmem:[%s2803 + $0x147] sm:$0xff]
      %v3307 = vld [vmem:[%s2803 + $0x14f] sm:$0xff]
      %v3308 = vld [vmem:[%s2803 + $0x167] sm:$0xff]
      %v3309 = vld [vmem:[%s2803 + $0x16f] sm:$0xff]
      %v3310 = vld [vmem:[%s2803 + $0x187] sm:$0xff]
      %v3311 = vld [vmem:[%s2803 + $0x18f] sm:$0xff]
      %v3312 = vld [vmem:[%s2803 + $0x1a7] sm:$0xff]
      %v3313 = vld [vmem:[%s2803 + $0x1af] sm:$0xff]
      %v3314 = vld [vmem:[%s2803 + $0x1c7] sm:$0xff]
      %v3315 = vld [vmem:[%s2803 + $0x1cf] sm:$0xff]
      %v3316 = vld [vmem:[%s2803 + $0x1e7] sm:$0xff]
      %v3317 = vld [vmem:[%s2803 + $0x1ef] sm:$0xff]
      %3350 = vrot.lane.b32.xlu0 %v3286, 24
      %v3351 = vpop.permute.xlu0 %3350
      %3352 = vrot.lane.b32.xlu0 %v3287, 24
      %v3353 = vpop.permute.xlu0 %3352
      %3354 = vrot.lane.b32.xlu0 %v3288, 24
      %v3355 = vpop.permute.xlu0 %3354
      %3356 = vrot.lane.b32.xlu0 %v3289, 24
      %v3357 = vpop.permute.xlu0 %3356
      %3358 = vrot.lane.b32.xlu0 %v3290, 24
      %v3359 = vpop.permute.xlu0 %3358
      %3360 = vrot.lane.b32.xlu0 %v3291, 24
      %v3361 = vpop.permute.xlu0 %3360
      %3362 = vrot.lane.b32.xlu0 %v3292, 24
      %v3363 = vpop.permute.xlu0 %3362
      %3364 = vrot.lane.b32.xlu0 %v3293, 24
      %v3365 = vpop.permute.xlu0 %3364
      %3366 = vrot.lane.b32.xlu0 %v3294, 24
      %v3367 = vpop.permute.xlu0 %3366
      %3368 = vrot.lane.b32.xlu0 %v3295, 24
      %v3369 = vpop.permute.xlu0 %3368
      %3370 = vrot.lane.b32.xlu0 %v3296, 24
      %v3371 = vpop.permute.xlu0 %3370
      %3372 = vrot.lane.b32.xlu0 %v3297, 24
      %v3373 = vpop.permute.xlu0 %3372
      %3374 = vrot.lane.b32.xlu0 %v3298, 24
      %v3375 = vpop.permute.xlu0 %3374
      %3376 = vrot.lane.b32.xlu0 %v3299, 24
      %v3377 = vpop.permute.xlu0 %3376
      %3378 = vrot.lane.b32.xlu0 %v3300, 24
      %v3379 = vpop.permute.xlu0 %3378
      %3380 = vrot.lane.b32.xlu0 %v3301, 24
      %v3381 = vpop.permute.xlu0 %3380
      %3382 = vrot.lane.b32.xlu0 %v3302, 24
      %v3383 = vpop.permute.xlu0 %3382
      %3384 = vrot.lane.b32.xlu0 %v3303, 24
      %v3385 = vpop.permute.xlu0 %3384
      %3386 = vrot.lane.b32.xlu0 %v3304, 24
      %v3387 = vpop.permute.xlu0 %3386
      %3388 = vrot.lane.b32.xlu0 %v3305, 24
      %v3389 = vpop.permute.xlu0 %3388
      %3390 = vrot.lane.b32.xlu0 %v3306, 24
      %v3391 = vpop.permute.xlu0 %3390
      %3392 = vrot.lane.b32.xlu0 %v3307, 24
      %v3393 = vpop.permute.xlu0 %3392
      %3394 = vrot.lane.b32.xlu0 %v3308, 24
      %v3395 = vpop.permute.xlu0 %3394
      %3396 = vrot.lane.b32.xlu0 %v3309, 24
      %v3397 = vpop.permute.xlu0 %3396
      %3398 = vrot.lane.b32.xlu0 %v3310, 24
      %v3399 = vpop.permute.xlu0 %3398
      %3400 = vrot.lane.b32.xlu0 %v3311, 24
      %v3401 = vpop.permute.xlu0 %3400
      %3402 = vrot.lane.b32.xlu0 %v3312, 24
      %v3403 = vpop.permute.xlu0 %3402
      %3404 = vrot.lane.b32.xlu0 %v3313, 24
      %v3405 = vpop.permute.xlu0 %3404
      %3406 = vrot.lane.b32.xlu0 %v3314, 24
      %v3407 = vpop.permute.xlu0 %3406
      %3408 = vrot.lane.b32.xlu0 %v3315, 24
      %v3409 = vpop.permute.xlu0 %3408
      %3410 = vrot.lane.b32.xlu0 %v3316, 24
      %v3411 = vpop.permute.xlu0 %3410
      %3412 = vrot.lane.b32.xlu0 %v3317, 24
      %v3413 = vpop.permute.xlu0 %3412
      %vm3446 = vcmask 261312
      %3447 = vst.msk [vmem:[#allocation5] sm:$0xff] %vm3446, %v3351
      %3448 = vst.msk [vmem:[#allocation5 + $0x8] sm:$0xff] %vm3446, %v3353
      %3449 = vst.msk [vmem:[#allocation5 + $0x10] sm:$0xff] %vm3446, %v3355
      %3450 = vst.msk [vmem:[#allocation5 + $0x18] sm:$0xff] %vm3446, %v3357
      %3451 = vst.msk [vmem:[#allocation5 + $0x20] sm:$0xff] %vm3446, %v3359
      %3452 = vst.msk [vmem:[#allocation5 + $0x28] sm:$0xff] %vm3446, %v3361
      %3453 = vst.msk [vmem:[#allocation5 + $0x30] sm:$0xff] %vm3446, %v3363
      %3454 = vst.msk [vmem:[#allocation5 + $0x38] sm:$0xff] %vm3446, %v3365
      %3455 = vst.msk [vmem:[#allocation5 + $0x40] sm:$0xff] %vm3446, %v3367
      %3456 = vst.msk [vmem:[#allocation5 + $0x48] sm:$0xff] %vm3446, %v3369
      %3457 = vst.msk [vmem:[#allocation5 + $0x50] sm:$0xff] %vm3446, %v3371
      %3458 = vst.msk [vmem:[#allocation5 + $0x58] sm:$0xff] %vm3446, %v3373
      %3459 = vst.msk [vmem:[#allocation5 + $0x60] sm:$0xff] %vm3446, %v3375
      %3460 = vst.msk [vmem:[#allocation5 + $0x68] sm:$0xff] %vm3446, %v3377
      %3461 = vst.msk [vmem:[#allocation5 + $0x70] sm:$0xff] %vm3446, %v3379
      %3462 = vst.msk [vmem:[#allocation5 + $0x78] sm:$0xff] %vm3446, %v3381
      %3463 = vst.msk [vmem:[#allocation5 + $0x80] sm:$0xff] %vm3446, %v3383
      %3464 = vst.msk [vmem:[#allocation5 + $0x88] sm:$0xff] %vm3446, %v3385
      %3465 = vst.msk [vmem:[#allocation5 + $0x90] sm:$0xff] %vm3446, %v3387
      %3466 = vst.msk [vmem:[#allocation5 + $0x98] sm:$0xff] %vm3446, %v3389
      %3467 = vst.msk [vmem:[#allocation5 + $0xa0] sm:$0xff] %vm3446, %v3391
      %3468 = vst.msk [vmem:[#allocation5 + $0xa8] sm:$0xff] %vm3446, %v3393
      %3469 = vst.msk [vmem:[#allocation5 + $0xb0] sm:$0xff] %vm3446, %v3395
      %3470 = vst.msk [vmem:[#allocation5 + $0xb8] sm:$0xff] %vm3446, %v3397
      %3471 = vst.msk [vmem:[#allocation5 + $0xc0] sm:$0xff] %vm3446, %v3399
      %3472 = vst.msk [vmem:[#allocation5 + $0xc8] sm:$0xff] %vm3446, %v3401
      %3473 = vst.msk [vmem:[#allocation5 + $0xd0] sm:$0xff] %vm3446, %v3403
      %3474 = vst.msk [vmem:[#allocation5 + $0xd8] sm:$0xff] %vm3446, %v3405
      %3475 = vst.msk [vmem:[#allocation5 + $0xe0] sm:$0xff] %vm3446, %v3407
      %3476 = vst.msk [vmem:[#allocation5 + $0xe8] sm:$0xff] %vm3446, %v3409
      %3477 = vst.msk [vmem:[#allocation5 + $0xf0] sm:$0xff] %vm3446, %v3411
      %3478 = vst.msk [vmem:[#allocation5 + $0xf8] sm:$0xff] %vm3446, %v3413
      %v3479 = vld [vmem:[%s2803 + $0x8] sm:$0xff]
      %v3480 = vld [vmem:[%s2803 + $0x10] sm:$0xff]
      %v3481 = vld [vmem:[%s2803 + $0x28] sm:$0xff]
      %v3482 = vld [vmem:[%s2803 + $0x30] sm:$0xff]
      %v3483 = vld [vmem:[%s2803 + $0x48] sm:$0xff]
      %v3484 = vld [vmem:[%s2803 + $0x50] sm:$0xff]
      %v3485 = vld [vmem:[%s2803 + $0x68] sm:$0xff]
      %v3486 = vld [vmem:[%s2803 + $0x70] sm:$0xff]
      %v3487 = vld [vmem:[%s2803 + $0x88] sm:$0xff]
      %v3488 = vld [vmem:[%s2803 + $0x90] sm:$0xff]
      %v3489 = vld [vmem:[%s2803 + $0xa8] sm:$0xff]
      %v3490 = vld [vmem:[%s2803 + $0xb0] sm:$0xff]
      %v3491 = vld [vmem:[%s2803 + $0xc8] sm:$0xff]
      %v3492 = vld [vmem:[%s2803 + $0xd0] sm:$0xff]
      %v3493 = vld [vmem:[%s2803 + $0xe8] sm:$0xff]
      %v3494 = vld [vmem:[%s2803 + $0xf0] sm:$0xff]
      %v3495 = vld [vmem:[%s2803 + $0x108] sm:$0xff]
      %v3496 = vld [vmem:[%s2803 + $0x110] sm:$0xff]
      %v3497 = vld [vmem:[%s2803 + $0x128] sm:$0xff]
      %v3498 = vld [vmem:[%s2803 + $0x130] sm:$0xff]
      %v3499 = vld [vmem:[%s2803 + $0x148] sm:$0xff]
      %v3500 = vld [vmem:[%s2803 + $0x150] sm:$0xff]
      %v3501 = vld [vmem:[%s2803 + $0x168] sm:$0xff]
      %v3502 = vld [vmem:[%s2803 + $0x170] sm:$0xff]
      %v3503 = vld [vmem:[%s2803 + $0x188] sm:$0xff]
      %v3504 = vld [vmem:[%s2803 + $0x190] sm:$0xff]
      %v3505 = vld [vmem:[%s2803 + $0x1a8] sm:$0xff]
      %v3506 = vld [vmem:[%s2803 + $0x1b0] sm:$0xff]
      %v3507 = vld [vmem:[%s2803 + $0x1c8] sm:$0xff]
      %v3508 = vld [vmem:[%s2803 + $0x1d0] sm:$0xff]
      %v3509 = vld [vmem:[%s2803 + $0x1e8] sm:$0xff]
      %v3510 = vld [vmem:[%s2803 + $0x1f0] sm:$0xff]
      %3543 = vrot.lane.b32.xlu0 %v3479, 32
      %v3544 = vpop.permute.xlu0 %3543
      %3545 = vrot.lane.b32.xlu0 %v3480, 32
      %v3546 = vpop.permute.xlu0 %3545
      %3547 = vrot.lane.b32.xlu0 %v3481, 32
      %v3548 = vpop.permute.xlu0 %3547
      %3549 = vrot.lane.b32.xlu0 %v3482, 32
      %v3550 = vpop.permute.xlu0 %3549
      %3551 = vrot.lane.b32.xlu0 %v3483, 32
      %v3552 = vpop.permute.xlu0 %3551
      %3553 = vrot.lane.b32.xlu0 %v3484, 32
      %v3554 = vpop.permute.xlu0 %3553
      %3555 = vrot.lane.b32.xlu0 %v3485, 32
      %v3556 = vpop.permute.xlu0 %3555
      %3557 = vrot.lane.b32.xlu0 %v3486, 32
      %v3558 = vpop.permute.xlu0 %3557
      %3559 = vrot.lane.b32.xlu0 %v3487, 32
      %v3560 = vpop.permute.xlu0 %3559
      %3561 = vrot.lane.b32.xlu0 %v3488, 32
      %v3562 = vpop.permute.xlu0 %3561
      %3563 = vrot.lane.b32.xlu0 %v3489, 32
      %v3564 = vpop.permute.xlu0 %3563
      %3565 = vrot.lane.b32.xlu0 %v3490, 32
      %v3566 = vpop.permute.xlu0 %3565
      %3567 = vrot.lane.b32.xlu0 %v3491, 32
      %v3568 = vpop.permute.xlu0 %3567
      %3569 = vrot.lane.b32.xlu0 %v3492, 32
      %v3570 = vpop.permute.xlu0 %3569
      %3571 = vrot.lane.b32.xlu0 %v3493, 32
      %v3572 = vpop.permute.xlu0 %3571
      %3573 = vrot.lane.b32.xlu0 %v3494, 32
      %v3574 = vpop.permute.xlu0 %3573
      %3575 = vrot.lane.b32.xlu0 %v3495, 32
      %v3576 = vpop.permute.xlu0 %3575
      %3577 = vrot.lane.b32.xlu0 %v3496, 32
      %v3578 = vpop.permute.xlu0 %3577
      %3579 = vrot.lane.b32.xlu0 %v3497, 32
      %v3580 = vpop.permute.xlu0 %3579
      %3581 = vrot.lane.b32.xlu0 %v3498, 32
      %v3582 = vpop.permute.xlu0 %3581
      %3583 = vrot.lane.b32.xlu0 %v3499, 32
      %v3584 = vpop.permute.xlu0 %3583
      %3585 = vrot.lane.b32.xlu0 %v3500, 32
      %v3586 = vpop.permute.xlu0 %3585
      %3587 = vrot.lane.b32.xlu0 %v3501, 32
      %v3588 = vpop.permute.xlu0 %3587
      %3589 = vrot.lane.b32.xlu0 %v3502, 32
      %v3590 = vpop.permute.xlu0 %3589
      %3591 = vrot.lane.b32.xlu0 %v3503, 32
      %v3592 = vpop.permute.xlu0 %3591
      %3593 = vrot.lane.b32.xlu0 %v3504, 32
      %v3594 = vpop.permute.xlu0 %3593
      %3595 = vrot.lane.b32.xlu0 %v3505, 32
      %v3596 = vpop.permute.xlu0 %3595
      %3597 = vrot.lane.b32.xlu0 %v3506, 32
      %v3598 = vpop.permute.xlu0 %3597
      %3599 = vrot.lane.b32.xlu0 %v3507, 32
      %v3600 = vpop.permute.xlu0 %3599
      %3601 = vrot.lane.b32.xlu0 %v3508, 32
      %v3602 = vpop.permute.xlu0 %3601
      %3603 = vrot.lane.b32.xlu0 %v3509, 32
      %v3604 = vpop.permute.xlu0 %3603
      %3605 = vrot.lane.b32.xlu0 %v3510, 32
      %v3606 = vpop.permute.xlu0 %3605
      %vm3639 = vcmask 326912
      %3640 = vst.msk [vmem:[#allocation5] sm:$0xff] %vm3639, %v3544
      %3641 = vst.msk [vmem:[#allocation5 + $0x8] sm:$0xff] %vm3639, %v3546
      %3642 = vst.msk [vmem:[#allocation5 + $0x10] sm:$0xff] %vm3639, %v3548
      %3643 = vst.msk [vmem:[#allocation5 + $0x18] sm:$0xff] %vm3639, %v3550
      %3644 = vst.msk [vmem:[#allocation5 + $0x20] sm:$0xff] %vm3639, %v3552
      %3645 = vst.msk [vmem:[#allocation5 + $0x28] sm:$0xff] %vm3639, %v3554
      %3646 = vst.msk [vmem:[#allocation5 + $0x30] sm:$0xff] %vm3639, %v3556
      %3647 = vst.msk [vmem:[#allocation5 + $0x38] sm:$0xff] %vm3639, %v3558
      %3648 = vst.msk [vmem:[#allocation5 + $0x40] sm:$0xff] %vm3639, %v3560
      %3649 = vst.msk [vmem:[#allocation5 + $0x48] sm:$0xff] %vm3639, %v3562
      %3650 = vst.msk [vmem:[#allocation5 + $0x50] sm:$0xff] %vm3639, %v3564
      %3651 = vst.msk [vmem:[#allocation5 + $0x58] sm:$0xff] %vm3639, %v3566
      %3652 = vst.msk [vmem:[#allocation5 + $0x60] sm:$0xff] %vm3639, %v3568
      %3653 = vst.msk [vmem:[#allocation5 + $0x68] sm:$0xff] %vm3639, %v3570
      %3654 = vst.msk [vmem:[#allocation5 + $0x70] sm:$0xff] %vm3639, %v3572
      %3655 = vst.msk [vmem:[#allocation5 + $0x78] sm:$0xff] %vm3639, %v3574
      %3656 = vst.msk [vmem:[#allocation5 + $0x80] sm:$0xff] %vm3639, %v3576
      %3657 = vst.msk [vmem:[#allocation5 + $0x88] sm:$0xff] %vm3639, %v3578
      %3658 = vst.msk [vmem:[#allocation5 + $0x90] sm:$0xff] %vm3639, %v3580
      %3659 = vst.msk [vmem:[#allocation5 + $0x98] sm:$0xff] %vm3639, %v3582
      %3660 = vst.msk [vmem:[#allocation5 + $0xa0] sm:$0xff] %vm3639, %v3584
      %3661 = vst.msk [vmem:[#allocation5 + $0xa8] sm:$0xff] %vm3639, %v3586
      %3662 = vst.msk [vmem:[#allocation5 + $0xb0] sm:$0xff] %vm3639, %v3588
      %3663 = vst.msk [vmem:[#allocation5 + $0xb8] sm:$0xff] %vm3639, %v3590
      %3664 = vst.msk [vmem:[#allocation5 + $0xc0] sm:$0xff] %vm3639, %v3592
      %3665 = vst.msk [vmem:[#allocation5 + $0xc8] sm:$0xff] %vm3639, %v3594
      %3666 = vst.msk [vmem:[#allocation5 + $0xd0] sm:$0xff] %vm3639, %v3596
      %3667 = vst.msk [vmem:[#allocation5 + $0xd8] sm:$0xff] %vm3639, %v3598
      %3668 = vst.msk [vmem:[#allocation5 + $0xe0] sm:$0xff] %vm3639, %v3600
      %3669 = vst.msk [vmem:[#allocation5 + $0xe8] sm:$0xff] %vm3639, %v3602
      %3670 = vst.msk [vmem:[#allocation5 + $0xf0] sm:$0xff] %vm3639, %v3604
      %3671 = vst.msk [vmem:[#allocation5 + $0xf8] sm:$0xff] %vm3639, %v3606
      %v3672 = vld [vmem:[%s2803 + $0x9] sm:$0xff]
      %v3673 = vld [vmem:[%s2803 + $0x11] sm:$0xff]
      %v3674 = vld [vmem:[%s2803 + $0x29] sm:$0xff]
      %v3675 = vld [vmem:[%s2803 + $0x31] sm:$0xff]
      %v3676 = vld [vmem:[%s2803 + $0x49] sm:$0xff]
      %v3677 = vld [vmem:[%s2803 + $0x51] sm:$0xff]
      %v3678 = vld [vmem:[%s2803 + $0x69] sm:$0xff]
      %v3679 = vld [vmem:[%s2803 + $0x71] sm:$0xff]
      %v3680 = vld [vmem:[%s2803 + $0x89] sm:$0xff]
      %v3681 = vld [vmem:[%s2803 + $0x91] sm:$0xff]
      %v3682 = vld [vmem:[%s2803 + $0xa9] sm:$0xff]
      %v3683 = vld [vmem:[%s2803 + $0xb1] sm:$0xff]
      %v3684 = vld [vmem:[%s2803 + $0xc9] sm:$0xff]
      %v3685 = vld [vmem:[%s2803 + $0xd1] sm:$0xff]
      %v3686 = vld [vmem:[%s2803 + $0xe9] sm:$0xff]
      %v3687 = vld [vmem:[%s2803 + $0xf1] sm:$0xff]
      %v3688 = vld [vmem:[%s2803 + $0x109] sm:$0xff]
      %v3689 = vld [vmem:[%s2803 + $0x111] sm:$0xff]
      %v3690 = vld [vmem:[%s2803 + $0x129] sm:$0xff]
      %v3691 = vld [vmem:[%s2803 + $0x131] sm:$0xff]
      %v3692 = vld [vmem:[%s2803 + $0x149] sm:$0xff]
      %v3693 = vld [vmem:[%s2803 + $0x151] sm:$0xff]
      %v3694 = vld [vmem:[%s2803 + $0x169] sm:$0xff]
      %v3695 = vld [vmem:[%s2803 + $0x171] sm:$0xff]
      %v3696 = vld [vmem:[%s2803 + $0x189] sm:$0xff]
      %v3697 = vld [vmem:[%s2803 + $0x191] sm:$0xff]
      %v3698 = vld [vmem:[%s2803 + $0x1a9] sm:$0xff]
      %v3699 = vld [vmem:[%s2803 + $0x1b1] sm:$0xff]
      %v3700 = vld [vmem:[%s2803 + $0x1c9] sm:$0xff]
      %v3701 = vld [vmem:[%s2803 + $0x1d1] sm:$0xff]
      %v3702 = vld [vmem:[%s2803 + $0x1e9] sm:$0xff]
      %v3703 = vld [vmem:[%s2803 + $0x1f1] sm:$0xff]
      %3736 = vrot.lane.b32.xlu0 %v3672, 40
      %v3737 = vpop.permute.xlu0 %3736
      %3738 = vrot.lane.b32.xlu0 %v3673, 40
      %v3739 = vpop.permute.xlu0 %3738
      %3740 = vrot.lane.b32.xlu0 %v3674, 40
      %v3741 = vpop.permute.xlu0 %3740
      %3742 = vrot.lane.b32.xlu0 %v3675, 40
      %v3743 = vpop.permute.xlu0 %3742
      %3744 = vrot.lane.b32.xlu0 %v3676, 40
      %v3745 = vpop.permute.xlu0 %3744
      %3746 = vrot.lane.b32.xlu0 %v3677, 40
      %v3747 = vpop.permute.xlu0 %3746
      %3748 = vrot.lane.b32.xlu0 %v3678, 40
      %v3749 = vpop.permute.xlu0 %3748
      %3750 = vrot.lane.b32.xlu0 %v3679, 40
      %v3751 = vpop.permute.xlu0 %3750
      %3752 = vrot.lane.b32.xlu0 %v3680, 40
      %v3753 = vpop.permute.xlu0 %3752
      %3754 = vrot.lane.b32.xlu0 %v3681, 40
      %v3755 = vpop.permute.xlu0 %3754
      %3756 = vrot.lane.b32.xlu0 %v3682, 40
      %v3757 = vpop.permute.xlu0 %3756
      %3758 = vrot.lane.b32.xlu0 %v3683, 40
      %v3759 = vpop.permute.xlu0 %3758
      %3760 = vrot.lane.b32.xlu0 %v3684, 40
      %v3761 = vpop.permute.xlu0 %3760
      %3762 = vrot.lane.b32.xlu0 %v3685, 40
      %v3763 = vpop.permute.xlu0 %3762
      %3764 = vrot.lane.b32.xlu0 %v3686, 40
      %v3765 = vpop.permute.xlu0 %3764
      %3766 = vrot.lane.b32.xlu0 %v3687, 40
      %v3767 = vpop.permute.xlu0 %3766
      %3768 = vrot.lane.b32.xlu0 %v3688, 40
      %v3769 = vpop.permute.xlu0 %3768
      %3770 = vrot.lane.b32.xlu0 %v3689, 40
      %v3771 = vpop.permute.xlu0 %3770
      %3772 = vrot.lane.b32.xlu0 %v3690, 40
      %v3773 = vpop.permute.xlu0 %3772
      %3774 = vrot.lane.b32.xlu0 %v3691, 40
      %v3775 = vpop.permute.xlu0 %3774
      %3776 = vrot.lane.b32.xlu0 %v3692, 40
      %v3777 = vpop.permute.xlu0 %3776
      %3778 = vrot.lane.b32.xlu0 %v3693, 40
      %v3779 = vpop.permute.xlu0 %3778
      %3780 = vrot.lane.b32.xlu0 %v3694, 40
      %v3781 = vpop.permute.xlu0 %3780
      %3782 = vrot.lane.b32.xlu0 %v3695, 40
      %v3783 = vpop.permute.xlu0 %3782
      %3784 = vrot.lane.b32.xlu0 %v3696, 40
      %v3785 = vpop.permute.xlu0 %3784
      %3786 = vrot.lane.b32.xlu0 %v3697, 40
      %v3787 = vpop.permute.xlu0 %3786
      %3788 = vrot.lane.b32.xlu0 %v3698, 40
      %v3789 = vpop.permute.xlu0 %3788
      %3790 = vrot.lane.b32.xlu0 %v3699, 40
      %v3791 = vpop.permute.xlu0 %3790
      %3792 = vrot.lane.b32.xlu0 %v3700, 40
      %v3793 = vpop.permute.xlu0 %3792
      %3794 = vrot.lane.b32.xlu0 %v3701, 40
      %v3795 = vpop.permute.xlu0 %3794
      %3796 = vrot.lane.b32.xlu0 %v3702, 40
      %v3797 = vpop.permute.xlu0 %3796
      %3798 = vrot.lane.b32.xlu0 %v3703, 40
      %v3799 = vpop.permute.xlu0 %3798
      %vm3832 = vcmask 392512
      %3833 = vst.msk [vmem:[#allocation5] sm:$0xff] %vm3832, %v3737
      %3834 = vst.msk [vmem:[#allocation5 + $0x8] sm:$0xff] %vm3832, %v3739
      %3835 = vst.msk [vmem:[#allocation5 + $0x10] sm:$0xff] %vm3832, %v3741
      %3836 = vst.msk [vmem:[#allocation5 + $0x18] sm:$0xff] %vm3832, %v3743
      %3837 = vst.msk [vmem:[#allocation5 + $0x20] sm:$0xff] %vm3832, %v3745
      %3838 = vst.msk [vmem:[#allocation5 + $0x28] sm:$0xff] %vm3832, %v3747
      %3839 = vst.msk [vmem:[#allocation5 + $0x30] sm:$0xff] %vm3832, %v3749
      %3840 = vst.msk [vmem:[#allocation5 + $0x38] sm:$0xff] %vm3832, %v3751
      %3841 = vst.msk [vmem:[#allocation5 + $0x40] sm:$0xff] %vm3832, %v3753
      %3842 = vst.msk [vmem:[#allocation5 + $0x48] sm:$0xff] %vm3832, %v3755
      %3843 = vst.msk [vmem:[#allocation5 + $0x50] sm:$0xff] %vm3832, %v3757
      %3844 = vst.msk [vmem:[#allocation5 + $0x58] sm:$0xff] %vm3832, %v3759
      %3845 = vst.msk [vmem:[#allocation5 + $0x60] sm:$0xff] %vm3832, %v3761
      %3846 = vst.msk [vmem:[#allocation5 + $0x68] sm:$0xff] %vm3832, %v3763
      %3847 = vst.msk [vmem:[#allocation5 + $0x70] sm:$0xff] %vm3832, %v3765
      %3848 = vst.msk [vmem:[#allocation5 + $0x78] sm:$0xff] %vm3832, %v3767
      %3849 = vst.msk [vmem:[#allocation5 + $0x80] sm:$0xff] %vm3832, %v3769
      %3850 = vst.msk [vmem:[#allocation5 + $0x88] sm:$0xff] %vm3832, %v3771
      %3851 = vst.msk [vmem:[#allocation5 + $0x90] sm:$0xff] %vm3832, %v3773
      %3852 = vst.msk [vmem:[#allocation5 + $0x98] sm:$0xff] %vm3832, %v3775
      %3853 = vst.msk [vmem:[#allocation5 + $0xa0] sm:$0xff] %vm3832, %v3777
      %3854 = vst.msk [vmem:[#allocation5 + $0xa8] sm:$0xff] %vm3832, %v3779
      %3855 = vst.msk [vmem:[#allocation5 + $0xb0] sm:$0xff] %vm3832, %v3781
      %3856 = vst.msk [vmem:[#allocation5 + $0xb8] sm:$0xff] %vm3832, %v3783
      %3857 = vst.msk [vmem:[#allocation5 + $0xc0] sm:$0xff] %vm3832, %v3785
      %3858 = vst.msk [vmem:[#allocation5 + $0xc8] sm:$0xff] %vm3832, %v3787
      %3859 = vst.msk [vmem:[#allocation5 + $0xd0] sm:$0xff] %vm3832, %v3789
      %3860 = vst.msk [vmem:[#allocation5 + $0xd8] sm:$0xff] %vm3832, %v3791
      %3861 = vst.msk [vmem:[#allocation5 + $0xe0] sm:$0xff] %vm3832, %v3793
      %3862 = vst.msk [vmem:[#allocation5 + $0xe8] sm:$0xff] %vm3832, %v3795
      %3863 = vst.msk [vmem:[#allocation5 + $0xf0] sm:$0xff] %vm3832, %v3797
      %3864 = vst.msk [vmem:[#allocation5 + $0xf8] sm:$0xff] %vm3832, %v3799
      %s3865 = scalar_lea.vmem [#allocation4], 64
      %v3866 = vld [vmem:[%s3865 + $0x7] sm:$0xff]
      %v3867 = vld [vmem:[%s3865 + $0xf] sm:$0xff]
      %v3868 = vld [vmem:[%s3865 + $0x27] sm:$0xff]
      %v3869 = vld [vmem:[%s3865 + $0x2f] sm:$0xff]
      %v3870 = vld [vmem:[%s3865 + $0x47] sm:$0xff]
      %v3871 = vld [vmem:[%s3865 + $0x4f] sm:$0xff]
      %v3872 = vld [vmem:[%s3865 + $0x67] sm:$0xff]
      %v3873 = vld [vmem:[%s3865 + $0x6f] sm:$0xff]
      %v3874 = vld [vmem:[%s3865 + $0x87] sm:$0xff]
      %v3875 = vld [vmem:[%s3865 + $0x8f] sm:$0xff]
      %v3876 = vld [vmem:[%s3865 + $0xa7] sm:$0xff]
      %v3877 = vld [vmem:[%s3865 + $0xaf] sm:$0xff]
      %v3878 = vld [vmem:[%s3865 + $0xc7] sm:$0xff]
      %v3879 = vld [vmem:[%s3865 + $0xcf] sm:$0xff]
      %v3880 = vld [vmem:[%s3865 + $0xe7] sm:$0xff]
      %v3881 = vld [vmem:[%s3865 + $0xef] sm:$0xff]
      %v3882 = vld [vmem:[%s3865 + $0x107] sm:$0xff]
      %v3883 = vld [vmem:[%s3865 + $0x10f] sm:$0xff]
      %v3884 = vld [vmem:[%s3865 + $0x127] sm:$0xff]
      %v3885 = vld [vmem:[%s3865 + $0x12f] sm:$0xff]
      %v3886 = vld [vmem:[%s3865 + $0x147] sm:$0xff]
      %v3887 = vld [vmem:[%s3865 + $0x14f] sm:$0xff]
      %v3888 = vld [vmem:[%s3865 + $0x167] sm:$0xff]
      %v3889 = vld [vmem:[%s3865 + $0x16f] sm:$0xff]
      %v3890 = vld [vmem:[%s3865 + $0x187] sm:$0xff]
      %v3891 = vld [vmem:[%s3865 + $0x18f] sm:$0xff]
      %v3892 = vld [vmem:[%s3865 + $0x1a7] sm:$0xff]
      %v3893 = vld [vmem:[%s3865 + $0x1af] sm:$0xff]
      %v3894 = vld [vmem:[%s3865 + $0x1c7] sm:$0xff]
      %v3895 = vld [vmem:[%s3865 + $0x1cf] sm:$0xff]
      %v3896 = vld [vmem:[%s3865 + $0x1e7] sm:$0xff]
      %v3897 = vld [vmem:[%s3865 + $0x1ef] sm:$0xff]
      %3930 = vrot.lane.b32.xlu0 %v3866, 48
      %v3931 = vpop.permute.xlu0 %3930
      %3932 = vrot.lane.b32.xlu0 %v3867, 48
      %v3933 = vpop.permute.xlu0 %3932
      %3934 = vrot.lane.b32.xlu0 %v3868, 48
      %v3935 = vpop.permute.xlu0 %3934
      %3936 = vrot.lane.b32.xlu0 %v3869, 48
      %v3937 = vpop.permute.xlu0 %3936
      %3938 = vrot.lane.b32.xlu0 %v3870, 48
      %v3939 = vpop.permute.xlu0 %3938
      %3940 = vrot.lane.b32.xlu0 %v3871, 48
      %v3941 = vpop.permute.xlu0 %3940
      %3942 = vrot.lane.b32.xlu0 %v3872, 48
      %v3943 = vpop.permute.xlu0 %3942
      %3944 = vrot.lane.b32.xlu0 %v3873, 48
      %v3945 = vpop.permute.xlu0 %3944
      %3946 = vrot.lane.b32.xlu0 %v3874, 48
      %v3947 = vpop.permute.xlu0 %3946
      %3948 = vrot.lane.b32.xlu0 %v3875, 48
      %v3949 = vpop.permute.xlu0 %3948
      %3950 = vrot.lane.b32.xlu0 %v3876, 48
      %v3951 = vpop.permute.xlu0 %3950
      %3952 = vrot.lane.b32.xlu0 %v3877, 48
      %v3953 = vpop.permute.xlu0 %3952
      %3954 = vrot.lane.b32.xlu0 %v3878, 48
      %v3955 = vpop.permute.xlu0 %3954
      %3956 = vrot.lane.b32.xlu0 %v3879, 48
      %v3957 = vpop.permute.xlu0 %3956
      %3958 = vrot.lane.b32.xlu0 %v3880, 48
      %v3959 = vpop.permute.xlu0 %3958
      %3960 = vrot.lane.b32.xlu0 %v3881, 48
      %v3961 = vpop.permute.xlu0 %3960
      %3962 = vrot.lane.b32.xlu0 %v3882, 48
      %v3963 = vpop.permute.xlu0 %3962
      %3964 = vrot.lane.b32.xlu0 %v3883, 48
      %v3965 = vpop.permute.xlu0 %3964
      %3966 = vrot.lane.b32.xlu0 %v3884, 48
      %v3967 = vpop.permute.xlu0 %3966
      %3968 = vrot.lane.b32.xlu0 %v3885, 48
      %v3969 = vpop.permute.xlu0 %3968
      %3970 = vrot.lane.b32.xlu0 %v3886, 48
      %v3971 = vpop.permute.xlu0 %3970
      %3972 = vrot.lane.b32.xlu0 %v3887, 48
      %v3973 = vpop.permute.xlu0 %3972
      %3974 = vrot.lane.b32.xlu0 %v3888, 48
      %v3975 = vpop.permute.xlu0 %3974
      %3976 = vrot.lane.b32.xlu0 %v3889, 48
      %v3977 = vpop.permute.xlu0 %3976
      %3978 = vrot.lane.b32.xlu0 %v3890, 48
      %v3979 = vpop.permute.xlu0 %3978
      %3980 = vrot.lane.b32.xlu0 %v3891, 48
      %v3981 = vpop.permute.xlu0 %3980
      %3982 = vrot.lane.b32.xlu0 %v3892, 48
      %v3983 = vpop.permute.xlu0 %3982
      %3984 = vrot.lane.b32.xlu0 %v3893, 48
      %v3985 = vpop.permute.xlu0 %3984
      %3986 = vrot.lane.b32.xlu0 %v3894, 48
      %v3987 = vpop.permute.xlu0 %3986
      %3988 = vrot.lane.b32.xlu0 %v3895, 48
      %v3989 = vpop.permute.xlu0 %3988
      %3990 = vrot.lane.b32.xlu0 %v3896, 48
      %v3991 = vpop.permute.xlu0 %3990
      %3992 = vrot.lane.b32.xlu0 %v3897, 48
      %v3993 = vpop.permute.xlu0 %3992
      %vm4026 = vcmask 458112
      %4027 = vst.msk [vmem:[#allocation5] sm:$0xff] %vm4026, %v3931
      %4028 = vst.msk [vmem:[#allocation5 + $0x8] sm:$0xff] %vm4026, %v3933
      %4029 = vst.msk [vmem:[#allocation5 + $0x10] sm:$0xff] %vm4026, %v3935
      %4030 = vst.msk [vmem:[#allocation5 + $0x18] sm:$0xff] %vm4026, %v3937
      %4031 = vst.msk [vmem:[#allocation5 + $0x20] sm:$0xff] %vm4026, %v3939
      %4032 = vst.msk [vmem:[#allocation5 + $0x28] sm:$0xff] %vm4026, %v3941
      %4033 = vst.msk [vmem:[#allocation5 + $0x30] sm:$0xff] %vm4026, %v3943
      %4034 = vst.msk [vmem:[#allocation5 + $0x38] sm:$0xff] %vm4026, %v3945
      %4035 = vst.msk [vmem:[#allocation5 + $0x40] sm:$0xff] %vm4026, %v3947
      %4036 = vst.msk [vmem:[#allocation5 + $0x48] sm:$0xff] %vm4026, %v3949
      %4037 = vst.msk [vmem:[#allocation5 + $0x50] sm:$0xff] %vm4026, %v3951
      %4038 = vst.msk [vmem:[#allocation5 + $0x58] sm:$0xff] %vm4026, %v3953
      %4039 = vst.msk [vmem:[#allocation5 + $0x60] sm:$0xff] %vm4026, %v3955
      %4040 = vst.msk [vmem:[#allocation5 + $0x68] sm:$0xff] %vm4026, %v3957
      %4041 = vst.msk [vmem:[#allocation5 + $0x70] sm:$0xff] %vm4026, %v3959
      %4042 = vst.msk [vmem:[#allocation5 + $0x78] sm:$0xff] %vm4026, %v3961
      %4043 = vst.msk [vmem:[#allocation5 + $0x80] sm:$0xff] %vm4026, %v3963
      %4044 = vst.msk [vmem:[#allocation5 + $0x88] sm:$0xff] %vm4026, %v3965
      %4045 = vst.msk [vmem:[#allocation5 + $0x90] sm:$0xff] %vm4026, %v3967
      %4046 = vst.msk [vmem:[#allocation5 + $0x98] sm:$0xff] %vm4026, %v3969
      %4047 = vst.msk [vmem:[#allocation5 + $0xa0] sm:$0xff] %vm4026, %v3971
      %4048 = vst.msk [vmem:[#allocation5 + $0xa8] sm:$0xff] %vm4026, %v3973
      %4049 = vst.msk [vmem:[#allocation5 + $0xb0] sm:$0xff] %vm4026, %v3975
      %4050 = vst.msk [vmem:[#allocation5 + $0xb8] sm:$0xff] %vm4026, %v3977
      %4051 = vst.msk [vmem:[#allocation5 + $0xc0] sm:$0xff] %vm4026, %v3979
      %4052 = vst.msk [vmem:[#allocation5 + $0xc8] sm:$0xff] %vm4026, %v3981
      %4053 = vst.msk [vmem:[#allocation5 + $0xd0] sm:$0xff] %vm4026, %v3983
      %4054 = vst.msk [vmem:[#allocation5 + $0xd8] sm:$0xff] %vm4026, %v3985
      %4055 = vst.msk [vmem:[#allocation5 + $0xe0] sm:$0xff] %vm4026, %v3987
      %4056 = vst.msk [vmem:[#allocation5 + $0xe8] sm:$0xff] %vm4026, %v3989
      %4057 = vst.msk [vmem:[#allocation5 + $0xf0] sm:$0xff] %vm4026, %v3991
      %4058 = vst.msk [vmem:[#allocation5 + $0xf8] sm:$0xff] %vm4026, %v3993
      %v4059 = vld [vmem:[%s3865 + $0x8] sm:$0xff]
      %v4060 = vld [vmem:[%s3865 + $0x10] sm:$0xff]
      %v4061 = vld [vmem:[%s3865 + $0x28] sm:$0xff]
      %v4062 = vld [vmem:[%s3865 + $0x30] sm:$0xff]
      %v4063 = vld [vmem:[%s3865 + $0x48] sm:$0xff]
      %v4064 = vld [vmem:[%s3865 + $0x50] sm:$0xff]
      %v4065 = vld [vmem:[%s3865 + $0x68] sm:$0xff]
      %v4066 = vld [vmem:[%s3865 + $0x70] sm:$0xff]
      %v4067 = vld [vmem:[%s3865 + $0x88] sm:$0xff]
      %v4068 = vld [vmem:[%s3865 + $0x90] sm:$0xff]
      %v4069 = vld [vmem:[%s3865 + $0xa8] sm:$0xff]
      %v4070 = vld [vmem:[%s3865 + $0xb0] sm:$0xff]
      %v4071 = vld [vmem:[%s3865 + $0xc8] sm:$0xff]
      %v4072 = vld [vmem:[%s3865 + $0xd0] sm:$0xff]
      %v4073 = vld [vmem:[%s3865 + $0xe8] sm:$0xff]
      %v4074 = vld [vmem:[%s3865 + $0xf0] sm:$0xff]
      %v4075 = vld [vmem:[%s3865 + $0x108] sm:$0xff]
      %v4076 = vld [vmem:[%s3865 + $0x110] sm:$0xff]
      %v4077 = vld [vmem:[%s3865 + $0x128] sm:$0xff]
      %v4078 = vld [vmem:[%s3865 + $0x130] sm:$0xff]
      %v4079 = vld [vmem:[%s3865 + $0x148] sm:$0xff]
      %v4080 = vld [vmem:[%s3865 + $0x150] sm:$0xff]
      %v4081 = vld [vmem:[%s3865 + $0x168] sm:$0xff]
      %v4082 = vld [vmem:[%s3865 + $0x170] sm:$0xff]
      %v4083 = vld [vmem:[%s3865 + $0x188] sm:$0xff]
      %v4084 = vld [vmem:[%s3865 + $0x190] sm:$0xff]
      %v4085 = vld [vmem:[%s3865 + $0x1a8] sm:$0xff]
      %v4086 = vld [vmem:[%s3865 + $0x1b0] sm:$0xff]
      %v4087 = vld [vmem:[%s3865 + $0x1c8] sm:$0xff]
      %v4088 = vld [vmem:[%s3865 + $0x1d0] sm:$0xff]
      %v4089 = vld [vmem:[%s3865 + $0x1e8] sm:$0xff]
      %v4090 = vld [vmem:[%s3865 + $0x1f0] sm:$0xff]
      %4123 = vrot.lane.b32.xlu0 %v4059, 56
      %v4124 = vpop.permute.xlu0 %4123
      %4125 = vrot.lane.b32.xlu0 %v4060, 56
      %v4126 = vpop.permute.xlu0 %4125
      %4127 = vrot.lane.b32.xlu0 %v4061, 56
      %v4128 = vpop.permute.xlu0 %4127
      %4129 = vrot.lane.b32.xlu0 %v4062, 56
      %v4130 = vpop.permute.xlu0 %4129
      %4131 = vrot.lane.b32.xlu0 %v4063, 56
      %v4132 = vpop.permute.xlu0 %4131
      %4133 = vrot.lane.b32.xlu0 %v4064, 56
      %v4134 = vpop.permute.xlu0 %4133
      %4135 = vrot.lane.b32.xlu0 %v4065, 56
      %v4136 = vpop.permute.xlu0 %4135
      %4137 = vrot.lane.b32.xlu0 %v4066, 56
      %v4138 = vpop.permute.xlu0 %4137
      %4139 = vrot.lane.b32.xlu0 %v4067, 56
      %v4140 = vpop.permute.xlu0 %4139
      %4141 = vrot.lane.b32.xlu0 %v4068, 56
      %v4142 = vpop.permute.xlu0 %4141
      %4143 = vrot.lane.b32.xlu0 %v4069, 56
      %v4144 = vpop.permute.xlu0 %4143
      %4145 = vrot.lane.b32.xlu0 %v4070, 56
      %v4146 = vpop.permute.xlu0 %4145
      %4147 = vrot.lane.b32.xlu0 %v4071, 56
      %v4148 = vpop.permute.xlu0 %4147
      %4149 = vrot.lane.b32.xlu0 %v4072, 56
      %v4150 = vpop.permute.xlu0 %4149
      %4151 = vrot.lane.b32.xlu0 %v4073, 56
      %v4152 = vpop.permute.xlu0 %4151
      %4153 = vrot.lane.b32.xlu0 %v4074, 56
      %v4154 = vpop.permute.xlu0 %4153
      %4155 = vrot.lane.b32.xlu0 %v4075, 56
      %v4156 = vpop.permute.xlu0 %4155
      %4157 = vrot.lane.b32.xlu0 %v4076, 56
      %v4158 = vpop.permute.xlu0 %4157
      %4159 = vrot.lane.b32.xlu0 %v4077, 56
      %v4160 = vpop.permute.xlu0 %4159
      %4161 = vrot.lane.b32.xlu0 %v4078, 56
      %v4162 = vpop.permute.xlu0 %4161
      %4163 = vrot.lane.b32.xlu0 %v4079, 56
      %v4164 = vpop.permute.xlu0 %4163
      %4165 = vrot.lane.b32.xlu0 %v4080, 56
      %v4166 = vpop.permute.xlu0 %4165
      %4167 = vrot.lane.b32.xlu0 %v4081, 56
      %v4168 = vpop.permute.xlu0 %4167
      %4169 = vrot.lane.b32.xlu0 %v4082, 56
      %v4170 = vpop.permute.xlu0 %4169
      %4171 = vrot.lane.b32.xlu0 %v4083, 56
      %v4172 = vpop.permute.xlu0 %4171
      %4173 = vrot.lane.b32.xlu0 %v4084, 56
      %v4174 = vpop.permute.xlu0 %4173
      %4175 = vrot.lane.b32.xlu0 %v4085, 56
      %v4176 = vpop.permute.xlu0 %4175
      %4177 = vrot.lane.b32.xlu0 %v4086, 56
      %v4178 = vpop.permute.xlu0 %4177
      %4179 = vrot.lane.b32.xlu0 %v4087, 56
      %v4180 = vpop.permute.xlu0 %4179
      %4181 = vrot.lane.b32.xlu0 %v4088, 56
      %v4182 = vpop.permute.xlu0 %4181
      %4183 = vrot.lane.b32.xlu0 %v4089, 56
      %v4184 = vpop.permute.xlu0 %4183
      %4185 = vrot.lane.b32.xlu0 %v4090, 56
      %v4186 = vpop.permute.xlu0 %4185
      %vm4219 = vcmask 523712
      %4220 = vst.msk [vmem:[#allocation5] sm:$0xff] %vm4219, %v4124
      %4221 = vst.msk [vmem:[#allocation5 + $0x8] sm:$0xff] %vm4219, %v4126
      %4222 = vst.msk [vmem:[#allocation5 + $0x10] sm:$0xff] %vm4219, %v4128
      %4223 = vst.msk [vmem:[#allocation5 + $0x18] sm:$0xff] %vm4219, %v4130
      %4224 = vst.msk [vmem:[#allocation5 + $0x20] sm:$0xff] %vm4219, %v4132
      %4225 = vst.msk [vmem:[#allocation5 + $0x28] sm:$0xff] %vm4219, %v4134
      %4226 = vst.msk [vmem:[#allocation5 + $0x30] sm:$0xff] %vm4219, %v4136
      %4227 = vst.msk [vmem:[#allocation5 + $0x38] sm:$0xff] %vm4219, %v4138
      %4228 = vst.msk [vmem:[#allocation5 + $0x40] sm:$0xff] %vm4219, %v4140
      %4229 = vst.msk [vmem:[#allocation5 + $0x48] sm:$0xff] %vm4219, %v4142
      %4230 = vst.msk [vmem:[#allocation5 + $0x50] sm:$0xff] %vm4219, %v4144
      %4231 = vst.msk [vmem:[#allocation5 + $0x58] sm:$0xff] %vm4219, %v4146
      %4232 = vst.msk [vmem:[#allocation5 + $0x60] sm:$0xff] %vm4219, %v4148
      %4233 = vst.msk [vmem:[#allocation5 + $0x68] sm:$0xff] %vm4219, %v4150
      %4234 = vst.msk [vmem:[#allocation5 + $0x70] sm:$0xff] %vm4219, %v4152
      %4235 = vst.msk [vmem:[#allocation5 + $0x78] sm:$0xff] %vm4219, %v4154
      %4236 = vst.msk [vmem:[#allocation5 + $0x80] sm:$0xff] %vm4219, %v4156
      %4237 = vst.msk [vmem:[#allocation5 + $0x88] sm:$0xff] %vm4219, %v4158
      %4238 = vst.msk [vmem:[#allocation5 + $0x90] sm:$0xff] %vm4219, %v4160
      %4239 = vst.msk [vmem:[#allocation5 + $0x98] sm:$0xff] %vm4219, %v4162
      %4240 = vst.msk [vmem:[#allocation5 + $0xa0] sm:$0xff] %vm4219, %v4164
      %4241 = vst.msk [vmem:[#allocation5 + $0xa8] sm:$0xff] %vm4219, %v4166
      %4242 = vst.msk [vmem:[#allocation5 + $0xb0] sm:$0xff] %vm4219, %v4168
      %4243 = vst.msk [vmem:[#allocation5 + $0xb8] sm:$0xff] %vm4219, %v4170
      %4244 = vst.msk [vmem:[#allocation5 + $0xc0] sm:$0xff] %vm4219, %v4172
      %4245 = vst.msk [vmem:[#allocation5 + $0xc8] sm:$0xff] %vm4219, %v4174
      %4246 = vst.msk [vmem:[#allocation5 + $0xd0] sm:$0xff] %vm4219, %v4176
      %4247 = vst.msk [vmem:[#allocation5 + $0xd8] sm:$0xff] %vm4219, %v4178
      %4248 = vst.msk [vmem:[#allocation5 + $0xe0] sm:$0xff] %vm4219, %v4180
      %4249 = vst.msk [vmem:[#allocation5 + $0xe8] sm:$0xff] %vm4219, %v4182
      %4250 = vst.msk [vmem:[#allocation5 + $0xf0] sm:$0xff] %vm4219, %v4184
      %4251 = vst.msk [vmem:[#allocation5 + $0xf8] sm:$0xff] %vm4219, %v4186
      %v4252 = vld [vmem:[%s3865 + $0x9] sm:$0xff]
      %v4253 = vld [vmem:[%s3865 + $0x11] sm:$0xff]
      %v4254 = vld [vmem:[%s3865 + $0x29] sm:$0xff]
      %v4255 = vld [vmem:[%s3865 + $0x31] sm:$0xff]
      %v4256 = vld [vmem:[%s3865 + $0x49] sm:$0xff]
      %v4257 = vld [vmem:[%s3865 + $0x51] sm:$0xff]
      %v4258 = vld [vmem:[%s3865 + $0x69] sm:$0xff]
      %v4259 = vld [vmem:[%s3865 + $0x71] sm:$0xff]
      %v4260 = vld [vmem:[%s3865 + $0x89] sm:$0xff]
      %v4261 = vld [vmem:[%s3865 + $0x91] sm:$0xff]
      %v4262 = vld [vmem:[%s3865 + $0xa9] sm:$0xff]
      %v4263 = vld [vmem:[%s3865 + $0xb1] sm:$0xff]
      %v4264 = vld [vmem:[%s3865 + $0xc9] sm:$0xff]
      %v4265 = vld [vmem:[%s3865 + $0xd1] sm:$0xff]
      %v4266 = vld [vmem:[%s3865 + $0xe9] sm:$0xff]
      %v4267 = vld [vmem:[%s3865 + $0xf1] sm:$0xff]
      %v4268 = vld [vmem:[%s3865 + $0x109] sm:$0xff]
      %v4269 = vld [vmem:[%s3865 + $0x111] sm:$0xff]
      %v4270 = vld [vmem:[%s3865 + $0x129] sm:$0xff]
      %v4271 = vld [vmem:[%s3865 + $0x131] sm:$0xff]
      %v4272 = vld [vmem:[%s3865 + $0x149] sm:$0xff]
      %v4273 = vld [vmem:[%s3865 + $0x151] sm:$0xff]
      %v4274 = vld [vmem:[%s3865 + $0x169] sm:$0xff]
      %v4275 = vld [vmem:[%s3865 + $0x171] sm:$0xff]
      %v4276 = vld [vmem:[%s3865 + $0x189] sm:$0xff]
      %v4277 = vld [vmem:[%s3865 + $0x191] sm:$0xff]
      %v4278 = vld [vmem:[%s3865 + $0x1a9] sm:$0xff]
      %v4279 = vld [vmem:[%s3865 + $0x1b1] sm:$0xff]
      %v4280 = vld [vmem:[%s3865 + $0x1c9] sm:$0xff]
      %v4281 = vld [vmem:[%s3865 + $0x1d1] sm:$0xff]
      %v4282 = vld [vmem:[%s3865 + $0x1e9] sm:$0xff]
      %v4283 = vld [vmem:[%s3865 + $0x1f1] sm:$0xff]
      %4316 = vrot.lane.b32.xlu0 %v4252, 64
      %v4317 = vpop.permute.xlu0 %4316
      %4318 = vrot.lane.b32.xlu0 %v4253, 64
      %v4319 = vpop.permute.xlu0 %4318
      %4320 = vrot.lane.b32.xlu0 %v4254, 64
      %v4321 = vpop.permute.xlu0 %4320
      %4322 = vrot.lane.b32.xlu0 %v4255, 64
      %v4323 = vpop.permute.xlu0 %4322
      %4324 = vrot.lane.b32.xlu0 %v4256, 64
      %v4325 = vpop.permute.xlu0 %4324
      %4326 = vrot.lane.b32.xlu0 %v4257, 64
      %v4327 = vpop.permute.xlu0 %4326
      %4328 = vrot.lane.b32.xlu0 %v4258, 64
      %v4329 = vpop.permute.xlu0 %4328
      %4330 = vrot.lane.b32.xlu0 %v4259, 64
      %v4331 = vpop.permute.xlu0 %4330
      %4332 = vrot.lane.b32.xlu0 %v4260, 64
      %v4333 = vpop.permute.xlu0 %4332
      %4334 = vrot.lane.b32.xlu0 %v4261, 64
      %v4335 = vpop.permute.xlu0 %4334
      %4336 = vrot.lane.b32.xlu0 %v4262, 64
      %v4337 = vpop.permute.xlu0 %4336
      %4338 = vrot.lane.b32.xlu0 %v4263, 64
      %v4339 = vpop.permute.xlu0 %4338
      %4340 = vrot.lane.b32.xlu0 %v4264, 64
      %v4341 = vpop.permute.xlu0 %4340
      %4342 = vrot.lane.b32.xlu0 %v4265, 64
      %v4343 = vpop.permute.xlu0 %4342
      %4344 = vrot.lane.b32.xlu0 %v4266, 64
      %v4345 = vpop.permute.xlu0 %4344
      %4346 = vrot.lane.b32.xlu0 %v4267, 64
      %v4347 = vpop.permute.xlu0 %4346
      %4348 = vrot.lane.b32.xlu0 %v4268, 64
      %v4349 = vpop.permute.xlu0 %4348
      %4350 = vrot.lane.b32.xlu0 %v4269, 64
      %v4351 = vpop.permute.xlu0 %4350
      %4352 = vrot.lane.b32.xlu0 %v4270, 64
      %v4353 = vpop.permute.xlu0 %4352
      %4354 = vrot.lane.b32.xlu0 %v4271, 64
      %v4355 = vpop.permute.xlu0 %4354
      %4356 = vrot.lane.b32.xlu0 %v4272, 64
      %v4357 = vpop.permute.xlu0 %4356
      %4358 = vrot.lane.b32.xlu0 %v4273, 64
      %v4359 = vpop.permute.xlu0 %4358
      %4360 = vrot.lane.b32.xlu0 %v4274, 64
      %v4361 = vpop.permute.xlu0 %4360
      %4362 = vrot.lane.b32.xlu0 %v4275, 64
      %v4363 = vpop.permute.xlu0 %4362
      %4364 = vrot.lane.b32.xlu0 %v4276, 64
      %v4365 = vpop.permute.xlu0 %4364
      %4366 = vrot.lane.b32.xlu0 %v4277, 64
      %v4367 = vpop.permute.xlu0 %4366
      %4368 = vrot.lane.b32.xlu0 %v4278, 64
      %v4369 = vpop.permute.xlu0 %4368
      %4370 = vrot.lane.b32.xlu0 %v4279, 64
      %v4371 = vpop.permute.xlu0 %4370
      %4372 = vrot.lane.b32.xlu0 %v4280, 64
      %v4373 = vpop.permute.xlu0 %4372
      %4374 = vrot.lane.b32.xlu0 %v4281, 64
      %v4375 = vpop.permute.xlu0 %4374
      %4376 = vrot.lane.b32.xlu0 %v4282, 64
      %v4377 = vpop.permute.xlu0 %4376
      %4378 = vrot.lane.b32.xlu0 %v4283, 64
      %v4379 = vpop.permute.xlu0 %4378
      %vm4412 = vcmask 589312
      %4413 = vst.msk [vmem:[#allocation5] sm:$0xff] %vm4412, %v4317
      %4414 = vst.msk [vmem:[#allocation5 + $0x8] sm:$0xff] %vm4412, %v4319
      %4415 = vst.msk [vmem:[#allocation5 + $0x10] sm:$0xff] %vm4412, %v4321
      %4416 = vst.msk [vmem:[#allocation5 + $0x18] sm:$0xff] %vm4412, %v4323
      %4417 = vst.msk [vmem:[#allocation5 + $0x20] sm:$0xff] %vm4412, %v4325
      %4418 = vst.msk [vmem:[#allocation5 + $0x28] sm:$0xff] %vm4412, %v4327
      %4419 = vst.msk [vmem:[#allocation5 + $0x30] sm:$0xff] %vm4412, %v4329
      %4420 = vst.msk [vmem:[#allocation5 + $0x38] sm:$0xff] %vm4412, %v4331
      %4421 = vst.msk [vmem:[#allocation5 + $0x40] sm:$0xff] %vm4412, %v4333
      %4422 = vst.msk [vmem:[#allocation5 + $0x48] sm:$0xff] %vm4412, %v4335
      %4423 = vst.msk [vmem:[#allocation5 + $0x50] sm:$0xff] %vm4412, %v4337
      %4424 = vst.msk [vmem:[#allocation5 + $0x58] sm:$0xff] %vm4412, %v4339
      %4425 = vst.msk [vmem:[#allocation5 + $0x60] sm:$0xff] %vm4412, %v4341
      %4426 = vst.msk [vmem:[#allocation5 + $0x68] sm:$0xff] %vm4412, %v4343
      %4427 = vst.msk [vmem:[#allocation5 + $0x70] sm:$0xff] %vm4412, %v4345
      %4428 = vst.msk [vmem:[#allocation5 + $0x78] sm:$0xff] %vm4412, %v4347
      %4429 = vst.msk [vmem:[#allocation5 + $0x80] sm:$0xff] %vm4412, %v4349
      %4430 = vst.msk [vmem:[#allocation5 + $0x88] sm:$0xff] %vm4412, %v4351
      %4431 = vst.msk [vmem:[#allocation5 + $0x90] sm:$0xff] %vm4412, %v4353
      %4432 = vst.msk [vmem:[#allocation5 + $0x98] sm:$0xff] %vm4412, %v4355
      %4433 = vst.msk [vmem:[#allocation5 + $0xa0] sm:$0xff] %vm4412, %v4357
      %4434 = vst.msk [vmem:[#allocation5 + $0xa8] sm:$0xff] %vm4412, %v4359
      %4435 = vst.msk [vmem:[#allocation5 + $0xb0] sm:$0xff] %vm4412, %v4361
      %4436 = vst.msk [vmem:[#allocation5 + $0xb8] sm:$0xff] %vm4412, %v4363
      %4437 = vst.msk [vmem:[#allocation5 + $0xc0] sm:$0xff] %vm4412, %v4365
      %4438 = vst.msk [vmem:[#allocation5 + $0xc8] sm:$0xff] %vm4412, %v4367
      %4439 = vst.msk [vmem:[#allocation5 + $0xd0] sm:$0xff] %vm4412, %v4369
      %4440 = vst.msk [vmem:[#allocation5 + $0xd8] sm:$0xff] %vm4412, %v4371
      %4441 = vst.msk [vmem:[#allocation5 + $0xe0] sm:$0xff] %vm4412, %v4373
      %4442 = vst.msk [vmem:[#allocation5 + $0xe8] sm:$0xff] %vm4412, %v4375
      %4443 = vst.msk [vmem:[#allocation5 + $0xf0] sm:$0xff] %vm4412, %v4377
      %4444 = vst.msk [vmem:[#allocation5 + $0xf8] sm:$0xff] %vm4412, %v4379
      %v4445 = vld [vmem:[#allocation5] sm:$0xff]
      %v4446 = vld [vmem:[#allocation5 + $0x8] sm:$0xff]
      %v4447 = vld [vmem:[#allocation5 + $0x10] sm:$0xff]
      %v4448 = vld [vmem:[#allocation5 + $0x18] sm:$0xff]
      %v4449 = vld [vmem:[#allocation5 + $0x20] sm:$0xff]
      %v4450 = vld [vmem:[#allocation5 + $0x28] sm:$0xff]
      %v4451 = vld [vmem:[#allocation5 + $0x30] sm:$0xff]
      %v4452 = vld [vmem:[#allocation5 + $0x38] sm:$0xff]
      %v4453 = vld [vmem:[#allocation5 + $0x40] sm:$0xff]
      %v4454 = vld [vmem:[#allocation5 + $0x48] sm:$0xff]
      %v4455 = vld [vmem:[#allocation5 + $0x50] sm:$0xff]
      %v4456 = vld [vmem:[#allocation5 + $0x58] sm:$0xff]
      %v4457 = vld [vmem:[#allocation5 + $0x60] sm:$0xff]
      %v4458 = vld [vmem:[#allocation5 + $0x68] sm:$0xff]
      %v4459 = vld [vmem:[#allocation5 + $0x70] sm:$0xff]
      %v4460 = vld [vmem:[#allocation5 + $0x78] sm:$0xff]
      %v4461 = vld [vmem:[#allocation5 + $0x80] sm:$0xff]
      %v4462 = vld [vmem:[#allocation5 + $0x88] sm:$0xff]
      %v4463 = vld [vmem:[#allocation5 + $0x90] sm:$0xff]
      %v4464 = vld [vmem:[#allocation5 + $0x98] sm:$0xff]
      %v4465 = vld [vmem:[#allocation5 + $0xa0] sm:$0xff]
      %v4466 = vld [vmem:[#allocation5 + $0xa8] sm:$0xff]
      %v4467 = vld [vmem:[#allocation5 + $0xb0] sm:$0xff]
      %v4468 = vld [vmem:[#allocation5 + $0xb8] sm:$0xff]
      %v4469 = vld [vmem:[#allocation5 + $0xc0] sm:$0xff]
      %v4470 = vld [vmem:[#allocation5 + $0xc8] sm:$0xff]
      %v4471 = vld [vmem:[#allocation5 + $0xd0] sm:$0xff]
      %v4472 = vld [vmem:[#allocation5 + $0xd8] sm:$0xff]
      %v4473 = vld [vmem:[#allocation5 + $0xe0] sm:$0xff]
      %v4474 = vld [vmem:[#allocation5 + $0xe8] sm:$0xff]
      %v4475 = vld [vmem:[#allocation5 + $0xf0] sm:$0xff]
      %v4476 = vld [vmem:[#allocation5 + $0xf8] sm:$0xff]
      %v4477 = vld [vmem:[%s2] sm:$0xff]
      %v4478 = vld [vmem:[%s2 + $0x8] sm:$0xff]
      %v4479 = vld [vmem:[%s2 + $0x10] sm:$0xff]
      %v4480 = vld [vmem:[%s2 + $0x18] sm:$0xff]
      %v4481 = vld [vmem:[%s2 + $0x20] sm:$0xff]
      %v4482 = vld [vmem:[%s2 + $0x28] sm:$0xff]
      %v4483 = vld [vmem:[%s2 + $0x30] sm:$0xff]
      %v4484 = vld [vmem:[%s2 + $0x38] sm:$0xff]
      %v4485 = vld [vmem:[%s2 + $0x40] sm:$0xff]
      %v4486 = vlaneseq
      %v4487 = vshrl.u32 %v4486, 7
      %v4488 = vsub.s32 0, %v4487
      %v4489 = vrot.slane %v376, %v4488
      %vm4490 = vcmask 588800
      %v4492 = vsel %vm4490, %v4445, 0
      %v4495 = vsel %vm4490, %v4446, 0
      %v4498 = vsel %vm4490, %v4447, 0
      %v4501 = vsel %vm4490, %v4448, 0
      %v4504 = vsel %vm4490, %v4449, 0
      %v4507 = vsel %vm4490, %v4450, 0
      %v4510 = vsel %vm4490, %v4451, 0
      %v4513 = vsel %vm4490, %v4452, 0
      %v4516 = vsel %vm4490, %v4453, 0
      %v4519 = vsel %vm4490, %v4454, 0
      %v4522 = vsel %vm4490, %v4455, 0
      %v4525 = vsel %vm4490, %v4456, 0
      %v4528 = vsel %vm4490, %v4457, 0
      %v4531 = vsel %vm4490, %v4458, 0
      %v4534 = vsel %vm4490, %v4459, 0
      %v4537 = vsel %vm4490, %v4460, 0
      %v4540 = vsel %vm4490, %v4461, 0
      %v4543 = vsel %vm4490, %v4462, 0
      %v4546 = vsel %vm4490, %v4463, 0
      %v4549 = vsel %vm4490, %v4464, 0
      %v4552 = vsel %vm4490, %v4465, 0
      %v4555 = vsel %vm4490, %v4466, 0
      %v4558 = vsel %vm4490, %v4467, 0
      %v4561 = vsel %vm4490, %v4468, 0
      %v4564 = vsel %vm4490, %v4469, 0
      %v4567 = vsel %vm4490, %v4470, 0
      %v4570 = vsel %vm4490, %v4471, 0
      %v4573 = vsel %vm4490, %v4472, 0
      %v4576 = vsel %vm4490, %v4473, 0
      %v4579 = vsel %vm4490, %v4474, 0
      %v4582 = vsel %vm4490, %v4475, 0
      %v4585 = vsel %vm4490, %v4476, 0
      %4587 = vmatprep.subr.mxu0 0.0
      %4588 = vmatpush1.msra.mxu0 %v4477
      %4589 = vmatprep.subr.mxu0 0.0
      %4590 = vmatpush1.msra.mxu0 %v4478
      %4591 = vmatprep.subr.mxu0 0.0
      %4592 = vmatpush1.msra.mxu0 %v4479
      %4593 = vmatprep.subr.mxu0 0.0
      %4594 = vmatpush1.msra.mxu0 %v4480
      %4595 = vmatprep.subr.mxu0 0.0
      %4596 = vmatpush1.msra.mxu0 %v4481
      %4597 = vmatprep.subr.mxu0 0.0
      %4598 = vmatpush1.msra.mxu0 %v4482
      %4599 = vmatprep.subr.mxu0 0.0
      %4600 = vmatpush1.msra.mxu0 %v4483
      %4601 = vmatprep.subr.mxu0 0.0
      %4602 = vmatpush1.msra.mxu0 %v4484
      %4603 = vmatprep.subr.mxu0 0.0
      %4604 = vmatpush1.msra.mxu0 %v4485
      %4605 = vmatprep.subr.mxu0 0.0
      %4606 = vmatpush1.msra.mxu0 0.0
      %4607 = vmatprep.subr.mxu0 0.0
      %4608 = vmatpush1.msra.mxu0 0.0
      %4609 = vmatprep.subr.mxu0 0.0
      %4610 = vmatpush1.msra.mxu0 0.0
      %4611 = vmatprep.subr.mxu0 0.0
      %4612 = vmatpush1.msra.mxu0 0.0
      %4613 = vmatprep.subr.mxu0 0.0
      %4614 = vmatpush1.msra.mxu0 0.0
      %4615 = vmatprep.subr.mxu0 0.0
      %4616 = vmatpush1.msra.mxu0 0.0
      %4617 = vmatprep.subr.mxu0 0.0
      %4618 = vmatpush1.msra.mxu0 0.0
      %4619 = vmatprep.subr.mxu0 0.0
      %4620 = vmatpush1.msra.mxu0 0.0
      %4621 = vmatprep.subr.mxu0 0.0
      %4622 = vmatpush1.msra.mxu0 0.0
      %4623 = vmatprep.subr.mxu0 0.0
      %4624 = vmatpush1.msra.mxu0 0.0
      %4625 = vmatprep.subr.mxu0 0.0
      %4626 = vmatpush1.msra.mxu0 0.0
      %4627 = vmatprep.subr.mxu0 0.0
      %4628 = vmatpush1.msra.mxu0 0.0
      %4629 = vmatprep.subr.mxu0 0.0
      %4630 = vmatpush1.msra.mxu0 0.0
      %4631 = vmatprep.subr.mxu0 0.0
      %4632 = vmatpush1.msra.mxu0 0.0
      %4633 = vmatprep.subr.mxu0 0.0
      %4634 = vmatpush1.msra.mxu0 0.0
      %4635 = vmatprep.subr.mxu0 0.0
      %4636 = vmatpush1.msra.mxu0 0.0
      %4637 = vmatprep.subr.mxu0 0.0
      %4638 = vmatpush1.msra.mxu0 0.0
      %4639 = vmatprep.subr.mxu0 0.0
      %4640 = vmatpush1.msra.mxu0 0.0
      %4641 = vmatprep.subr.mxu0 0.0
      %4642 = vmatpush1.msra.mxu0 0.0
      %4643 = vmatprep.subr.mxu0 0.0
      %4644 = vmatpush1.msra.mxu0 0.0
      %4645 = vmatprep.subr.mxu0 0.0
      %4646 = vmatpush1.msra.mxu0 0.0
      %4647 = vmatprep.subr.mxu0 0.0
      %4648 = vmatpush1.msra.mxu0 0.0
      %4649 = vmatprep.subr.mxu0 0.0
      %4650 = vmatpush1.msra.mxu0 0.0
      %4651 = vmatprep.mubr.f32.mxu0 0.0
      %4652 = vmatmul.mubr.f32.gmra.mrb[0].mxu0 %v4492
      %v4653 = vpop.f32.mrb[0].mxu0
      %v4654 = vadd.f32 %v4489, %v4653
      %v4655 = vpop.f32.mrb[0].mxu0
      %4656 = vmatprep.mubr.f32.mxu0 0.0
      %4657 = vmatmul.mubr.f32.gmra.mrb[0].mxu0 %v4495
      %v4658 = vpop.f32.mrb[0].mxu0
      %v4659 = vadd.f32 %v4489, %v4658
      %v4660 = vpop.f32.mrb[0].mxu0
      %4661 = vmatprep.mubr.f32.mxu0 0.0
      %4662 = vmatmul.mubr.f32.gmra.mrb[0].mxu0 %v4498
      %v4663 = vpop.f32.mrb[0].mxu0
      %v4664 = vadd.f32 %v4489, %v4663
      %v4665 = vpop.f32.mrb[0].mxu0
      %4666 = vmatprep.mubr.f32.mxu0 0.0
      %4667 = vmatmul.mubr.f32.gmra.mrb[0].mxu0 %v4501
      %v4668 = vpop.f32.mrb[0].mxu0
      %v4669 = vadd.f32 %v4489, %v4668
      %v4670 = vpop.f32.mrb[0].mxu0
      %4671 = vmatprep.mubr.f32.mxu0 0.0
      %4672 = vmatmul.mubr.f32.gmra.mrb[0].mxu0 %v4504
      %v4673 = vpop.f32.mrb[0].mxu0
      %v4674 = vadd.f32 %v4489, %v4673
      %v4675 = vpop.f32.mrb[0].mxu0
      %4676 = vmatprep.mubr.f32.mxu0 0.0
      %4677 = vmatmul.mubr.f32.gmra.mrb[0].mxu0 %v4507
      %v4678 = vpop.f32.mrb[0].mxu0
      %v4679 = vadd.f32 %v4489, %v4678
      %v4680 = vpop.f32.mrb[0].mxu0
      %4681 = vmatprep.mubr.f32.mxu0 0.0
      %4682 = vmatmul.mubr.f32.gmra.mrb[0].mxu0 %v4510
      %v4683 = vpop.f32.mrb[0].mxu0
      %v4684 = vadd.f32 %v4489, %v4683
      %v4685 = vpop.f32.mrb[0].mxu0
      %4686 = vmatprep.mubr.f32.mxu0 0.0
      %4687 = vmatmul.mubr.f32.gmra.mrb[0].mxu0 %v4513
      %v4688 = vpop.f32.mrb[0].mxu0
      %v4689 = vadd.f32 %v4489, %v4688
      %v4690 = vpop.f32.mrb[0].mxu0
      %4691 = vmatprep.mubr.f32.mxu0 0.0
      %4692 = vmatmul.mubr.f32.gmra.mrb[0].mxu0 %v4516
      %v4693 = vpop.f32.mrb[0].mxu0
      %v4694 = vadd.f32 %v4489, %v4693
      %v4695 = vpop.f32.mrb[0].mxu0
      %4696 = vmatprep.mubr.f32.mxu0 0.0
      %4697 = vmatmul.mubr.f32.gmra.mrb[0].mxu0 %v4519
      %v4698 = vpop.f32.mrb[0].mxu0
      %v4699 = vadd.f32 %v4489, %v4698
      %v4700 = vpop.f32.mrb[0].mxu0
      %4701 = vmatprep.mubr.f32.mxu0 0.0
      %4702 = vmatmul.mubr.f32.gmra.mrb[0].mxu0 %v4522
      %v4703 = vpop.f32.mrb[0].mxu0
      %v4704 = vadd.f32 %v4489, %v4703
      %v4705 = vpop.f32.mrb[0].mxu0
      %4706 = vmatprep.mubr.f32.mxu0 0.0
      %4707 = vmatmul.mubr.f32.gmra.mrb[0].mxu0 %v4525
      %v4708 = vpop.f32.mrb[0].mxu0
      %v4709 = vadd.f32 %v4489, %v4708
      %v4710 = vpop.f32.mrb[0].mxu0
      %4711 = vmatprep.mubr.f32.mxu0 0.0
      %4712 = vmatmul.mubr.f32.gmra.mrb[0].mxu0 %v4528
      %v4713 = vpop.f32.mrb[0].mxu0
      %v4714 = vadd.f32 %v4489, %v4713
      %v4715 = vpop.f32.mrb[0].mxu0
      %4716 = vmatprep.mubr.f32.mxu0 0.0
      %4717 = vmatmul.mubr.f32.gmra.mrb[0].mxu0 %v4531
      %v4718 = vpop.f32.mrb[0].mxu0
      %v4719 = vadd.f32 %v4489, %v4718
      %v4720 = vpop.f32.mrb[0].mxu0
      %4721 = vmatprep.mubr.f32.mxu0 0.0
      %4722 = vmatmul.mubr.f32.gmra.mrb[0].mxu0 %v4534
      %v4723 = vpop.f32.mrb[0].mxu0
      %v4724 = vadd.f32 %v4489, %v4723
      %v4725 = vpop.f32.mrb[0].mxu0
      %4726 = vmatprep.mubr.f32.mxu0 0.0
      %4727 = vmatmul.mubr.f32.gmra.mrb[0].mxu0 %v4537
      %v4728 = vpop.f32.mrb[0].mxu0
      %v4729 = vadd.f32 %v4489, %v4728
      %v4730 = vpop.f32.mrb[0].mxu0
      %4731 = vmatprep.mubr.f32.mxu0 0.0
      %4732 = vmatmul.mubr.f32.gmra.mrb[0].mxu0 %v4540
      %v4733 = vpop.f32.mrb[0].mxu0
      %v4734 = vadd.f32 %v4489, %v4733
      %v4735 = vpop.f32.mrb[0].mxu0
      %4736 = vmatprep.mubr.f32.mxu0 0.0
      %4737 = vmatmul.mubr.f32.gmra.mrb[0].mxu0 %v4543
      %v4738 = vpop.f32.mrb[0].mxu0
      %v4739 = vadd.f32 %v4489, %v4738
      %v4740 = vpop.f32.mrb[0].mxu0
      %4741 = vmatprep.mubr.f32.mxu0 0.0
      %4742 = vmatmul.mubr.f32.gmra.mrb[0].mxu0 %v4546
      %v4743 = vpop.f32.mrb[0].mxu0
      %v4744 = vadd.f32 %v4489, %v4743
      %v4745 = vpop.f32.mrb[0].mxu0
      %4746 = vmatprep.mubr.f32.mxu0 0.0
      %4747 = vmatmul.mubr.f32.gmra.mrb[0].mxu0 %v4549
      %v4748 = vpop.f32.mrb[0].mxu0
      %v4749 = vadd.f32 %v4489, %v4748
      %v4750 = vpop.f32.mrb[0].mxu0
      %4751 = vmatprep.mubr.f32.mxu0 0.0
      %4752 = vmatmul.mubr.f32.gmra.mrb[0].mxu0 %v4552
      %v4753 = vpop.f32.mrb[0].mxu0
      %v4754 = vadd.f32 %v4489, %v4753
      %v4755 = vpop.f32.mrb[0].mxu0
      %4756 = vmatprep.mubr.f32.mxu0 0.0
      %4757 = vmatmul.mubr.f32.gmra.mrb[0].mxu0 %v4555
      %v4758 = vpop.f32.mrb[0].mxu0
      %v4759 = vadd.f32 %v4489, %v4758
      %v4760 = vpop.f32.mrb[0].mxu0
      %4761 = vmatprep.mubr.f32.mxu0 0.0
      %4762 = vmatmul.mubr.f32.gmra.mrb[0].mxu0 %v4558
      %v4763 = vpop.f32.mrb[0].mxu0
      %v4764 = vadd.f32 %v4489, %v4763
      %v4765 = vpop.f32.mrb[0].mxu0
      %4766 = vmatprep.mubr.f32.mxu0 0.0
      %4767 = vmatmul.mubr.f32.gmra.mrb[0].mxu0 %v4561
      %v4768 = vpop.f32.mrb[0].mxu0
      %v4769 = vadd.f32 %v4489, %v4768
      %v4770 = vpop.f32.mrb[0].mxu0
      %4771 = vmatprep.mubr.f32.mxu0 0.0
      %4772 = vmatmul.mubr.f32.gmra.mrb[0].mxu0 %v4564
      %v4773 = vpop.f32.mrb[0].mxu0
      %v4774 = vadd.f32 %v4489, %v4773
      %v4775 = vpop.f32.mrb[0].mxu0
      %4776 = vmatprep.mubr.f32.mxu0 0.0
      %4777 = vmatmul.mubr.f32.gmra.mrb[0].mxu0 %v4567
      %v4778 = vpop.f32.mrb[0].mxu0
      %v4779 = vadd.f32 %v4489, %v4778
      %v4780 = vpop.f32.mrb[0].mxu0
      %4781 = vmatprep.mubr.f32.mxu0 0.0
      %4782 = vmatmul.mubr.f32.gmra.mrb[0].mxu0 %v4570
      %v4783 = vpop.f32.mrb[0].mxu0
      %v4784 = vadd.f32 %v4489, %v4783
      %v4785 = vpop.f32.mrb[0].mxu0
      %4786 = vmatprep.mubr.f32.mxu0 0.0
      %4787 = vmatmul.mubr.f32.gmra.mrb[0].mxu0 %v4573
      %v4788 = vpop.f32.mrb[0].mxu0
      %v4789 = vadd.f32 %v4489, %v4788
      %v4790 = vpop.f32.mrb[0].mxu0
      %4791 = vmatprep.mubr.f32.mxu0 0.0
      %4792 = vmatmul.mubr.f32.gmra.mrb[0].mxu0 %v4576
      %v4793 = vpop.f32.mrb[0].mxu0
      %v4794 = vadd.f32 %v4489, %v4793
      %v4795 = vpop.f32.mrb[0].mxu0
      %4796 = vmatprep.mubr.f32.mxu0 0.0
      %4797 = vmatmul.mubr.f32.gmra.mrb[0].mxu0 %v4579
      %v4798 = vpop.f32.mrb[0].mxu0
      %v4799 = vadd.f32 %v4489, %v4798
      %v4800 = vpop.f32.mrb[0].mxu0
      %4801 = vmatprep.mubr.f32.mxu0 0.0
      %4802 = vmatmul.mubr.f32.gmra.mrb[0].mxu0 %v4582
      %v4803 = vpop.f32.mrb[0].mxu0
      %v4804 = vadd.f32 %v4489, %v4803
      %v4805 = vpop.f32.mrb[0].mxu0
      %4806 = vmatprep.mubr.f32.mxu0 0.0
      %4807 = vmatmul.mubr.f32.gmra.mrb[0].mxu0 %v4585
      %v4808 = vpop.f32.mrb[0].mxu0
      %v4809 = vadd.f32 %v4489, %v4808
      %v4810 = vpop.f32.mrb[0].mxu0
      %4811 = vdwg.mxu0
      %v4812 = vmul.f32 %v4654, 0.5
      %v4813 = vmul.f32 %v4659, 0.5
      %v4814 = vmul.f32 %v4664, 0.5
      %v4815 = vmul.f32 %v4669, 0.5
      %v4816 = vmul.f32 %v4674, 0.5
      %v4817 = vmul.f32 %v4679, 0.5
      %v4818 = vmul.f32 %v4684, 0.5
      %v4819 = vmul.f32 %v4689, 0.5
      %v4820 = vmul.f32 %v4694, 0.5
      %v4821 = vmul.f32 %v4699, 0.5
      %v4822 = vmul.f32 %v4704, 0.5
      %v4823 = vmul.f32 %v4709, 0.5
      %v4824 = vmul.f32 %v4714, 0.5
      %v4825 = vmul.f32 %v4719, 0.5
      %v4826 = vmul.f32 %v4724, 0.5
      %v4827 = vmul.f32 %v4729, 0.5
      %v4828 = vmul.f32 %v4734, 0.5
      %v4829 = vmul.f32 %v4739, 0.5
      %v4830 = vmul.f32 %v4744, 0.5
      %v4831 = vmul.f32 %v4749, 0.5
      %v4832 = vmul.f32 %v4754, 0.5
      %v4833 = vmul.f32 %v4759, 0.5
      %v4834 = vmul.f32 %v4764, 0.5
      %v4835 = vmul.f32 %v4769, 0.5
      %v4836 = vmul.f32 %v4774, 0.5
      %v4837 = vmul.f32 %v4779, 0.5
      %v4838 = vmul.f32 %v4784, 0.5
      %v4839 = vmul.f32 %v4789, 0.5
      %v4840 = vmul.f32 %v4794, 0.5
      %v4841 = vmul.f32 %v4799, 0.5
      %v4842 = vmul.f32 %v4804, 0.5
      %v4843 = vmul.f32 %v4809, 0.5
      %v4844 = vmul.f32 %v4654, 0.70710677
      %v4845 = vmul.f32 %v4659, 0.70710677
      %v4846 = vmul.f32 %v4664, 0.70710677
      %v4847 = vmul.f32 %v4669, 0.70710677
      %v4848 = vmul.f32 %v4674, 0.70710677
      %v4849 = vmul.f32 %v4679, 0.70710677
      %v4850 = vmul.f32 %v4684, 0.70710677
      %v4851 = vmul.f32 %v4689, 0.70710677
      %v4852 = vmul.f32 %v4694, 0.70710677
      %v4853 = vmul.f32 %v4699, 0.70710677
      %v4854 = vmul.f32 %v4704, 0.70710677
      %v4855 = vmul.f32 %v4709, 0.70710677
      %v4856 = vmul.f32 %v4714, 0.70710677
      %v4857 = vmul.f32 %v4719, 0.70710677
      %v4858 = vmul.f32 %v4724, 0.70710677
      %v4859 = vmul.f32 %v4729, 0.70710677
      %v4860 = vmul.f32 %v4734, 0.70710677
      %v4861 = vmul.f32 %v4739, 0.70710677
      %v4862 = vmul.f32 %v4744, 0.70710677
      %v4863 = vmul.f32 %v4749, 0.70710677
      %v4864 = vmul.f32 %v4754, 0.70710677
      %v4865 = vmul.f32 %v4759, 0.70710677
      %v4866 = vmul.f32 %v4764, 0.70710677
      %v4867 = vmul.f32 %v4769, 0.70710677
      %v4868 = vmul.f32 %v4774, 0.70710677
      %v4869 = vmul.f32 %v4779, 0.70710677
      %v4870 = vmul.f32 %v4784, 0.70710677
      %v4871 = vmul.f32 %v4789, 0.70710677
      %v4872 = vmul.f32 %v4794, 0.70710677
      %v4873 = vmul.f32 %v4799, 0.70710677
      %v4874 = vmul.f32 %v4804, 0.70710677
      %v4875 = vmul.f32 %v4809, 0.70710677
      %v4876 = verf.f32.pop %v4844
      %v4877 = verf.f32.pop %v4845
      %v4878 = verf.f32.pop %v4846
      %v4879 = verf.f32.pop %v4847
      %v4880 = verf.f32.pop %v4848
      %v4881 = verf.f32.pop %v4849
      %v4882 = verf.f32.pop %v4850
      %v4883 = verf.f32.pop %v4851
      %v4884 = verf.f32.pop %v4852
      %v4885 = verf.f32.pop %v4853
      %v4886 = verf.f32.pop %v4854
      %v4887 = verf.f32.pop %v4855
      %v4888 = verf.f32.pop %v4856
      %v4889 = verf.f32.pop %v4857
      %v4890 = verf.f32.pop %v4858
      %v4891 = verf.f32.pop %v4859
      %v4892 = verf.f32.pop %v4860
      %v4893 = verf.f32.pop %v4861
      %v4894 = verf.f32.pop %v4862
      %v4895 = verf.f32.pop %v4863
      %v4896 = verf.f32.pop %v4864
      %v4897 = verf.f32.pop %v4865
      %v4898 = verf.f32.pop %v4866
      %v4899 = verf.f32.pop %v4867
      %v4900 = verf.f32.pop %v4868
      %v4901 = verf.f32.pop %v4869
      %v4902 = verf.f32.pop %v4870
      %v4903 = verf.f32.pop %v4871
      %v4904 = verf.f32.pop %v4872
      %v4905 = verf.f32.pop %v4873
      %v4906 = verf.f32.pop %v4874
      %v4907 = verf.f32.pop %v4875
      %v4908 = vadd.f32 %v4876, 1.0
      %v4909 = vadd.f32 %v4877, 1.0
      %v4910 = vadd.f32 %v4878, 1.0
      %v4911 = vadd.f32 %v4879, 1.0
      %v4912 = vadd.f32 %v4880, 1.0
      %v4913 = vadd.f32 %v4881, 1.0
      %v4914 = vadd.f32 %v4882, 1.0
      %v4915 = vadd.f32 %v4883, 1.0
      %v4916 = vadd.f32 %v4884, 1.0
      %v4917 = vadd.f32 %v4885, 1.0
      %v4918 = vadd.f32 %v4886, 1.0
      %v4919 = vadd.f32 %v4887, 1.0
      %v4920 = vadd.f32 %v4888, 1.0
      %v4921 = vadd.f32 %v4889, 1.0
      %v4922 = vadd.f32 %v4890, 1.0
      %v4923 = vadd.f32 %v4891, 1.0
      %v4924 = vadd.f32 %v4892, 1.0
      %v4925 = vadd.f32 %v4893, 1.0
      %v4926 = vadd.f32 %v4894, 1.0
      %v4927 = vadd.f32 %v4895, 1.0
      %v4928 = vadd.f32 %v4896, 1.0
      %v4929 = vadd.f32 %v4897, 1.0
      %v4930 = vadd.f32 %v4898, 1.0
      %v4931 = vadd.f32 %v4899, 1.0
      %v4932 = vadd.f32 %v4900, 1.0
      %v4933 = vadd.f32 %v4901, 1.0
      %v4934 = vadd.f32 %v4902, 1.0
      %v4935 = vadd.f32 %v4903, 1.0
      %v4936 = vadd.f32 %v4904, 1.0
      %v4937 = vadd.f32 %v4905, 1.0
      %v4938 = vadd.f32 %v4906, 1.0
      %v4939 = vadd.f32 %v4907, 1.0
      %v4940 = vmul.f32 %v4812, %v4908
      %v4941 = vmul.f32 %v4813, %v4909
      %v4942 = vmul.f32 %v4814, %v4910
      %v4943 = vmul.f32 %v4815, %v4911
      %v4944 = vmul.f32 %v4816, %v4912
      %v4945 = vmul.f32 %v4817, %v4913
      %v4946 = vmul.f32 %v4818, %v4914
      %v4947 = vmul.f32 %v4819, %v4915
      %v4948 = vmul.f32 %v4820, %v4916
      %v4949 = vmul.f32 %v4821, %v4917
      %v4950 = vmul.f32 %v4822, %v4918
      %v4951 = vmul.f32 %v4823, %v4919
      %v4952 = vmul.f32 %v4824, %v4920
      %v4953 = vmul.f32 %v4825, %v4921
      %v4954 = vmul.f32 %v4826, %v4922
      %v4955 = vmul.f32 %v4827, %v4923
      %v4956 = vmul.f32 %v4828, %v4924
      %v4957 = vmul.f32 %v4829, %v4925
      %v4958 = vmul.f32 %v4830, %v4926
      %v4959 = vmul.f32 %v4831, %v4927
      %v4960 = vmul.f32 %v4832, %v4928
      %v4961 = vmul.f32 %v4833, %v4929
      %v4962 = vmul.f32 %v4834, %v4930
      %v4963 = vmul.f32 %v4835, %v4931
      %v4964 = vmul.f32 %v4836, %v4932
      %v4965 = vmul.f32 %v4837, %v4933
      %v4966 = vmul.f32 %v4838, %v4934
      %v4967 = vmul.f32 %v4839, %v4935
      %v4968 = vmul.f32 %v4840, %v4936
      %v4969 = vmul.f32 %v4841, %v4937
      %v4970 = vmul.f32 %v4842, %v4938
      %v4971 = vmul.f32 %v4843, %v4939
      %v4972 = vlaneseq
      %v4973 = vshrl.u32 %v4972, 7
      %v4974 = vsub.s32 0, %v4973
      %v4975 = vrot.slane %v377, %v4974
      %v4976 = vmul.f32 %v4940, %v4975
      %v4977 = vmul.f32 %v4941, %v4975
      %v4978 = vmul.f32 %v4942, %v4975
      %v4979 = vmul.f32 %v4943, %v4975
      %v4980 = vmul.f32 %v4944, %v4975
      %v4981 = vmul.f32 %v4945, %v4975
      %v4982 = vmul.f32 %v4946, %v4975
      %v4983 = vmul.f32 %v4947, %v4975
      %v4984 = vmul.f32 %v4948, %v4975
      %v4985 = vmul.f32 %v4949, %v4975
      %v4986 = vmul.f32 %v4950, %v4975
      %v4987 = vmul.f32 %v4951, %v4975
      %v4988 = vmul.f32 %v4952, %v4975
      %v4989 = vmul.f32 %v4953, %v4975
      %v4990 = vmul.f32 %v4954, %v4975
      %v4991 = vmul.f32 %v4955, %v4975
      %v4992 = vmul.f32 %v4956, %v4975
      %v4993 = vmul.f32 %v4957, %v4975
      %v4994 = vmul.f32 %v4958, %v4975
      %v4995 = vmul.f32 %v4959, %v4975
      %v4996 = vmul.f32 %v4960, %v4975
      %v4997 = vmul.f32 %v4961, %v4975
      %v4998 = vmul.f32 %v4962, %v4975
      %v4999 = vmul.f32 %v4963, %v4975
      %v5000 = vmul.f32 %v4964, %v4975
      %v5001 = vmul.f32 %v4965, %v4975
      %v5002 = vmul.f32 %v4966, %v4975
      %v5003 = vmul.f32 %v4967, %v4975
      %v5004 = vmul.f32 %v4968, %v4975
      %v5005 = vmul.f32 %v4969, %v4975
      %v5006 = vmul.f32 %v4970, %v4975
      %v5007 = vmul.f32 %v4971, %v4975
      %v5008 = vlaneseq
      %v5009 = vshrl.u32 %v5008, 7
      %v5010 = vsub.s32 0, %v5009
      %v5011 = vrot.slane %v378, %v5010
      %v5012 = vadd.f32 %v4976, %v5011
      %v5013 = vadd.f32 %v4977, %v5011
      %v5014 = vadd.f32 %v4978, %v5011
      %v5015 = vadd.f32 %v4979, %v5011
      %v5016 = vadd.f32 %v4980, %v5011
      %v5017 = vadd.f32 %v4981, %v5011
      %v5018 = vadd.f32 %v4982, %v5011
      %v5019 = vadd.f32 %v4983, %v5011
      %v5020 = vadd.f32 %v4984, %v5011
      %v5021 = vadd.f32 %v4985, %v5011
      %v5022 = vadd.f32 %v4986, %v5011
      %v5023 = vadd.f32 %v4987, %v5011
      %v5024 = vadd.f32 %v4988, %v5011
      %v5025 = vadd.f32 %v4989, %v5011
      %v5026 = vadd.f32 %v4990, %v5011
      %v5027 = vadd.f32 %v4991, %v5011
      %v5028 = vadd.f32 %v4992, %v5011
      %v5029 = vadd.f32 %v4993, %v5011
      %v5030 = vadd.f32 %v4994, %v5011
      %v5031 = vadd.f32 %v4995, %v5011
      %v5032 = vadd.f32 %v4996, %v5011
      %v5033 = vadd.f32 %v4997, %v5011
      %v5034 = vadd.f32 %v4998, %v5011
      %v5035 = vadd.f32 %v4999, %v5011
      %v5036 = vadd.f32 %v5000, %v5011
      %v5037 = vadd.f32 %v5001, %v5011
      %v5038 = vadd.f32 %v5002, %v5011
      %v5039 = vadd.f32 %v5003, %v5011
      %v5040 = vadd.f32 %v5004, %v5011
      %v5041 = vadd.f32 %v5005, %v5011
      %v5042 = vadd.f32 %v5006, %v5011
      %v5043 = vadd.f32 %v5007, %v5011
      %v5044 = vld [vmem:[%s362] sm:$0xff]
      %v5045 = vld [vmem:[%s362 + $0x8] sm:$0xff]
      %v5046 = vld [vmem:[%s362 + $0x10] sm:$0xff]
      %v5047 = vld [vmem:[%s362 + $0x18] sm:$0xff]
      %v5048 = vld [vmem:[%s362 + $0x20] sm:$0xff]
      %v5049 = vld [vmem:[%s362 + $0x28] sm:$0xff]
      %v5050 = vld [vmem:[%s362 + $0x30] sm:$0xff]
      %v5051 = vld [vmem:[%s362 + $0x38] sm:$0xff]
      %v5052 = vld [vmem:[%s362 + $0x40] sm:$0xff]
      %v5053 = vld [vmem:[%s362 + $0x48] sm:$0xff]
      %v5054 = vld [vmem:[%s362 + $0x50] sm:$0xff]
      %v5055 = vld [vmem:[%s362 + $0x58] sm:$0xff]
      %v5056 = vld [vmem:[%s362 + $0x60] sm:$0xff]
      %v5057 = vld [vmem:[%s362 + $0x68] sm:$0xff]
      %v5058 = vld [vmem:[%s362 + $0x70] sm:$0xff]
      %v5059 = vld [vmem:[%s362 + $0x78] sm:$0xff]
      %v5060 = vld [vmem:[%s362 + $0x80] sm:$0xff]
      %v5061 = vld [vmem:[%s362 + $0x88] sm:$0xff]
      %v5062 = vld [vmem:[%s362 + $0x90] sm:$0xff]
      %v5063 = vld [vmem:[%s362 + $0x98] sm:$0xff]
      %v5064 = vld [vmem:[%s362 + $0xa0] sm:$0xff]
      %v5065 = vld [vmem:[%s362 + $0xa8] sm:$0xff]
      %v5066 = vld [vmem:[%s362 + $0xb0] sm:$0xff]
      %v5067 = vld [vmem:[%s362 + $0xb8] sm:$0xff]
      %v5068 = vld [vmem:[%s362 + $0xc0] sm:$0xff]
      %v5069 = vld [vmem:[%s362 + $0xc8] sm:$0xff]
      %v5070 = vld [vmem:[%s362 + $0xd0] sm:$0xff]
      %v5071 = vld [vmem:[%s362 + $0xd8] sm:$0xff]
      %v5072 = vld [vmem:[%s362 + $0xe0] sm:$0xff]
      %v5073 = vld [vmem:[%s362 + $0xe8] sm:$0xff]
      %v5074 = vld [vmem:[%s362 + $0xf0] sm:$0xff]
      %v5075 = vld [vmem:[%s362 + $0xf8] sm:$0xff]
      %v5076 = vld [vmem:[%s3] sm:$0xf]
      %v5078 = vsel %vm382, %v5044, 0
      %v5081 = vsel %vm382, %v5045, 0
      %v5084 = vsel %vm382, %v5046, 0
      %v5087 = vsel %vm382, %v5047, 0
      %v5090 = vsel %vm382, %v5048, 0
      %v5093 = vsel %vm382, %v5049, 0
      %v5096 = vsel %vm382, %v5050, 0
      %v5099 = vsel %vm382, %v5051, 0
      %v5102 = vsel %vm382, %v5052, 0
      %v5105 = vsel %vm382, %v5053, 0
      %v5108 = vsel %vm382, %v5054, 0
      %v5111 = vsel %vm382, %v5055, 0
      %v5114 = vsel %vm382, %v5056, 0
      %v5117 = vsel %vm382, %v5057, 0
      %v5120 = vsel %vm382, %v5058, 0
      %v5123 = vsel %vm382, %v5059, 0
      %v5126 = vsel %vm382, %v5060, 0
      %v5129 = vsel %vm382, %v5061, 0
      %v5132 = vsel %vm382, %v5062, 0
      %v5135 = vsel %vm382, %v5063, 0
      %v5138 = vsel %vm382, %v5064, 0
      %v5141 = vsel %vm382, %v5065, 0
      %v5144 = vsel %vm382, %v5066, 0
      %v5147 = vsel %vm382, %v5067, 0
      %v5150 = vsel %vm382, %v5068, 0
      %v5153 = vsel %vm382, %v5069, 0
      %v5156 = vsel %vm382, %v5070, 0
      %v5159 = vsel %vm382, %v5071, 0
      %v5162 = vsel %vm382, %v5072, 0
      %v5165 = vsel %vm382, %v5073, 0
      %v5168 = vsel %vm382, %v5074, 0
      %v5171 = vsel %vm382, %v5075, 0
      %v5174 = vsel %vm2268, %v5076, 0
      %5176 = vmatprep.subr.mxu0 0.0
      %5177 = vmatpush1.msra.mxu0 %v5174
      %5178 = vmatprep.subr.mxu0 0.0
      %5179 = vmatpush1.msra.mxu0 0.0
      %5180 = vmatprep.subr.mxu0 0.0
      %5181 = vmatpush1.msra.mxu0 0.0
      %5182 = vmatprep.subr.mxu0 0.0
      %5183 = vmatpush1.msra.mxu0 0.0
      %5184 = vmatprep.subr.mxu0 0.0
      %5185 = vmatpush1.msra.mxu0 0.0
      %5186 = vmatprep.subr.mxu0 0.0
      %5187 = vmatpush1.msra.mxu0 0.0
      %5188 = vmatprep.subr.mxu0 0.0
      %5189 = vmatpush1.msra.mxu0 0.0
      %5190 = vmatprep.subr.mxu0 0.0
      %5191 = vmatpush1.msra.mxu0 0.0
      %5192 = vmatprep.subr.mxu0 0.0
      %5193 = vmatpush1.msra.mxu0 0.0
      %5194 = vmatprep.subr.mxu0 0.0
      %5195 = vmatpush1.msra.mxu0 0.0
      %5196 = vmatprep.subr.mxu0 0.0
      %5197 = vmatpush1.msra.mxu0 0.0
      %5198 = vmatprep.subr.mxu0 0.0
      %5199 = vmatpush1.msra.mxu0 0.0
      %5200 = vmatprep.subr.mxu0 0.0
      %5201 = vmatpush1.msra.mxu0 0.0
      %5202 = vmatprep.subr.mxu0 0.0
      %5203 = vmatpush1.msra.mxu0 0.0
      %5204 = vmatprep.subr.mxu0 0.0
      %5205 = vmatpush1.msra.mxu0 0.0
      %5206 = vmatprep.subr.mxu0 0.0
      %5207 = vmatpush1.msra.mxu0 0.0
      %5208 = vmatprep.subr.mxu0 0.0
      %5209 = vmatpush1.msra.mxu0 0.0
      %5210 = vmatprep.subr.mxu0 0.0
      %5211 = vmatpush1.msra.mxu0 0.0
      %5212 = vmatprep.subr.mxu0 0.0
      %5213 = vmatpush1.msra.mxu0 0.0
      %5214 = vmatprep.subr.mxu0 0.0
      %5215 = vmatpush1.msra.mxu0 0.0
      %5216 = vmatprep.subr.mxu0 0.0
      %5217 = vmatpush1.msra.mxu0 0.0
      %5218 = vmatprep.subr.mxu0 0.0
      %5219 = vmatpush1.msra.mxu0 0.0
      %5220 = vmatprep.subr.mxu0 0.0
      %5221 = vmatpush1.msra.mxu0 0.0
      %5222 = vmatprep.subr.mxu0 0.0
      %5223 = vmatpush1.msra.mxu0 0.0
      %5224 = vmatprep.subr.mxu0 0.0
      %5225 = vmatpush1.msra.mxu0 0.0
      %5226 = vmatprep.subr.mxu0 0.0
      %5227 = vmatpush1.msra.mxu0 0.0
      %5228 = vmatprep.subr.mxu0 0.0
      %5229 = vmatpush1.msra.mxu0 0.0
      %5230 = vmatprep.subr.mxu0 0.0
      %5231 = vmatpush1.msra.mxu0 0.0
      %5232 = vmatprep.subr.mxu0 0.0
      %5233 = vmatpush1.msra.mxu0 0.0
      %5234 = vmatprep.subr.mxu0 0.0
      %5235 = vmatpush1.msra.mxu0 0.0
      %5236 = vmatprep.subr.mxu0 0.0
      %5237 = vmatpush1.msra.mxu0 0.0
      %5238 = vmatprep.subr.mxu0 0.0
      %5239 = vmatpush1.msra.mxu0 0.0
      %5240 = vmatprep.mubr.f32.mxu0 0.0
      %5241 = vmatmul.mubr.f32.gmra.mrb[0].mxu0 %v5078
      %v5242 = vpop.f32.mrb[0].mxu0
      %v5243 = vadd.f32 0.0, %v5242
      %v5244 = vpop.f32.mrb[0].mxu0
      %5245 = vmatprep.mubr.f32.mxu0 0.0
      %5246 = vmatmul.mubr.f32.gmra.mrb[0].mxu0 %v5081
      %v5247 = vpop.f32.mrb[0].mxu0
      %v5248 = vadd.f32 0.0, %v5247
      %v5249 = vpop.f32.mrb[0].mxu0
      %5250 = vmatprep.mubr.f32.mxu0 0.0
      %5251 = vmatmul.mubr.f32.gmra.mrb[0].mxu0 %v5084
      %v5252 = vpop.f32.mrb[0].mxu0
      %v5253 = vadd.f32 0.0, %v5252
      %v5254 = vpop.f32.mrb[0].mxu0
      %5255 = vmatprep.mubr.f32.mxu0 0.0
      %5256 = vmatmul.mubr.f32.gmra.mrb[0].mxu0 %v5087
      %v5257 = vpop.f32.mrb[0].mxu0
      %v5258 = vadd.f32 0.0, %v5257
      %v5259 = vpop.f32.mrb[0].mxu0
      %5260 = vmatprep.mubr.f32.mxu0 0.0
      %5261 = vmatmul.mubr.f32.gmra.mrb[0].mxu0 %v5090
      %v5262 = vpop.f32.mrb[0].mxu0
      %v5263 = vadd.f32 0.0, %v5262
      %v5264 = vpop.f32.mrb[0].mxu0
      %5265 = vmatprep.mubr.f32.mxu0 0.0
      %5266 = vmatmul.mubr.f32.gmra.mrb[0].mxu0 %v5093
      %v5267 = vpop.f32.mrb[0].mxu0
      %v5268 = vadd.f32 0.0, %v5267
      %v5269 = vpop.f32.mrb[0].mxu0
      %5270 = vmatprep.mubr.f32.mxu0 0.0
      %5271 = vmatmul.mubr.f32.gmra.mrb[0].mxu0 %v5096
      %v5272 = vpop.f32.mrb[0].mxu0
      %v5273 = vadd.f32 0.0, %v5272
      %v5274 = vpop.f32.mrb[0].mxu0
      %5275 = vmatprep.mubr.f32.mxu0 0.0
      %5276 = vmatmul.mubr.f32.gmra.mrb[0].mxu0 %v5099
      %v5277 = vpop.f32.mrb[0].mxu0
      %v5278 = vadd.f32 0.0, %v5277
      %v5279 = vpop.f32.mrb[0].mxu0
      %5280 = vmatprep.mubr.f32.mxu0 0.0
      %5281 = vmatmul.mubr.f32.gmra.mrb[0].mxu0 %v5102
      %v5282 = vpop.f32.mrb[0].mxu0
      %v5283 = vadd.f32 0.0, %v5282
      %v5284 = vpop.f32.mrb[0].mxu0
      %5285 = vmatprep.mubr.f32.mxu0 0.0
      %5286 = vmatmul.mubr.f32.gmra.mrb[0].mxu0 %v5105
      %v5287 = vpop.f32.mrb[0].mxu0
      %v5288 = vadd.f32 0.0, %v5287
      %v5289 = vpop.f32.mrb[0].mxu0
      %5290 = vmatprep.mubr.f32.mxu0 0.0
      %5291 = vmatmul.mubr.f32.gmra.mrb[0].mxu0 %v5108
      %v5292 = vpop.f32.mrb[0].mxu0
      %v5293 = vadd.f32 0.0, %v5292
      %v5294 = vpop.f32.mrb[0].mxu0
      %5295 = vmatprep.mubr.f32.mxu0 0.0
      %5296 = vmatmul.mubr.f32.gmra.mrb[0].mxu0 %v5111
      %v5297 = vpop.f32.mrb[0].mxu0
      %v5298 = vadd.f32 0.0, %v5297
      %v5299 = vpop.f32.mrb[0].mxu0
      %5300 = vmatprep.mubr.f32.mxu0 0.0
      %5301 = vmatmul.mubr.f32.gmra.mrb[0].mxu0 %v5114
      %v5302 = vpop.f32.mrb[0].mxu0
      %v5303 = vadd.f32 0.0, %v5302
      %v5304 = vpop.f32.mrb[0].mxu0
      %5305 = vmatprep.mubr.f32.mxu0 0.0
      %5306 = vmatmul.mubr.f32.gmra.mrb[0].mxu0 %v5117
      %v5307 = vpop.f32.mrb[0].mxu0
      %v5308 = vadd.f32 0.0, %v5307
      %v5309 = vpop.f32.mrb[0].mxu0
      %5310 = vmatprep.mubr.f32.mxu0 0.0
      %5311 = vmatmul.mubr.f32.gmra.mrb[0].mxu0 %v5120
      %v5312 = vpop.f32.mrb[0].mxu0
      %v5313 = vadd.f32 0.0, %v5312
      %v5314 = vpop.f32.mrb[0].mxu0
      %5315 = vmatprep.mubr.f32.mxu0 0.0
      %5316 = vmatmul.mubr.f32.gmra.mrb[0].mxu0 %v5123
      %v5317 = vpop.f32.mrb[0].mxu0
      %v5318 = vadd.f32 0.0, %v5317
      %v5319 = vpop.f32.mrb[0].mxu0
      %5320 = vmatprep.mubr.f32.mxu0 0.0
      %5321 = vmatmul.mubr.f32.gmra.mrb[0].mxu0 %v5126
      %v5322 = vpop.f32.mrb[0].mxu0
      %v5323 = vadd.f32 0.0, %v5322
      %v5324 = vpop.f32.mrb[0].mxu0
      %5325 = vmatprep.mubr.f32.mxu0 0.0
      %5326 = vmatmul.mubr.f32.gmra.mrb[0].mxu0 %v5129
      %v5327 = vpop.f32.mrb[0].mxu0
      %v5328 = vadd.f32 0.0, %v5327
      %v5329 = vpop.f32.mrb[0].mxu0
      %5330 = vmatprep.mubr.f32.mxu0 0.0
      %5331 = vmatmul.mubr.f32.gmra.mrb[0].mxu0 %v5132
      %v5332 = vpop.f32.mrb[0].mxu0
      %v5333 = vadd.f32 0.0, %v5332
      %v5334 = vpop.f32.mrb[0].mxu0
      %5335 = vmatprep.mubr.f32.mxu0 0.0
      %5336 = vmatmul.mubr.f32.gmra.mrb[0].mxu0 %v5135
      %v5337 = vpop.f32.mrb[0].mxu0
      %v5338 = vadd.f32 0.0, %v5337
      %v5339 = vpop.f32.mrb[0].mxu0
      %5340 = vmatprep.mubr.f32.mxu0 0.0
      %5341 = vmatmul.mubr.f32.gmra.mrb[0].mxu0 %v5138
      %v5342 = vpop.f32.mrb[0].mxu0
      %v5343 = vadd.f32 0.0, %v5342
      %v5344 = vpop.f32.mrb[0].mxu0
      %5345 = vmatprep.mubr.f32.mxu0 0.0
      %5346 = vmatmul.mubr.f32.gmra.mrb[0].mxu0 %v5141
      %v5347 = vpop.f32.mrb[0].mxu0
      %v5348 = vadd.f32 0.0, %v5347
      %v5349 = vpop.f32.mrb[0].mxu0
      %5350 = vmatprep.mubr.f32.mxu0 0.0
      %5351 = vmatmul.mubr.f32.gmra.mrb[0].mxu0 %v5144
      %v5352 = vpop.f32.mrb[0].mxu0
      %v5353 = vadd.f32 0.0, %v5352
      %v5354 = vpop.f32.mrb[0].mxu0
      %5355 = vmatprep.mubr.f32.mxu0 0.0
      %5356 = vmatmul.mubr.f32.gmra.mrb[0].mxu0 %v5147
      %v5357 = vpop.f32.mrb[0].mxu0
      %v5358 = vadd.f32 0.0, %v5357
      %v5359 = vpop.f32.mrb[0].mxu0
      %5360 = vmatprep.mubr.f32.mxu0 0.0
      %5361 = vmatmul.mubr.f32.gmra.mrb[0].mxu0 %v5150
      %v5362 = vpop.f32.mrb[0].mxu0
      %v5363 = vadd.f32 0.0, %v5362
      %v5364 = vpop.f32.mrb[0].mxu0
      %5365 = vmatprep.mubr.f32.mxu0 0.0
      %5366 = vmatmul.mubr.f32.gmra.mrb[0].mxu0 %v5153
      %v5367 = vpop.f32.mrb[0].mxu0
      %v5368 = vadd.f32 0.0, %v5367
      %v5369 = vpop.f32.mrb[0].mxu0
      %5370 = vmatprep.mubr.f32.mxu0 0.0
      %5371 = vmatmul.mubr.f32.gmra.mrb[0].mxu0 %v5156
      %v5372 = vpop.f32.mrb[0].mxu0
      %v5373 = vadd.f32 0.0, %v5372
      %v5374 = vpop.f32.mrb[0].mxu0
      %5375 = vmatprep.mubr.f32.mxu0 0.0
      %5376 = vmatmul.mubr.f32.gmra.mrb[0].mxu0 %v5159
      %v5377 = vpop.f32.mrb[0].mxu0
      %v5378 = vadd.f32 0.0, %v5377
      %v5379 = vpop.f32.mrb[0].mxu0
      %5380 = vmatprep.mubr.f32.mxu0 0.0
      %5381 = vmatmul.mubr.f32.gmra.mrb[0].mxu0 %v5162
      %v5382 = vpop.f32.mrb[0].mxu0
      %v5383 = vadd.f32 0.0, %v5382
      %v5384 = vpop.f32.mrb[0].mxu0
      %5385 = vmatprep.mubr.f32.mxu0 0.0
      %5386 = vmatmul.mubr.f32.gmra.mrb[0].mxu0 %v5165
      %v5387 = vpop.f32.mrb[0].mxu0
      %v5388 = vadd.f32 0.0, %v5387
      %v5389 = vpop.f32.mrb[0].mxu0
      %5390 = vmatprep.mubr.f32.mxu0 0.0
      %5391 = vmatmul.mubr.f32.gmra.mrb[0].mxu0 %v5168
      %v5392 = vpop.f32.mrb[0].mxu0
      %v5393 = vadd.f32 0.0, %v5392
      %v5394 = vpop.f32.mrb[0].mxu0
      %5395 = vmatprep.mubr.f32.mxu0 0.0
      %5396 = vmatmul.mubr.f32.gmra.mrb[0].mxu0 %v5171
      %v5397 = vpop.f32.mrb[0].mxu0
      %v5398 = vadd.f32 0.0, %v5397
      %v5399 = vpop.f32.mrb[0].mxu0
      %5400 = vdwg.mxu0
      %v5401 = vlaneseq
      %v5402 = vshrl.u32 %v5401, 7
      %v5403 = vsub.s32 0, %v5402
      %v5404 = vrot.slane %v379, %v5403
      %v5405 = vmul.f32 %v5243, %v5404
      %v5406 = vmul.f32 %v5248, %v5404
      %v5407 = vmul.f32 %v5253, %v5404
      %v5408 = vmul.f32 %v5258, %v5404
      %v5409 = vmul.f32 %v5263, %v5404
      %v5410 = vmul.f32 %v5268, %v5404
      %v5411 = vmul.f32 %v5273, %v5404
      %v5412 = vmul.f32 %v5278, %v5404
      %v5413 = vmul.f32 %v5283, %v5404
      %v5414 = vmul.f32 %v5288, %v5404
      %v5415 = vmul.f32 %v5293, %v5404
      %v5416 = vmul.f32 %v5298, %v5404
      %v5417 = vmul.f32 %v5303, %v5404
      %v5418 = vmul.f32 %v5308, %v5404
      %v5419 = vmul.f32 %v5313, %v5404
      %v5420 = vmul.f32 %v5318, %v5404
      %v5421 = vmul.f32 %v5323, %v5404
      %v5422 = vmul.f32 %v5328, %v5404
      %v5423 = vmul.f32 %v5333, %v5404
      %v5424 = vmul.f32 %v5338, %v5404
      %v5425 = vmul.f32 %v5343, %v5404
      %v5426 = vmul.f32 %v5348, %v5404
      %v5427 = vmul.f32 %v5353, %v5404
      %v5428 = vmul.f32 %v5358, %v5404
      %v5429 = vmul.f32 %v5363, %v5404
      %v5430 = vmul.f32 %v5368, %v5404
      %v5431 = vmul.f32 %v5373, %v5404
      %v5432 = vmul.f32 %v5378, %v5404
      %v5433 = vmul.f32 %v5383, %v5404
      %v5434 = vmul.f32 %v5388, %v5404
      %v5435 = vmul.f32 %v5393, %v5404
      %v5436 = vmul.f32 %v5398, %v5404
      %v5437 = vlaneseq
      %v5438 = vshrl.u32 %v5437, 7
      %v5439 = vsub.s32 0, %v5438
      %v5440 = vrot.slane %v380, %v5439
      %v5441 = vadd.f32 %v5405, %v5440
      %v5442 = vadd.f32 %v5406, %v5440
      %v5443 = vadd.f32 %v5407, %v5440
      %v5444 = vadd.f32 %v5408, %v5440
      %v5445 = vadd.f32 %v5409, %v5440
      %v5446 = vadd.f32 %v5410, %v5440
      %v5447 = vadd.f32 %v5411, %v5440
      %v5448 = vadd.f32 %v5412, %v5440
      %v5449 = vadd.f32 %v5413, %v5440
      %v5450 = vadd.f32 %v5414, %v5440
      %v5451 = vadd.f32 %v5415, %v5440
      %v5452 = vadd.f32 %v5416, %v5440
      %v5453 = vadd.f32 %v5417, %v5440
      %v5454 = vadd.f32 %v5418, %v5440
      %v5455 = vadd.f32 %v5419, %v5440
      %v5456 = vadd.f32 %v5420, %v5440
      %v5457 = vadd.f32 %v5421, %v5440
      %v5458 = vadd.f32 %v5422, %v5440
      %v5459 = vadd.f32 %v5423, %v5440
      %v5460 = vadd.f32 %v5424, %v5440
      %v5461 = vadd.f32 %v5425, %v5440
      %v5462 = vadd.f32 %v5426, %v5440
      %v5463 = vadd.f32 %v5427, %v5440
      %v5464 = vadd.f32 %v5428, %v5440
      %v5465 = vadd.f32 %v5429, %v5440
      %v5466 = vadd.f32 %v5430, %v5440
      %v5467 = vadd.f32 %v5431, %v5440
      %v5468 = vadd.f32 %v5432, %v5440
      %v5469 = vadd.f32 %v5433, %v5440
      %v5470 = vadd.f32 %v5434, %v5440
      %v5471 = vadd.f32 %v5435, %v5440
      %v5472 = vadd.f32 %v5436, %v5440
      %v5473 = vsel %vm2729, %v5441, 0.0
      %v5474 = vsel %vm2729, %v5442, 0.0
      %v5475 = vadd.f32 %v5473, %v5474
      %v5476 = vsel %vm2729, %v5443, 0.0
      %v5477 = vadd.f32 %v5475, %v5476
      %v5478 = vsel %vm2729, %v5444, 0.0
      %v5479 = vadd.f32 %v5477, %v5478
      %v5480 = vsel %vm2729, %v5445, 0.0
      %v5481 = vadd.f32 %v5479, %v5480
      %v5482 = vsel %vm2729, %v5446, 0.0
      %v5483 = vadd.f32 %v5481, %v5482
      %v5484 = vsel %vm2729, %v5447, 0.0
      %v5485 = vadd.f32 %v5483, %v5484
      %v5486 = vsel %vm2729, %v5448, 0.0
      %v5487 = vadd.f32 %v5485, %v5486
      %v5488 = vsel %vm2729, %v5449, 0.0
      %v5489 = vadd.f32 %v5487, %v5488
      %v5490 = vsel %vm2729, %v5450, 0.0
      %v5491 = vadd.f32 %v5489, %v5490
      %v5492 = vsel %vm2729, %v5451, 0.0
      %v5493 = vadd.f32 %v5491, %v5492
      %v5494 = vsel %vm2729, %v5452, 0.0
      %v5495 = vadd.f32 %v5493, %v5494
      %v5496 = vsel %vm2729, %v5453, 0.0
      %v5497 = vadd.f32 %v5495, %v5496
      %v5498 = vsel %vm2729, %v5454, 0.0
      %v5499 = vadd.f32 %v5497, %v5498
      %v5500 = vsel %vm2729, %v5455, 0.0
      %v5501 = vadd.f32 %v5499, %v5500
      %v5502 = vsel %vm2729, %v5456, 0.0
      %v5503 = vadd.f32 %v5501, %v5502
      %v5504 = vsel %vm2729, %v5457, 0.0
      %v5505 = vadd.f32 %v5503, %v5504
      %v5506 = vsel %vm2729, %v5458, 0.0
      %v5507 = vadd.f32 %v5505, %v5506
      %v5508 = vsel %vm2729, %v5459, 0.0
      %v5509 = vadd.f32 %v5507, %v5508
      %v5510 = vsel %vm2729, %v5460, 0.0
      %v5511 = vadd.f32 %v5509, %v5510
      %v5512 = vsel %vm2729, %v5461, 0.0
      %v5513 = vadd.f32 %v5511, %v5512
      %v5514 = vsel %vm2729, %v5462, 0.0
      %v5515 = vadd.f32 %v5513, %v5514
      %v5516 = vsel %vm2729, %v5463, 0.0
      %v5517 = vadd.f32 %v5515, %v5516
      %v5518 = vsel %vm2729, %v5464, 0.0
      %v5519 = vadd.f32 %v5517, %v5518
      %v5520 = vsel %vm2729, %v5465, 0.0
      %v5521 = vadd.f32 %v5519, %v5520
      %v5522 = vsel %vm2729, %v5466, 0.0
      %v5523 = vadd.f32 %v5521, %v5522
      %v5524 = vsel %vm2729, %v5467, 0.0
      %v5525 = vadd.f32 %v5523, %v5524
      %v5526 = vsel %vm2729, %v5468, 0.0
      %v5527 = vadd.f32 %v5525, %v5526
      %v5528 = vsel %vm2729, %v5469, 0.0
      %v5529 = vadd.f32 %v5527, %v5528
      %v5530 = vsel %vm2729, %v5470, 0.0
      %v5531 = vadd.f32 %v5529, %v5530
      %v5532 = vsel %vm2729, %v5471, 0.0
      %v5533 = vadd.f32 %v5531, %v5532
      %v5534 = vsel %vm2729, %v5472, 0.0
      %v5535 = vadd.f32 %v5533, %v5534
      %v5536 = vrot.slane %v5535, 4
      %v5537 = vadd.f32 %v5535, %v5536
      %v5538 = vrot.slane %v5537, 2
      %v5539 = vadd.f32 %v5537, %v5538
      %v5540 = vrot.slane %v5539, 1
      %v5541 = vadd.f32 %v5539, %v5540
      %v5542 = vrcp.pop 256.0
      %v5543 = vmul.f32 %v5541, %v5542
      %v5544 = vld [vmem:[%s4] sm:$0xff]
      %v5545 = vld [vmem:[%s7] sm:$0x1]
      %v5547 = vsel %vm2729, %v5543, 0
      %5549 = vmatprep.subr.mxu0 0.0
      %5550 = vmatpush1.msra.mxu0 %v5544
      %5551 = vmatprep.subr.mxu0 0.0
      %5552 = vmatpush1.msra.mxu0 0.0
      %5553 = vmatprep.subr.mxu0 0.0
      %5554 = vmatpush1.msra.mxu0 0.0
      %5555 = vmatprep.subr.mxu0 0.0
      %5556 = vmatpush1.msra.mxu0 0.0
      %5557 = vmatprep.subr.mxu0 0.0
      %5558 = vmatpush1.msra.mxu0 0.0
      %5559 = vmatprep.subr.mxu0 0.0
      %5560 = vmatpush1.msra.mxu0 0.0
      %5561 = vmatprep.subr.mxu0 0.0
      %5562 = vmatpush1.msra.mxu0 0.0
      %5563 = vmatprep.subr.mxu0 0.0
      %5564 = vmatpush1.msra.mxu0 0.0
      %5565 = vmatprep.subr.mxu0 0.0
      %5566 = vmatpush1.msra.mxu0 0.0
      %5567 = vmatprep.subr.mxu0 0.0
      %5568 = vmatpush1.msra.mxu0 0.0
      %5569 = vmatprep.subr.mxu0 0.0
      %5570 = vmatpush1.msra.mxu0 0.0
      %5571 = vmatprep.subr.mxu0 0.0
      %5572 = vmatpush1.msra.mxu0 0.0
      %5573 = vmatprep.subr.mxu0 0.0
      %5574 = vmatpush1.msra.mxu0 0.0
      %5575 = vmatprep.subr.mxu0 0.0
      %5576 = vmatpush1.msra.mxu0 0.0
      %5577 = vmatprep.subr.mxu0 0.0
      %5578 = vmatpush1.msra.mxu0 0.0
      %5579 = vmatprep.subr.mxu0 0.0
      %5580 = vmatpush1.msra.mxu0 0.0
      %5581 = vmatprep.subr.mxu0 0.0
      %5582 = vmatpush1.msra.mxu0 0.0
      %5583 = vmatprep.subr.mxu0 0.0
      %5584 = vmatpush1.msra.mxu0 0.0
      %5585 = vmatprep.subr.mxu0 0.0
      %5586 = vmatpush1.msra.mxu0 0.0
      %5587 = vmatprep.subr.mxu0 0.0
      %5588 = vmatpush1.msra.mxu0 0.0
      %5589 = vmatprep.subr.mxu0 0.0
      %5590 = vmatpush1.msra.mxu0 0.0
      %5591 = vmatprep.subr.mxu0 0.0
      %5592 = vmatpush1.msra.mxu0 0.0
      %5593 = vmatprep.subr.mxu0 0.0
      %5594 = vmatpush1.msra.mxu0 0.0
      %5595 = vmatprep.subr.mxu0 0.0
      %5596 = vmatpush1.msra.mxu0 0.0
      %5597 = vmatprep.subr.mxu0 0.0
      %5598 = vmatpush1.msra.mxu0 0.0
      %5599 = vmatprep.subr.mxu0 0.0
      %5600 = vmatpush1.msra.mxu0 0.0
      %5601 = vmatprep.subr.mxu0 0.0
      %5602 = vmatpush1.msra.mxu0 0.0
      %5603 = vmatprep.subr.mxu0 0.0
      %5604 = vmatpush1.msra.mxu0 0.0
      %5605 = vmatprep.subr.mxu0 0.0
      %5606 = vmatpush1.msra.mxu0 0.0
      %5607 = vmatprep.subr.mxu0 0.0
      %5608 = vmatpush1.msra.mxu0 0.0
      %5609 = vmatprep.subr.mxu0 0.0
      %5610 = vmatpush1.msra.mxu0 0.0
      %5611 = vmatprep.subr.mxu0 0.0
      %5612 = vmatpush1.msra.mxu0 0.0
      %5613 = vmatprep.mubr.f32.mxu0 0.0
      %5614 = vmatmul.mubr.f32.gmra.mrb[0].mxu0 %v5547
      %v5615 = vpop.f32.mrb[0].mxu0
      %v5616 = vadd.f32 %v5545, %v5615
      %v5617 = vpop.f32.mrb[0].mxu0
      %5618 = vdwg.mxu0
      %v5619 = vxor.u32 %v5616, 2147483648
      %v5620 = vmul.f32 %v5619, 1.442695
      %v5621 = vpow.pop %v5620
      %v5622 = vadd.f32 %v5621, 1.0
      %v5623 = vrcp.pop %v5622
      %v5624 = vmul.f32 1.0, %v5623
      %v5625 = vmul.f32 %v5616, %v5624
      %v5626 = vld [vmem:[%s5] sm:$0xff]
      %v5627 = vld [vmem:[%s5 + $0x8] sm:$0xff]
      %vm5628 = vcmask 130048
      %v5630 = vsel %vm5628, %v5625, 0
      %5632 = vmatprep.subr.mxu0 0.0
      %5633 = vmatpush1.msra.mxu0 %v5626
      %5634 = vmatprep.subr.mxu0 0.0
      %5635 = vmatpush1.msra.mxu0 %v5627
      %5636 = vmatprep.subr.mxu0 0.0
      %5637 = vmatpush1.msra.mxu0 0.0
      %5638 = vmatprep.subr.mxu0 0.0
      %5639 = vmatpush1.msra.mxu0 0.0
      %5640 = vmatprep.subr.mxu0 0.0
      %5641 = vmatpush1.msra.mxu0 0.0
      %5642 = vmatprep.subr.mxu0 0.0
      %5643 = vmatpush1.msra.mxu0 0.0
      %5644 = vmatprep.subr.mxu0 0.0
      %5645 = vmatpush1.msra.mxu0 0.0
      %5646 = vmatprep.subr.mxu0 0.0
      %5647 = vmatpush1.msra.mxu0 0.0
      %5648 = vmatprep.subr.mxu0 0.0
      %5649 = vmatpush1.msra.mxu0 0.0
      %5650 = vmatprep.subr.mxu0 0.0
      %5651 = vmatpush1.msra.mxu0 0.0
      %5652 = vmatprep.subr.mxu0 0.0
      %5653 = vmatpush1.msra.mxu0 0.0
      %5654 = vmatprep.subr.mxu0 0.0
      %5655 = vmatpush1.msra.mxu0 0.0
      %5656 = vmatprep.subr.mxu0 0.0
      %5657 = vmatpush1.msra.mxu0 0.0
      %5658 = vmatprep.subr.mxu0 0.0
      %5659 = vmatpush1.msra.mxu0 0.0
      %5660 = vmatprep.subr.mxu0 0.0
      %5661 = vmatpush1.msra.mxu0 0.0
      %5662 = vmatprep.subr.mxu0 0.0
      %5663 = vmatpush1.msra.mxu0 0.0
      %5664 = vmatprep.subr.mxu0 0.0
      %5665 = vmatpush1.msra.mxu0 0.0
      %5666 = vmatprep.subr.mxu0 0.0
      %5667 = vmatpush1.msra.mxu0 0.0
      %5668 = vmatprep.subr.mxu0 0.0
      %5669 = vmatpush1.msra.mxu0 0.0
      %5670 = vmatprep.subr.mxu0 0.0
      %5671 = vmatpush1.msra.mxu0 0.0
      %5672 = vmatprep.subr.mxu0 0.0
      %5673 = vmatpush1.msra.mxu0 0.0
      %5674 = vmatprep.subr.mxu0 0.0
      %5675 = vmatpush1.msra.mxu0 0.0
      %5676 = vmatprep.subr.mxu0 0.0
      %5677 = vmatpush1.msra.mxu0 0.0
      %5678 = vmatprep.subr.mxu0 0.0
      %5679 = vmatpush1.msra.mxu0 0.0
      %5680 = vmatprep.subr.mxu0 0.0
      %5681 = vmatpush1.msra.mxu0 0.0
      %5682 = vmatprep.subr.mxu0 0.0
      %5683 = vmatpush1.msra.mxu0 0.0
      %5684 = vmatprep.subr.mxu0 0.0
      %5685 = vmatpush1.msra.mxu0 0.0
      %5686 = vmatprep.subr.mxu0 0.0
      %5687 = vmatpush1.msra.mxu0 0.0
      %5688 = vmatprep.subr.mxu0 0.0
      %5689 = vmatpush1.msra.mxu0 0.0
      %5690 = vmatprep.subr.mxu0 0.0
      %5691 = vmatpush1.msra.mxu0 0.0
      %5692 = vmatprep.subr.mxu0 0.0
      %5693 = vmatpush1.msra.mxu0 0.0
      %5694 = vmatprep.subr.mxu0 0.0
      %5695 = vmatpush1.msra.mxu0 0.0
      %5696 = vmatprep.mubr.f32.mxu0 0.0
      %5697 = vmatmul.mubr.f32.gmra.mrb[0].mxu0 %v5630
      %v5698 = vpop.f32.mrb[0].mxu0
      %v5699 = vadd.f32 %v381, %v5698
      %v5700 = vpop.f32.mrb[0].mxu0
      %5701 = vdwg.mxu0
      %v5702 = vxor.u32 %v5699, 2147483648
      %v5703 = vmul.f32 %v5702, 1.442695
      %v5704 = vpow.pop %v5703
      %v5705 = vadd.f32 %v5704, 1.0
      %v5706 = vrcp.pop %v5705
      %v5707 = vmul.f32 1.0, %v5706
      %v5708 = vlaneseq
      %v5709 = vshrl.u32 %v5708, 7
      %v5710 = vsub.s32 0, %v5709
      %v5711 = vrot.slane %v5707, %v5710
      %v5712 = vmul.f32 %v5441, %v5711
      %v5713 = vmul.f32 %v5442, %v5711
      %v5714 = vmul.f32 %v5443, %v5711
      %v5715 = vmul.f32 %v5444, %v5711
      %v5716 = vmul.f32 %v5445, %v5711
      %v5717 = vmul.f32 %v5446, %v5711
      %v5718 = vmul.f32 %v5447, %v5711
      %v5719 = vmul.f32 %v5448, %v5711
      %v5720 = vmul.f32 %v5449, %v5711
      %v5721 = vmul.f32 %v5450, %v5711
      %v5722 = vmul.f32 %v5451, %v5711
      %v5723 = vmul.f32 %v5452, %v5711
      %v5724 = vmul.f32 %v5453, %v5711
      %v5725 = vmul.f32 %v5454, %v5711
      %v5726 = vmul.f32 %v5455, %v5711
      %v5727 = vmul.f32 %v5456, %v5711
      %v5728 = vmul.f32 %v5457, %v5711
      %v5729 = vmul.f32 %v5458, %v5711
      %v5730 = vmul.f32 %v5459, %v5711
      %v5731 = vmul.f32 %v5460, %v5711
      %v5732 = vmul.f32 %v5461, %v5711
      %v5733 = vmul.f32 %v5462, %v5711
      %v5734 = vmul.f32 %v5463, %v5711
      %v5735 = vmul.f32 %v5464, %v5711
      %v5736 = vmul.f32 %v5465, %v5711
      %v5737 = vmul.f32 %v5466, %v5711
      %v5738 = vmul.f32 %v5467, %v5711
      %v5739 = vmul.f32 %v5468, %v5711
      %v5740 = vmul.f32 %v5469, %v5711
      %v5741 = vmul.f32 %v5470, %v5711
      %v5742 = vmul.f32 %v5471, %v5711
      %v5743 = vmul.f32 %v5472, %v5711
      %v5744 = vadd.f32 %v5012, %v5712
      %v5745 = vadd.f32 %v5013, %v5713
      %v5746 = vadd.f32 %v5014, %v5714
      %v5747 = vadd.f32 %v5015, %v5715
      %v5748 = vadd.f32 %v5016, %v5716
      %v5749 = vadd.f32 %v5017, %v5717
      %v5750 = vadd.f32 %v5018, %v5718
      %v5751 = vadd.f32 %v5019, %v5719
      %v5752 = vadd.f32 %v5020, %v5720
      %v5753 = vadd.f32 %v5021, %v5721
      %v5754 = vadd.f32 %v5022, %v5722
      %v5755 = vadd.f32 %v5023, %v5723
      %v5756 = vadd.f32 %v5024, %v5724
      %v5757 = vadd.f32 %v5025, %v5725
      %v5758 = vadd.f32 %v5026, %v5726
      %v5759 = vadd.f32 %v5027, %v5727
      %v5760 = vadd.f32 %v5028, %v5728
      %v5761 = vadd.f32 %v5029, %v5729
      %v5762 = vadd.f32 %v5030, %v5730
      %v5763 = vadd.f32 %v5031, %v5731
      %v5764 = vadd.f32 %v5032, %v5732
      %v5765 = vadd.f32 %v5033, %v5733
      %v5766 = vadd.f32 %v5034, %v5734
      %v5767 = vadd.f32 %v5035, %v5735
      %v5768 = vadd.f32 %v5036, %v5736
      %v5769 = vadd.f32 %v5037, %v5737
      %v5770 = vadd.f32 %v5038, %v5738
      %v5771 = vadd.f32 %v5039, %v5739
      %v5772 = vadd.f32 %v5040, %v5740
      %v5773 = vadd.f32 %v5041, %v5741
      %v5774 = vadd.f32 %v5042, %v5742
      %v5775 = vadd.f32 %v5043, %v5743
      %v5776 = vmax.f32 %v5744, 0.0
      %v5777 = vmax.f32 %v5745, 0.0
      %v5778 = vmax.f32 %v5746, 0.0
      %v5779 = vmax.f32 %v5747, 0.0
      %v5780 = vmax.f32 %v5748, 0.0
      %v5781 = vmax.f32 %v5749, 0.0
      %v5782 = vmax.f32 %v5750, 0.0
      %v5783 = vmax.f32 %v5751, 0.0
      %v5784 = vmax.f32 %v5752, 0.0
      %v5785 = vmax.f32 %v5753, 0.0
      %v5786 = vmax.f32 %v5754, 0.0
      %v5787 = vmax.f32 %v5755, 0.0
      %v5788 = vmax.f32 %v5756, 0.0
      %v5789 = vmax.f32 %v5757, 0.0
      %v5790 = vmax.f32 %v5758, 0.0
      %v5791 = vmax.f32 %v5759, 0.0
      %v5792 = vmax.f32 %v5760, 0.0
      %v5793 = vmax.f32 %v5761, 0.0
      %v5794 = vmax.f32 %v5762, 0.0
      %v5795 = vmax.f32 %v5763, 0.0
      %v5796 = vmax.f32 %v5764, 0.0
      %v5797 = vmax.f32 %v5765, 0.0
      %v5798 = vmax.f32 %v5766, 0.0
      %v5799 = vmax.f32 %v5767, 0.0
      %v5800 = vmax.f32 %v5768, 0.0
      %v5801 = vmax.f32 %v5769, 0.0
      %v5802 = vmax.f32 %v5770, 0.0
      %v5803 = vmax.f32 %v5771, 0.0
      %v5804 = vmax.f32 %v5772, 0.0
      %v5805 = vmax.f32 %v5773, 0.0
      %v5806 = vmax.f32 %v5774, 0.0
      %v5807 = vmax.f32 %v5775, 0.0
      %5808 = vst.msk [vmem:[%s367] sm:$0xff] %vm2729, %v5776
      %5809 = vst.msk [vmem:[%s367 + $0x8] sm:$0xff] %vm2729, %v5777
      %5810 = vst.msk [vmem:[%s367 + $0x10] sm:$0xff] %vm2729, %v5778
      %5811 = vst.msk [vmem:[%s367 + $0x18] sm:$0xff] %vm2729, %v5779
      %5812 = vst.msk [vmem:[%s367 + $0x20] sm:$0xff] %vm2729, %v5780
      %5813 = vst.msk [vmem:[%s367 + $0x28] sm:$0xff] %vm2729, %v5781
      %5814 = vst.msk [vmem:[%s367 + $0x30] sm:$0xff] %vm2729, %v5782
      %5815 = vst.msk [vmem:[%s367 + $0x38] sm:$0xff] %vm2729, %v5783
      %5816 = vst.msk [vmem:[%s367 + $0x40] sm:$0xff] %vm2729, %v5784
      %5817 = vst.msk [vmem:[%s367 + $0x48] sm:$0xff] %vm2729, %v5785
      %5818 = vst.msk [vmem:[%s367 + $0x50] sm:$0xff] %vm2729, %v5786
      %5819 = vst.msk [vmem:[%s367 + $0x58] sm:$0xff] %vm2729, %v5787
      %5820 = vst.msk [vmem:[%s367 + $0x60] sm:$0xff] %vm2729, %v5788
      %5821 = vst.msk [vmem:[%s367 + $0x68] sm:$0xff] %vm2729, %v5789
      %5822 = vst.msk [vmem:[%s367 + $0x70] sm:$0xff] %vm2729, %v5790
      %5823 = vst.msk [vmem:[%s367 + $0x78] sm:$0xff] %vm2729, %v5791
      %5824 = vst.msk [vmem:[%s367 + $0x80] sm:$0xff] %vm2729, %v5792
      %5825 = vst.msk [vmem:[%s367 + $0x88] sm:$0xff] %vm2729, %v5793
      %5826 = vst.msk [vmem:[%s367 + $0x90] sm:$0xff] %vm2729, %v5794
      %5827 = vst.msk [vmem:[%s367 + $0x98] sm:$0xff] %vm2729, %v5795
      %5828 = vst.msk [vmem:[%s367 + $0xa0] sm:$0xff] %vm2729, %v5796
      %5829 = vst.msk [vmem:[%s367 + $0xa8] sm:$0xff] %vm2729, %v5797
      %5830 = vst.msk [vmem:[%s367 + $0xb0] sm:$0xff] %vm2729, %v5798
      %5831 = vst.msk [vmem:[%s367 + $0xb8] sm:$0xff] %vm2729, %v5799
      %5832 = vst.msk [vmem:[%s367 + $0xc0] sm:$0xff] %vm2729, %v5800
      %5833 = vst.msk [vmem:[%s367 + $0xc8] sm:$0xff] %vm2729, %v5801
      %5834 = vst.msk [vmem:[%s367 + $0xd0] sm:$0xff] %vm2729, %v5802
      %5835 = vst.msk [vmem:[%s367 + $0xd8] sm:$0xff] %vm2729, %v5803
      %5836 = vst.msk [vmem:[%s367 + $0xe0] sm:$0xff] %vm2729, %v5804
      %5837 = vst.msk [vmem:[%s367 + $0xe8] sm:$0xff] %vm2729, %v5805
      %5838 = vst.msk [vmem:[%s367 + $0xf0] sm:$0xff] %vm2729, %v5806
      %5839 = vst.msk [vmem:[%s367 + $0xf8] sm:$0xff] %vm2729, %v5807
      %v5840 = vld [vmem:[%s8] sm:$0xff]
      %v5841 = vld [vmem:[%s8 + $0x8] sm:$0xff]
      %v5842 = vld [vmem:[%s8 + $0x10] sm:$0xff]
      %v5843 = vld [vmem:[%s8 + $0x18] sm:$0xff]
      %v5844 = vld [vmem:[%s8 + $0x20] sm:$0xff]
      %v5845 = vld [vmem:[%s8 + $0x28] sm:$0xff]
      %v5846 = vld [vmem:[%s8 + $0x30] sm:$0xff]
      %v5847 = vld [vmem:[%s8 + $0x38] sm:$0xff]
      %v5848 = vld [vmem:[%s8 + $0x40] sm:$0xff]
      %v5849 = vld [vmem:[%s8 + $0x48] sm:$0xff]
      %v5850 = vld [vmem:[%s8 + $0x50] sm:$0xff]
      %v5851 = vld [vmem:[%s8 + $0x58] sm:$0xff]
      %v5852 = vld [vmem:[%s8 + $0x60] sm:$0xff]
      %v5853 = vld [vmem:[%s8 + $0x68] sm:$0xff]
      %v5854 = vld [vmem:[%s8 + $0x70] sm:$0xff]
      %v5855 = vld [vmem:[%s8 + $0x78] sm:$0xff]
      %5856 = vmatprep.subr.mxu0 0.0
      %5857 = vmatpush1.msra.mxu0 %v5776
      %5858 = vmatprep.subr.mxu0 0.0
      %5859 = vmatpush1.msra.mxu0 %v5777
      %5860 = vmatprep.subr.mxu0 0.0
      %5861 = vmatpush1.msra.mxu0 %v5778
      %5862 = vmatprep.subr.mxu0 0.0
      %5863 = vmatpush1.msra.mxu0 %v5779
      %5864 = vmatprep.subr.mxu0 0.0
      %5865 = vmatpush1.msra.mxu0 %v5780
      %5866 = vmatprep.subr.mxu0 0.0
      %5867 = vmatpush1.msra.mxu0 %v5781
      %5868 = vmatprep.subr.mxu0 0.0
      %5869 = vmatpush1.msra.mxu0 %v5782
      %5870 = vmatprep.subr.mxu0 0.0
      %5871 = vmatpush1.msra.mxu0 %v5783
      %5872 = vmatprep.subr.mxu0 0.0
      %5873 = vmatpush1.msra.mxu0 %v5784
      %5874 = vmatprep.subr.mxu0 0.0
      %5875 = vmatpush1.msra.mxu0 %v5785
      %5876 = vmatprep.subr.mxu0 0.0
      %5877 = vmatpush1.msra.mxu0 %v5786
      %5878 = vmatprep.subr.mxu0 0.0
      %5879 = vmatpush1.msra.mxu0 %v5787
      %5880 = vmatprep.subr.mxu0 0.0
      %5881 = vmatpush1.msra.mxu0 %v5788
      %5882 = vmatprep.subr.mxu0 0.0
      %5883 = vmatpush1.msra.mxu0 %v5789
      %5884 = vmatprep.subr.mxu0 0.0
      %5885 = vmatpush1.msra.mxu0 %v5790
      %5886 = vmatprep.subr.mxu0 0.0
      %5887 = vmatpush1.msra.mxu0 %v5791
      %5888 = vmatprep.subr.mxu0 0.0
      %5889 = vmatpush1.msra.mxu0 %v5792
      %5890 = vmatprep.subr.mxu0 0.0
      %5891 = vmatpush1.msra.mxu0 %v5793
      %5892 = vmatprep.subr.mxu0 0.0
      %5893 = vmatpush1.msra.mxu0 %v5794
      %5894 = vmatprep.subr.mxu0 0.0
      %5895 = vmatpush1.msra.mxu0 %v5795
      %5896 = vmatprep.subr.mxu0 0.0
      %5897 = vmatpush1.msra.mxu0 %v5796
      %5898 = vmatprep.subr.mxu0 0.0
      %5899 = vmatpush1.msra.mxu0 %v5797
      %5900 = vmatprep.subr.mxu0 0.0
      %5901 = vmatpush1.msra.mxu0 %v5798
      %5902 = vmatprep.subr.mxu0 0.0
      %5903 = vmatpush1.msra.mxu0 %v5799
      %5904 = vmatprep.subr.mxu0 0.0
      %5905 = vmatpush1.msra.mxu0 %v5800
      %5906 = vmatprep.subr.mxu0 0.0
      %5907 = vmatpush1.msra.mxu0 %v5801
      %5908 = vmatprep.subr.mxu0 0.0
      %5909 = vmatpush1.msra.mxu0 %v5802
      %5910 = vmatprep.subr.mxu0 0.0
      %5911 = vmatpush1.msra.mxu0 %v5803
      %5912 = vmatprep.subr.mxu0 0.0
      %5913 = vmatpush1.msra.mxu0 %v5804
      %5914 = vmatprep.subr.mxu0 0.0
      %5915 = vmatpush1.msra.mxu0 %v5805
      %5916 = vmatprep.subr.mxu0 0.0
      %5917 = vmatpush1.msra.mxu0 %v5806
      %5918 = vmatprep.subr.mxu0 0.0
      %5919 = vmatpush1.msra.mxu0 %v5807
      %5920 = vmatprep.mubr.f32.mxu0 %v5841
      %5921 = vmatmul.mubr.f32.gmra.mrb[0].mxu0 %v5840
      %v5922 = vpop.f32.mrb[0].mxu0
      %v5923 = vadd.f32 0.0, %v5922
      %v5924 = vpop.f32.mrb[0].mxu0
      %5925 = vmatprep.mubr.f32.mxu0 %v5843
      %5926 = vmatmul.mubr.f32.gmra.mrb[0].mxu0 %v5842
      %v5927 = vpop.f32.mrb[0].mxu0
      %v5928 = vadd.f32 0.0, %v5927
      %v5929 = vpop.f32.mrb[0].mxu0
      %5930 = vmatprep.mubr.f32.mxu0 %v5845
      %5931 = vmatmul.mubr.f32.gmra.mrb[0].mxu0 %v5844
      %v5932 = vpop.f32.mrb[0].mxu0
      %v5933 = vadd.f32 0.0, %v5932
      %v5934 = vpop.f32.mrb[0].mxu0
      %5935 = vmatprep.mubr.f32.mxu0 %v5847
      %5936 = vmatmul.mubr.f32.gmra.mrb[0].mxu0 %v5846
      %v5937 = vpop.f32.mrb[0].mxu0
      %v5938 = vadd.f32 0.0, %v5937
      %v5939 = vpop.f32.mrb[0].mxu0
      %5940 = vmatprep.mubr.f32.mxu0 %v5849
      %5941 = vmatmul.mubr.f32.gmra.mrb[0].mxu0 %v5848
      %v5942 = vpop.f32.mrb[0].mxu0
      %v5943 = vadd.f32 0.0, %v5942
      %v5944 = vpop.f32.mrb[0].mxu0
      %5945 = vmatprep.mubr.f32.mxu0 %v5851
      %5946 = vmatmul.mubr.f32.gmra.mrb[0].mxu0 %v5850
      %v5947 = vpop.f32.mrb[0].mxu0
      %v5948 = vadd.f32 0.0, %v5947
      %v5949 = vpop.f32.mrb[0].mxu0
      %5950 = vmatprep.mubr.f32.mxu0 %v5853
      %5951 = vmatmul.mubr.f32.gmra.mrb[0].mxu0 %v5852
      %v5952 = vpop.f32.mrb[0].mxu0
      %v5953 = vadd.f32 0.0, %v5952
      %v5954 = vpop.f32.mrb[0].mxu0
      %5955 = vmatprep.mubr.f32.mxu0 %v5855
      %5956 = vmatmul.mubr.f32.gmra.mrb[0].mxu0 %v5854
      %v5957 = vpop.f32.mrb[0].mxu0
      %v5958 = vadd.f32 0.0, %v5957
      %v5959 = vpop.f32.mrb[0].mxu0
      %5960 = vdwg.mxu0
      %5961 = vst.msk [vmem:[%s372] sm:$0xff] %vm2729, %v5923
      %5962 = vst.msk [vmem:[%s372 + $0x8] sm:$0xff] %vm2729, %v5928
      %5963 = vst.msk [vmem:[%s372 + $0x10] sm:$0xff] %vm2729, %v5933
      %5964 = vst.msk [vmem:[%s372 + $0x18] sm:$0xff] %vm2729, %v5938
      %5965 = vst.msk [vmem:[%s372 + $0x20] sm:$0xff] %vm2729, %v5943
      %5966 = vst.msk [vmem:[%s372 + $0x28] sm:$0xff] %vm2729, %v5948
      %5967 = vst.msk [vmem:[%s372 + $0x30] sm:$0xff] %vm2729, %v5953
      %5968 = vst.msk [vmem:[%s372 + $0x38] sm:$0xff] %vm2729, %v5958
      %p5969 = scmp.lt.s32.totalorder %s22, 1
      %s5970 = scalar_select %p5969, %s22, 1
      %s5971 = smul.addr %s5970, 32
      %s5972 = smul.addr %s5971, 8
      %s5973 = scalar_lea.vmem %s9, %s5972
      %p5974 = scmp.lt.s32.totalorder %s22, 1
      %s5975 = scalar_select %p5974, %s22, 1
      %s5976 = smul.addr %s5975, 8
      %s5977 = smul.addr %s5976, 8
      %s5978 = scalar_lea.vmem %s10, %s5977
      // Predicated region
      $region57: #{encoder_block.1} parent=55 // pred_check
        %p5979 = pneg %p234
      $region58: #{encoder_block.1} parent=55 // pred_check_branch
        %5981 = sbr.rel (%p5979) target = $region60
      $region59: #{encoder_block.1} parent=55 // pred_region
        _
      $region60: #{encoder_block.1} parent=55 // pred_fallthru
        _
      // Predicated region
      $region61: #{encoder_block.1} parent=55 // pred_check
        %p5982 = pneg %p260
      $region62: #{encoder_block.1} parent=55 // pred_check_branch
        %5984 = sbr.rel (%p5982) target = $region64
      $region63: #{encoder_block.1} parent=55 // pred_region
        _
      $region64: #{encoder_block.1} parent=55 // pred_fallthru
        _
    $region56: #{encoder_block.1} parent=5 // pred_fallthru
      _
    %p5985 = scmp.le.s32.totalorder 2, %s17
    // Predicated region
    $region65: #{encoder_block.1} parent=5 // pred_check
      %p5986 = pneg %p5985
    $region66: #{encoder_block.1} parent=5 // pred_check_branch
      %5988 = sbr.rel (%p5986) target = $region68
    $region67: #{encoder_block.1} parent=5 // pred_region
      %s5989 = ssub.s32 %s17, 2
      // Predicated region
      $region69: #{encoder_block.1} parent=67 // pred_check
        %p5990 = pneg %p240
      $region70: #{encoder_block.1} parent=67 // pred_check_branch
        %5992 = sbr.rel (%p5990) target = $region72
      $region71: #{encoder_block.1} parent=67 // pred_region
        %p5993 = scmp.lt.s32.totalorder %s23, 1
        %s5994 = scalar_select %p5993, %s23, 1
        %s5995 = smul.addr %s5994, 32
        %s5996 = smul.addr %s5995, 8
        %s5997 = scalar_lea.vmem %s9, %s5996
      $region72: #{encoder_block.1} parent=67 // pred_fallthru
        _
      // Predicated region
      $region73: #{encoder_block.1} parent=67 // pred_check
        %p5998 = pneg %p266
      $region74: #{encoder_block.1} parent=67 // pred_check_branch
        %6000 = sbr.rel (%p5998) target = $region76
      $region75: #{encoder_block.1} parent=67 // pred_region
        %p6001 = scmp.lt.s32.totalorder %s23, 1
        %s6002 = scalar_select %p6001, %s23, 1
        %s6003 = smul.addr %s6002, 8
        %s6004 = smul.addr %s6003, 8
        %s6005 = scalar_lea.vmem %s10, %s6004
      $region76: #{encoder_block.1} parent=67 // pred_fallthru
        _
    $region68: #{encoder_block.1} parent=5 // pred_fallthru
      _
  $region6: #{encoder_block.1} parent=0 // loop_footer
    %s21 = sadd.s32 1, %s17
  $region7: #{encoder_block.1} parent=0 // loop_footer_branch
    %16 = sbr.rel target = $region3
  $region8: #{encoder_block.1} parent=0 // loop_exit
    _

</llo_original>
